<compile_context>
chip_gen: v7x
topology: tpu7x:2x2x1
jax: 0.10.0
libtpu: 0.0.40
codegen_flags: <defaults>
</compile_context>

<pallas_src>
import functools

import jax
import jax.numpy as jnp
from jax import lax
from jax.experimental import pallas as pl
from jax.experimental.pallas import tpu as pltpu

# ---------------- configuration (small, consistent with the module) ----------------
N_RAYS = 256          # number of rays per batch
N_SAMPLES = 16        # n_samples along each ray
XYZ_FREQS = 10        # xyz_embedder: 3 + 3*2*10 = 63
UVST_FREQS = 4        # uv/st embedders: 3 + 3*2*4 = 27 each -> nelf input 54
HIDDEN = 64           # field hidden width
NEAR, FAR = 2.0, 6.0
TR = 128              # rays per tile == lane width (lane-dense everywhere)
REC_LOSS_WEIGHT = 1.0
CONSIST_LOSS_WEIGHT = 1.0


# ------------- Pallas kernel: fused NeLF MLP + coarse-field MLP + rendering -------------
def _fused_kernel(near, far,
                  emb_ref, z_ref, d_ref, lf_ref,
                  cw0_ref, cb0_ref, cw1_ref, cb1_ref, cw2_ref, cb2_ref,
                  nw0_ref, nb0_ref, nw1_ref, nb1_ref, nw2_ref, nb2_ref,
                  cmap_ref, dmap_ref, amap_ref, mmap_ref, lfout_ref):
    """One 128-ray tile: NeLF field, coarse field for all S samples (sample axis folded
    onto lanes -> wide MXU matmuls), and streaming NeRF volume rendering."""
    f32 = jnp.float32
    bf16 = jnp.bfloat16
    trr = cmap_ref.shape[-1]
    s_tr = z_ref.shape[-1]
    S = s_tr // trr

    # ---- coarse NeRF field: one wide matmul per layer over all S*TR columns ----
    x = emb_ref[...]                                                       # (63, S*TR) bf16
    h = jnp.maximum(
        jnp.dot(cw0_ref[...], x, preferred_element_type=f32) + cb0_ref[...], 0.0)
    h = jnp.maximum(
        jnp.dot(cw1_ref[...], h.astype(bf16), preferred_element_type=f32)
        + cb1_ref[...], 0.0)
    o = jnp.dot(cw2_ref[...], h.astype(bf16), preferred_element_type=f32) \
        + cb2_ref[...]                                                     # (4, S*TR) f32

    # bulk transcendentals over the whole slab (EUP), f32
    rgb_all = jax.nn.sigmoid(o[1:4, :])                                    # (3, S*TR)
    sigma_all = jnp.maximum(o[0:1, :], 0.0)                                # relu(raw sigma)
    # alpha_noise_std = 0 on the eval path, so no noise is added.
    alpha_all = 1.0 - jnp.exp(-sigma_all * d_ref[...])                     # (1, S*TR)
    z_all = z_ref[...]                                                     # (1, S*TR)

    # ---- streaming raw2outputs over samples (pure VPU; static lane-aligned slices) ----
    t_run = jnp.ones((1, trr), f32)        # running exclusive transmittance
    cmap = jnp.zeros((3, trr), f32)
    dmap = jnp.zeros((1, trr), f32)
    amap = jnp.zeros((1, trr), f32)
    w_best = jnp.full((1, trr), -1.0, f32)
    m_best = jnp.zeros((1, trr), f32)
    for s in range(S):                     # static unroll (S small, LLO-visible)
        lo = s * trr
        alpha = alpha_all[:, lo:lo + trr]                                  # (1, TR)
        rgb = rgb_all[:, lo:lo + trr]                                      # (3, TR)
        z_s = z_all[:, lo:lo + trr]                                        # (1, TR)
        w = alpha * t_run                                                  # weight_s
        cmap = cmap + w * rgb
        dmap = dmap + w * z_s
        amap = amap + w
        # max-occ depth: z at the max-weight sample
        take = w >= w_best
        w_best = jnp.where(take, w, w_best)
        m_best = jnp.where(take, z_s, m_best)
        t_run = t_run * (1.0 - alpha + 1e-10)   # exclusive cumprod(1 - alpha + eps)

    cmap_ref[...] = cmap                   # (3, TR)  lane-dense stores
    dmap_ref[...] = dmap                   # (1, TR)
    amap_ref[...] = amap
    mmap_ref[...] = m_best

    # ---- NeLF light-field MLP on the same 128-ray tile ----
    xl = lf_ref[...]                                                       # (54, TR) bf16
    hl = jnp.maximum(
        jnp.dot(nw0_ref[...], xl, preferred_element_type=f32) + nb0_ref[...], 0.0)
    hl = jnp.maximum(
        jnp.dot(nw1_ref[...], hl.astype(bf16), preferred_element_type=f32)
        + nb1_ref[...], 0.0)
    ol = jnp.dot(nw2_ref[...], hl.astype(bf16), preferred_element_type=f32) \
        + nb2_ref[...]                                                     # (4, TR)
    # row 0 = max_occ squashed into [near, far]; rows 1:4 = occ (color-like) sigmoid
    sl = jax.nn.sigmoid(ol)
    row = lax.broadcasted_iota(jnp.int32, ol.shape, 0)
    lfout_ref[...] = jnp.where(row == 0, near + (far - near) * sl, sl)     # (4, TR)


def fused_forward_pallas(emb_t, z_t, d_t, lf_t, coarse_params, nelf_params, near, far):
    """emb_t: (G, 63, S*TR) bf16, z_t/d_t: (G, 1, S*TR) f32, lf_t: (G, 54, TR) bf16.
    Returns lane-dense (G,3,TR), (G,1,TR), (G,1,TR), (G,1,TR), (G,4,TR) f32."""
    cw0, cb0, cw1, cb1, cw2, cb2 = coarse_params
    nw0, nb0, nw1, nb1, nw2, nb2 = nelf_params
    G, din_c, s_tr = emb_t.shape
    _, din_l, trr = lf_t.shape
    hc, hl = cw0.shape[0], nw0.shape[0]
    dc, dl = cw2.shape[0], nw2.shape[0]
    bf16 = jnp.bfloat16
    kern = functools.partial(_fused_kernel, near, far)
    return pl.pallas_call(
        kern,
        out_shape=(
            jax.ShapeDtypeStruct((G, 3, trr), jnp.float32),   # color map
            jax.ShapeDtypeStruct((G, 1, trr), jnp.float32),   # depth map
            jax.ShapeDtypeStruct((G, 1, trr), jnp.float32),   # acc map
            jax.ShapeDtypeStruct((G, 1, trr), jnp.float32),   # nerf max-occ depth
            jax.ShapeDtypeStruct((G, dl, trr), jnp.float32),  # nelf field output
        ),
        grid_spec=pltpu.PrefetchScalarGridSpec(
            num_scalar_prefetch=0,
            grid=(G,),
            in_specs=[
                pl.BlockSpec((None, din_c, s_tr), lambda i: (i, 0, 0)),
                pl.BlockSpec((None, 1, s_tr), lambda i: (i, 0, 0)),
                pl.BlockSpec((None, 1, s_tr), lambda i: (i, 0, 0)),
                pl.BlockSpec((None, din_l, trr), lambda i: (i, 0, 0)),
                pl.BlockSpec((hc, din_c), lambda i: (0, 0)),
                pl.BlockSpec((hc, 1), lambda i: (0, 0)),
                pl.BlockSpec((hc, hc), lambda i: (0, 0)),
                pl.BlockSpec((hc, 1), lambda i: (0, 0)),
                pl.BlockSpec((dc, hc), lambda i: (0, 0)),
                pl.BlockSpec((dc, 1), lambda i: (0, 0)),
                pl.BlockSpec((hl, din_l), lambda i: (0, 0)),
                pl.BlockSpec((hl, 1), lambda i: (0, 0)),
                pl.BlockSpec((hl, hl), lambda i: (0, 0)),
                pl.BlockSpec((hl, 1), lambda i: (0, 0)),
                pl.BlockSpec((dl, hl), lambda i: (0, 0)),
                pl.BlockSpec((dl, 1), lambda i: (0, 0)),
            ],
            out_specs=(
                pl.BlockSpec((None, 3, trr), lambda i: (i, 0, 0)),
                pl.BlockSpec((None, 1, trr), lambda i: (i, 0, 0)),
                pl.BlockSpec((None, 1, trr), lambda i: (i, 0, 0)),
                pl.BlockSpec((None, 1, trr), lambda i: (i, 0, 0)),
                pl.BlockSpec((None, dl, trr), lambda i: (i, 0, 0)),
            ),
        ),
        compiler_params=pltpu.CompilerParams(dimension_semantics=("parallel",)),
    )(emb_t, z_t, d_t, lf_t,
      cw0.astype(bf16), cb0, cw1.astype(bf16), cb1, cw2.astype(bf16), cb2,
      nw0.astype(bf16), nb0, nw1.astype(bf16), nb1, nw2.astype(bf16), nb2)


# --------------------------------- plain-JAX glue ---------------------------------
def pos_embed(x, n_freqs):
    """NeRF-style positional embedding [x, sin(2^k x), cos(2^k x)] (XLA; fuses with
    point generation — sin/cos kept outside the Pallas kernel)."""
    freqs = (2.0 ** jnp.arange(n_freqs, dtype=x.dtype))
    xb = x[..., None, :] * freqs[:, None]                       # [..., F, 3]
    emb = jnp.concatenate([jnp.sin(xb), jnp.cos(xb)], axis=-1)  # [..., F, 6]
    emb = emb.reshape(*x.shape[:-1], -1)
    return jnp.concatenate([x, emb], axis=-1)


def init_mlp(key, din, hidden, dout):
    """Weights in PyTorch Linear orientation (out, in); biases as (out, 1) columns."""
    ks = jax.random.split(key, 3)
    f = jnp.float32
    return (
        jax.random.normal(ks[0], (hidden, din), f) / jnp.sqrt(jnp.float32(din)),
        jnp.zeros((hidden, 1), f),
        jax.random.normal(ks[1], (hidden, hidden), f) / jnp.sqrt(jnp.float32(hidden)),
        jnp.zeros((hidden, 1), f),
        jax.random.normal(ks[2], (dout, hidden), f) / jnp.sqrt(jnp.float32(hidden)),
        jnp.zeros((dout, 1), f),
    )


def nelf_nerf360_forward(params, rays_ori, rays_dir, rays_color,
                         n_samples=N_SAMPLES, near=NEAR, far=FAR, inv_depth=False,
                         rec_loss_weight=REC_LOSS_WEIGHT,
                         consist_loss_weight=CONSIST_LOSS_WEIGHT):
    """Mirrors NeLFNeRF360.forward_render on the eval path (perturb=False,
    alpha_noise_std=0, z_by_nelf=-1, background=False, dir_embedder=None)."""
    outputs = {}
    im2mse = lambda a, b: jnp.mean((a - b) ** 2)
    bf16 = jnp.bfloat16
    N = rays_ori.shape[0]
    assert N % TR == 0, (N, TR)
    G = N // TR

    # ---- light-field branch (get_lf_coord + embedders) ----
    uv = rays_ori
    st = rays_dir / jnp.linalg.norm(rays_dir, axis=-1, keepdims=True)
    uv_embeds = pos_embed(uv, UVST_FREQS)
    st_embeds = pos_embed(st, UVST_FREQS)
    nelf_in = jnp.concatenate([uv_embeds, st_embeds], axis=-1)              # [N, 54]
    lf_t = nelf_in.reshape(G, TR, -1).transpose(0, 2, 1).astype(bf16)       # [G, 54, TR]

    # ---- NeRF branch sampling (forward_nerf, z_by_nelf=-1, perturb=False) ----
    near_v = jnp.full((N, 1), near, rays_ori.dtype)
    far_v = jnp.full((N, 1), far, rays_ori.dtype)
    t_vals = jnp.linspace(0.0, 1.0, n_samples, dtype=rays_ori.dtype)
    if not inv_depth:
        z_vals = near_v * (1.0 - t_vals) + far_v * t_vals                   # [N, S]
    else:
        z_vals = 1.0 / (1.0 / near_v * (1.0 - t_vals) + 1.0 / far_v * t_vals)

    points = rays_ori[:, None, :] + rays_dir[:, None, :] * z_vals[:, :, None]   # [N,S,3]
    xyz_embeds = pos_embed(points, XYZ_FREQS)                               # [N, S, 63]
    # fold the sample axis onto lanes: (G, 63, S*TR), column order = (sample, ray)
    emb_t = xyz_embeds.reshape(G, TR, n_samples, -1).transpose(0, 3, 2, 1) \
                      .reshape(G, -1, n_samples * TR).astype(bf16)

    dir_norm = jnp.linalg.norm(rays_dir, axis=-1, keepdims=True)            # [N, 1]
    dists = jnp.concatenate(
        [z_vals[:, 1:] - z_vals[:, :-1],
         jnp.full((N, 1), 1e10, rays_ori.dtype)], axis=-1) * dir_norm       # [N, S]
    z_t = z_vals.reshape(G, TR, n_samples).transpose(0, 2, 1) \
                .reshape(G, 1, n_samples * TR)                              # [G, 1, S*TR]
    d_t = dists.reshape(G, TR, n_samples).transpose(0, 2, 1) \
               .reshape(G, 1, n_samples * TR)                               # [G, 1, S*TR]

    cmap, dmap, amap, mmap, lfout = fused_forward_pallas(
        emb_t, z_t, d_t, lf_t, params["coarse"], params["nelf"], near, far)

    # ---- light-field outputs ----
    max_occ = lfout[:, 0, :].reshape(N)                                     # [N]
    occ = jnp.mean(lfout[:, 1:4, :], axis=1).reshape(N)                     # occ.mean(-1)
    outputs["nelf_color_map"] = occ
    outputs["nelf_max_occ_map"] = max_occ

    # ---- NeRF outputs / losses ----
    color_map = cmap.transpose(0, 2, 1).reshape(N, 3)                       # [N, 3]
    depth_map = dmap.reshape(N)
    acc_map = amap.reshape(N)
    max_occ_map = mmap.reshape(N)

    outputs["nerf_color_map"] = color_map
    outputs["nerf_max_occ_map"] = max_occ_map
    outputs["nerf_depth_map"] = depth_map
    outputs["rec_loss"] = im2mse(color_map, rays_color) * rec_loss_weight
    outputs["color_map"] = color_map
    if consist_loss_weight > 0:
        outputs["consist_loss"] = im2mse(
            max_occ / far, lax.stop_gradient(max_occ_map) / far) * consist_loss_weight
        outputs["nelf_occ_loss"] = im2mse(
            occ, lax.stop_gradient(acc_map)) * consist_loss_weight
    # TODO(synk): training-only branches (z_by_nelf>0 near/far re-sampling, perturbed
    # z-vals / alpha noise RNG, augmented-ray consistency losses, checkpoint loading,
    # distributed loss parsing) are not exercised on this eval forward path.
    return outputs


# --------------------------------------- main ---------------------------------------
if __name__ == "__main__":
    key = jax.random.PRNGKey(0)
    k_ori, k_dir, k_col, k_coarse, k_nelf = jax.random.split(key, 5)

    rays_ori = jax.random.normal(k_ori, (N_RAYS, 3), jnp.float32)
    rays_dir = jax.random.normal(k_dir, (N_RAYS, 3), jnp.float32) + 0.1
    rays_color = jax.random.uniform(k_col, (N_RAYS, 3), jnp.float32)

    params = {
        "coarse": init_mlp(k_coarse, 3 + 6 * XYZ_FREQS, HIDDEN, 4),      # 63 -> 64 -> 64 -> 4
        "nelf": init_mlp(k_nelf, 2 * (3 + 6 * UVST_FREQS), HIDDEN, 4),   # 54 -> 64 -> 64 -> 4
    }

    fwd = jax.jit(nelf_nerf360_forward)
    outputs = fwd(params, rays_ori, rays_dir, rays_color)
    jax.block_until_ready(outputs["rec_loss"])
    jax.block_until_ready(outputs["color_map"])
    jax.block_until_ready(outputs["consist_loss"])
    print("KERNEL_OK")
</pallas_src>

<mosaic_0001>
module attributes {stable_mosaic.version = 11 : i64} {
  func.func @_fused_kernel(%arg0: i32, %arg1: memref<1x63x2048xbf16, #tpu.memory_space<vmem>>, %arg2: memref<1x1x2048xf32, #tpu.memory_space<vmem>>, %arg3: memref<1x1x2048xf32, #tpu.memory_space<vmem>>, %arg4: memref<1x54x128xbf16, #tpu.memory_space<vmem>>, %arg5: memref<64x63xbf16, #tpu.memory_space<vmem>>, %arg6: memref<64x1xf32, #tpu.memory_space<vmem>>, %arg7: memref<64x64xbf16, #tpu.memory_space<vmem>>, %arg8: memref<64x1xf32, #tpu.memory_space<vmem>>, %arg9: memref<4x64xbf16, #tpu.memory_space<vmem>>, %arg10: memref<4x1xf32, #tpu.memory_space<vmem>>, %arg11: memref<64x54xbf16, #tpu.memory_space<vmem>>, %arg12: memref<64x1xf32, #tpu.memory_space<vmem>>, %arg13: memref<64x64xbf16, #tpu.memory_space<vmem>>, %arg14: memref<64x1xf32, #tpu.memory_space<vmem>>, %arg15: memref<4x64xbf16, #tpu.memory_space<vmem>>, %arg16: memref<4x1xf32, #tpu.memory_space<vmem>>, %arg17: memref<1x3x128xf32, #tpu.memory_space<vmem>>, %arg18: memref<1x1x128xf32, #tpu.memory_space<vmem>>, %arg19: memref<1x1x128xf32, #tpu.memory_space<vmem>>, %arg20: memref<1x1x128xf32, #tpu.memory_space<vmem>>, %arg21: memref<1x4x128xf32, #tpu.memory_space<vmem>>) attributes {dimension_semantics = [#tpu.dimension_semantics<parallel>], iteration_bounds = array<i64: 2>, scalar_prefetch = 0 : i64, scratch_operands = 0 : i64, tpu.core_type = #tpu.core_type<tc>, window_params = [{transform_indices = @transform_0, window_bounds = array<i64: 1, 63, 2048>}, {transform_indices = @transform_1, window_bounds = array<i64: 1, 1, 2048>}, {transform_indices = @transform_2, window_bounds = array<i64: 1, 1, 2048>}, {transform_indices = @transform_3, window_bounds = array<i64: 1, 54, 128>}, {pipeline_mode = #tpu.pipeline_mode<synchronous>, transform_indices = @transform_4, window_bounds = array<i64: 64, 63>}, {pipeline_mode = #tpu.pipeline_mode<synchronous>, transform_indices = @transform_5, window_bounds = array<i64: 64, 1>}, {pipeline_mode = #tpu.pipeline_mode<synchronous>, transform_indices = @transform_6, window_bounds = array<i64: 64, 64>}, {pipeline_mode = #tpu.pipeline_mode<synchronous>, transform_indices = @transform_7, window_bounds = array<i64: 64, 1>}, {pipeline_mode = #tpu.pipeline_mode<synchronous>, transform_indices = @transform_8, window_bounds = array<i64: 4, 64>}, {pipeline_mode = #tpu.pipeline_mode<synchronous>, transform_indices = @transform_9, window_bounds = array<i64: 4, 1>}, {pipeline_mode = #tpu.pipeline_mode<synchronous>, transform_indices = @transform_10, window_bounds = array<i64: 64, 54>}, {pipeline_mode = #tpu.pipeline_mode<synchronous>, transform_indices = @transform_11, window_bounds = array<i64: 64, 1>}, {pipeline_mode = #tpu.pipeline_mode<synchronous>, transform_indices = @transform_12, window_bounds = array<i64: 64, 64>}, {pipeline_mode = #tpu.pipeline_mode<synchronous>, transform_indices = @transform_13, window_bounds = array<i64: 64, 1>}, {pipeline_mode = #tpu.pipeline_mode<synchronous>, transform_indices = @transform_14, window_bounds = array<i64: 4, 64>}, {pipeline_mode = #tpu.pipeline_mode<synchronous>, transform_indices = @transform_15, window_bounds = array<i64: 4, 1>}, {transform_indices = @transform_16, window_bounds = array<i64: 1, 3, 128>}, {transform_indices = @transform_17, window_bounds = array<i64: 1, 1, 128>}, {transform_indices = @transform_18, window_bounds = array<i64: 1, 1, 128>}, {transform_indices = @transform_19, window_bounds = array<i64: 1, 1, 128>}, {transform_indices = @transform_20, window_bounds = array<i64: 1, 4, 128>}]} {
    %c0 = arith.constant 0 : index
    %c0_0 = arith.constant 0 : index
    %c0_1 = arith.constant 0 : index
    %0 = vector.load %arg1[%c0, %c0_0, %c0_1] : memref<1x63x2048xbf16, #tpu.memory_space<vmem>>, vector<1x63x2048xbf16>
    %1 = vector.shape_cast %0 : vector<1x63x2048xbf16> to vector<63x2048xbf16>
    %c0_2 = arith.constant 0 : index
    %c0_3 = arith.constant 0 : index
    %2 = vector.load %arg5[%c0_2, %c0_3] : memref<64x63xbf16, #tpu.memory_space<vmem>>, vector<64x63xbf16>
    %cst = arith.constant dense<0.000000e+00> : vector<64x2048xf32>
    %3 = tpu.matmul %2, %1, %cst {dimension_numbers = #tpu.dot_dimension_numbers<[1], [0], [0], [1], [0, 0, 1, 1], [], []>} : vector<64x63xbf16>, vector<63x2048xbf16>, vector<64x2048xf32> -> vector<64x2048xf32>
    %c0_4 = arith.constant 0 : index
    %c0_5 = arith.constant 0 : index
    %4 = vector.load %arg6[%c0_4, %c0_5] : memref<64x1xf32, #tpu.memory_space<vmem>>, vector<64x1xf32>
    %5 = vector.broadcast %4 : vector<64x1xf32> to vector<64x2048xf32>
    %6 = arith.addf %3, %5 : vector<64x2048xf32>
    %cst_6 = arith.constant 0.000000e+00 : f32
    %7 = vector.broadcast %cst_6 : f32 to vector<64x2048xf32>
    %8 = arith.maximumf %6, %7 : vector<64x2048xf32>
    %c0_7 = arith.constant 0 : index
    %c0_8 = arith.constant 0 : index
    %9 = vector.load %arg7[%c0_7, %c0_8] : memref<64x64xbf16, #tpu.memory_space<vmem>>, vector<64x64xbf16>
    %10 = arith.truncf %8 : vector<64x2048xf32> to vector<64x2048xbf16>
    %cst_9 = arith.constant dense<0.000000e+00> : vector<64x2048xf32>
    %11 = tpu.matmul %9, %10, %cst_9 {dimension_numbers = #tpu.dot_dimension_numbers<[1], [0], [0], [1], [0, 0, 1, 1], [], []>} : vector<64x64xbf16>, vector<64x2048xbf16>, vector<64x2048xf32> -> vector<64x2048xf32>
    %c0_10 = arith.constant 0 : index
    %c0_11 = arith.constant 0 : index
    %12 = vector.load %arg8[%c0_10, %c0_11] : memref<64x1xf32, #tpu.memory_space<vmem>>, vector<64x1xf32>
    %13 = vector.broadcast %12 : vector<64x1xf32> to vector<64x2048xf32>
    %14 = arith.addf %11, %13 : vector<64x2048xf32>
    %cst_12 = arith.constant 0.000000e+00 : f32
    %15 = vector.broadcast %cst_12 : f32 to vector<64x2048xf32>
    %16 = arith.maximumf %14, %15 : vector<64x2048xf32>
    %c0_13 = arith.constant 0 : index
    %c0_14 = arith.constant 0 : index
    %17 = vector.load %arg9[%c0_13, %c0_14] : memref<4x64xbf16, #tpu.memory_space<vmem>>, vector<4x64xbf16>
    %18 = arith.truncf %16 : vector<64x2048xf32> to vector<64x2048xbf16>
    %cst_15 = arith.constant dense<0.000000e+00> : vector<4x2048xf32>
    %19 = tpu.matmul %17, %18, %cst_15 {dimension_numbers = #tpu.dot_dimension_numbers<[1], [0], [0], [1], [0, 0, 1, 1], [], []>} : vector<4x64xbf16>, vector<64x2048xbf16>, vector<4x2048xf32> -> vector<4x2048xf32>
    %c0_16 = arith.constant 0 : index
    %c0_17 = arith.constant 0 : index
    %20 = vector.load %arg10[%c0_16, %c0_17] : memref<4x1xf32, #tpu.memory_space<vmem>>, vector<4x1xf32>
    %21 = vector.broadcast %20 : vector<4x1xf32> to vector<4x2048xf32>
    %22 = arith.addf %19, %21 : vector<4x2048xf32>
    %23 = vector.extract_strided_slice %22 {offsets = [1, 0], sizes = [3, 2048], strides = [1, 1]} : vector<4x2048xf32> to vector<3x2048xf32>
    %24 = arith.negf %23 : vector<3x2048xf32>
    %25 = math.exp %24 : vector<3x2048xf32>
    %cst_18 = arith.constant 1.000000e+00 : f32
    %26 = vector.broadcast %cst_18 : f32 to vector<3x2048xf32>
    %27 = arith.addf %26, %25 : vector<3x2048xf32>
    %28 = arith.divf %26, %27 : vector<3x2048xf32>
    %29 = vector.extract_strided_slice %22 {offsets = [0, 0], sizes = [1, 2048], strides = [1, 1]} : vector<4x2048xf32> to vector<1x2048xf32>
    %cst_19 = arith.constant 0.000000e+00 : f32
    %30 = vector.broadcast %cst_19 : f32 to vector<1x2048xf32>
    %31 = arith.maximumf %29, %30 : vector<1x2048xf32>
    %cst_20 = arith.constant 0.000000e+00 : f32
    %32 = vector.broadcast %cst_20 : f32 to vector<1x2048xf32>
    %33 = arith.subf %32, %31 : vector<1x2048xf32>
    %c0_21 = arith.constant 0 : index
    %c0_22 = arith.constant 0 : index
    %c0_23 = arith.constant 0 : index
    %34 = vector.load %arg3[%c0_21, %c0_22, %c0_23] : memref<1x1x2048xf32, #tpu.memory_space<vmem>>, vector<1x1x2048xf32>
    %35 = vector.shape_cast %34 : vector<1x1x2048xf32> to vector<1x2048xf32>
    %36 = arith.mulf %33, %35 : vector<1x2048xf32>
    %37 = math.exp %36 : vector<1x2048xf32>
    %cst_24 = arith.constant 1.000000e+00 : f32
    %38 = vector.broadcast %cst_24 : f32 to vector<1x2048xf32>
    %39 = arith.subf %38, %37 : vector<1x2048xf32>
    %c0_25 = arith.constant 0 : index
    %c0_26 = arith.constant 0 : index
    %c0_27 = arith.constant 0 : index
    %40 = vector.load %arg2[%c0_25, %c0_26, %c0_27] : memref<1x1x2048xf32, #tpu.memory_space<vmem>>, vector<1x1x2048xf32>
    %41 = vector.shape_cast %40 : vector<1x1x2048xf32> to vector<1x2048xf32>
    %cst_28 = arith.constant 1.000000e+00 : f32
    %42 = vector.broadcast %cst_28 : f32 to vector<1x128xf32>
    %cst_29 = arith.constant 0.000000e+00 : f32
    %43 = vector.broadcast %cst_29 : f32 to vector<3x128xf32>
    %cst_30 = arith.constant 0.000000e+00 : f32
    %44 = vector.broadcast %cst_30 : f32 to vector<1x128xf32>
    %cst_31 = arith.constant 0.000000e+00 : f32
    %45 = vector.broadcast %cst_31 : f32 to vector<1x128xf32>
    %cst_32 = arith.constant -1.000000e+00 : f32
    %46 = vector.broadcast %cst_32 : f32 to vector<1x128xf32>
    %cst_33 = arith.constant 0.000000e+00 : f32
    %47 = vector.broadcast %cst_33 : f32 to vector<1x128xf32>
    %48 = vector.extract_strided_slice %39 {offsets = [0, 0], sizes = [1, 128], strides = [1, 1]} : vector<1x2048xf32> to vector<1x128xf32>
    %49 = vector.extract_strided_slice %28 {offsets = [0, 0], sizes = [3, 128], strides = [1, 1]} : vector<3x2048xf32> to vector<3x128xf32>
    %50 = vector.extract_strided_slice %41 {offsets = [0, 0], sizes = [1, 128], strides = [1, 1]} : vector<1x2048xf32> to vector<1x128xf32>
    %51 = arith.mulf %48, %42 : vector<1x128xf32>
    %52 = vector.broadcast %51 : vector<1x128xf32> to vector<3x128xf32>
    %53 = arith.mulf %52, %49 : vector<3x128xf32>
    %54 = arith.addf %43, %53 : vector<3x128xf32>
    %55 = arith.mulf %51, %50 : vector<1x128xf32>
    %56 = arith.addf %44, %55 : vector<1x128xf32>
    %57 = arith.addf %45, %51 : vector<1x128xf32>
    %58 = arith.cmpf oge, %51, %46 : vector<1x128xf32>
    %59 = arith.select %58, %51, %46 : vector<1x128xi1>, vector<1x128xf32>
    %60 = arith.select %58, %50, %47 : vector<1x128xi1>, vector<1x128xf32>
    %cst_34 = arith.constant 1.000000e+00 : f32
    %61 = vector.broadcast %cst_34 : f32 to vector<1x128xf32>
    %62 = arith.subf %61, %48 : vector<1x128xf32>
    %cst_35 = arith.constant 1.000000e-10 : f32
    %63 = vector.broadcast %cst_35 : f32 to vector<1x128xf32>
    %64 = arith.addf %62, %63 : vector<1x128xf32>
    %65 = arith.mulf %42, %64 : vector<1x128xf32>
    %66 = vector.extract_strided_slice %39 {offsets = [0, 128], sizes = [1, 128], strides = [1, 1]} : vector<1x2048xf32> to vector<1x128xf32>
    %67 = vector.extract_strided_slice %28 {offsets = [0, 128], sizes = [3, 128], strides = [1, 1]} : vector<3x2048xf32> to vector<3x128xf32>
    %68 = vector.extract_strided_slice %41 {offsets = [0, 128], sizes = [1, 128], strides = [1, 1]} : vector<1x2048xf32> to vector<1x128xf32>
    %69 = arith.mulf %66, %65 : vector<1x128xf32>
    %70 = vector.broadcast %69 : vector<1x128xf32> to vector<3x128xf32>
    %71 = arith.mulf %70, %67 : vector<3x128xf32>
    %72 = arith.addf %54, %71 : vector<3x128xf32>
    %73 = arith.mulf %69, %68 : vector<1x128xf32>
    %74 = arith.addf %56, %73 : vector<1x128xf32>
    %75 = arith.addf %57, %69 : vector<1x128xf32>
    %76 = arith.cmpf oge, %69, %59 : vector<1x128xf32>
    %77 = arith.select %76, %69, %59 : vector<1x128xi1>, vector<1x128xf32>
    %78 = arith.select %76, %68, %60 : vector<1x128xi1>, vector<1x128xf32>
    %cst_36 = arith.constant 1.000000e+00 : f32
    %79 = vector.broadcast %cst_36 : f32 to vector<1x128xf32>
    %80 = arith.subf %79, %66 : vector<1x128xf32>
    %cst_37 = arith.constant 1.000000e-10 : f32
    %81 = vector.broadcast %cst_37 : f32 to vector<1x128xf32>
    %82 = arith.addf %80, %81 : vector<1x128xf32>
    %83 = arith.mulf %65, %82 : vector<1x128xf32>
    %84 = vector.extract_strided_slice %39 {offsets = [0, 256], sizes = [1, 128], strides = [1, 1]} : vector<1x2048xf32> to vector<1x128xf32>
    %85 = vector.extract_strided_slice %28 {offsets = [0, 256], sizes = [3, 128], strides = [1, 1]} : vector<3x2048xf32> to vector<3x128xf32>
    %86 = vector.extract_strided_slice %41 {offsets = [0, 256], sizes = [1, 128], strides = [1, 1]} : vector<1x2048xf32> to vector<1x128xf32>
    %87 = arith.mulf %84, %83 : vector<1x128xf32>
    %88 = vector.broadcast %87 : vector<1x128xf32> to vector<3x128xf32>
    %89 = arith.mulf %88, %85 : vector<3x128xf32>
    %90 = arith.addf %72, %89 : vector<3x128xf32>
    %91 = arith.mulf %87, %86 : vector<1x128xf32>
    %92 = arith.addf %74, %91 : vector<1x128xf32>
    %93 = arith.addf %75, %87 : vector<1x128xf32>
    %94 = arith.cmpf oge, %87, %77 : vector<1x128xf32>
    %95 = arith.select %94, %87, %77 : vector<1x128xi1>, vector<1x128xf32>
    %96 = arith.select %94, %86, %78 : vector<1x128xi1>, vector<1x128xf32>
    %cst_38 = arith.constant 1.000000e+00 : f32
    %97 = vector.broadcast %cst_38 : f32 to vector<1x128xf32>
    %98 = arith.subf %97, %84 : vector<1x128xf32>
    %cst_39 = arith.constant 1.000000e-10 : f32
    %99 = vector.broadcast %cst_39 : f32 to vector<1x128xf32>
    %100 = arith.addf %98, %99 : vector<1x128xf32>
    %101 = arith.mulf %83, %100 : vector<1x128xf32>
    %102 = vector.extract_strided_slice %39 {offsets = [0, 384], sizes = [1, 128], strides = [1, 1]} : vector<1x2048xf32> to vector<1x128xf32>
    %103 = vector.extract_strided_slice %28 {offsets = [0, 384], sizes = [3, 128], strides = [1, 1]} : vector<3x2048xf32> to vector<3x128xf32>
    %104 = vector.extract_strided_slice %41 {offsets = [0, 384], sizes = [1, 128], strides = [1, 1]} : vector<1x2048xf32> to vector<1x128xf32>
    %105 = arith.mulf %102, %101 : vector<1x128xf32>
    %106 = vector.broadcast %105 : vector<1x128xf32> to vector<3x128xf32>
    %107 = arith.mulf %106, %103 : vector<3x128xf32>
    %108 = arith.addf %90, %107 : vector<3x128xf32>
    %109 = arith.mulf %105, %104 : vector<1x128xf32>
    %110 = arith.addf %92, %109 : vector<1x128xf32>
    %111 = arith.addf %93, %105 : vector<1x128xf32>
    %112 = arith.cmpf oge, %105, %95 : vector<1x128xf32>
    %113 = arith.select %112, %105, %95 : vector<1x128xi1>, vector<1x128xf32>
    %114 = arith.select %112, %104, %96 : vector<1x128xi1>, vector<1x128xf32>
    %cst_40 = arith.constant 1.000000e+00 : f32
    %115 = vector.broadcast %cst_40 : f32 to vector<1x128xf32>
    %116 = arith.subf %115, %102 : vector<1x128xf32>
    %cst_41 = arith.constant 1.000000e-10 : f32
    %117 = vector.broadcast %cst_41 : f32 to vector<1x128xf32>
    %118 = arith.addf %116, %117 : vector<1x128xf32>
    %119 = arith.mulf %101, %118 : vector<1x128xf32>
    %120 = vector.extract_strided_slice %39 {offsets = [0, 512], sizes = [1, 128], strides = [1, 1]} : vector<1x2048xf32> to vector<1x128xf32>
    %121 = vector.extract_strided_slice %28 {offsets = [0, 512], sizes = [3, 128], strides = [1, 1]} : vector<3x2048xf32> to vector<3x128xf32>
    %122 = vector.extract_strided_slice %41 {offsets = [0, 512], sizes = [1, 128], strides = [1, 1]} : vector<1x2048xf32> to vector<1x128xf32>
    %123 = arith.mulf %120, %119 : vector<1x128xf32>
    %124 = vector.broadcast %123 : vector<1x128xf32> to vector<3x128xf32>
    %125 = arith.mulf %124, %121 : vector<3x128xf32>
    %126 = arith.addf %108, %125 : vector<3x128xf32>
    %127 = arith.mulf %123, %122 : vector<1x128xf32>
    %128 = arith.addf %110, %127 : vector<1x128xf32>
    %129 = arith.addf %111, %123 : vector<1x128xf32>
    %130 = arith.cmpf oge, %123, %113 : vector<1x128xf32>
    %131 = arith.select %130, %123, %113 : vector<1x128xi1>, vector<1x128xf32>
    %132 = arith.select %130, %122, %114 : vector<1x128xi1>, vector<1x128xf32>
    %cst_42 = arith.constant 1.000000e+00 : f32
    %133 = vector.broadcast %cst_42 : f32 to vector<1x128xf32>
    %134 = arith.subf %133, %120 : vector<1x128xf32>
    %cst_43 = arith.constant 1.000000e-10 : f32
    %135 = vector.broadcast %cst_43 : f32 to vector<1x128xf32>
    %136 = arith.addf %134, %135 : vector<1x128xf32>
    %137 = arith.mulf %119, %136 : vector<1x128xf32>
    %138 = vector.extract_strided_slice %39 {offsets = [0, 640], sizes = [1, 128], strides = [1, 1]} : vector<1x2048xf32> to vector<1x128xf32>
    %139 = vector.extract_strided_slice %28 {offsets = [0, 640], sizes = [3, 128], strides = [1, 1]} : vector<3x2048xf32> to vector<3x128xf32>
    %140 = vector.extract_strided_slice %41 {offsets = [0, 640], sizes = [1, 128], strides = [1, 1]} : vector<1x2048xf32> to vector<1x128xf32>
    %141 = arith.mulf %138, %137 : vector<1x128xf32>
    %142 = vector.broadcast %141 : vector<1x128xf32> to vector<3x128xf32>
    %143 = arith.mulf %142, %139 : vector<3x128xf32>
    %144 = arith.addf %126, %143 : vector<3x128xf32>
    %145 = arith.mulf %141, %140 : vector<1x128xf32>
    %146 = arith.addf %128, %145 : vector<1x128xf32>
    %147 = arith.addf %129, %141 : vector<1x128xf32>
    %148 = arith.cmpf oge, %141, %131 : vector<1x128xf32>
    %149 = arith.select %148, %141, %131 : vector<1x128xi1>, vector<1x128xf32>
    %150 = arith.select %148, %140, %132 : vector<1x128xi1>, vector<1x128xf32>
    %cst_44 = arith.constant 1.000000e+00 : f32
    %151 = vector.broadcast %cst_44 : f32 to vector<1x128xf32>
    %152 = arith.subf %151, %138 : vector<1x128xf32>
    %cst_45 = arith.constant 1.000000e-10 : f32
    %153 = vector.broadcast %cst_45 : f32 to vector<1x128xf32>
    %154 = arith.addf %152, %153 : vector<1x128xf32>
    %155 = arith.mulf %137, %154 : vector<1x128xf32>
    %156 = vector.extract_strided_slice %39 {offsets = [0, 768], sizes = [1, 128], strides = [1, 1]} : vector<1x2048xf32> to vector<1x128xf32>
    %157 = vector.extract_strided_slice %28 {offsets = [0, 768], sizes = [3, 128], strides = [1, 1]} : vector<3x2048xf32> to vector<3x128xf32>
    %158 = vector.extract_strided_slice %41 {offsets = [0, 768], sizes = [1, 128], strides = [1, 1]} : vector<1x2048xf32> to vector<1x128xf32>
    %159 = arith.mulf %156, %155 : vector<1x128xf32>
    %160 = vector.broadcast %159 : vector<1x128xf32> to vector<3x128xf32>
    %161 = arith.mulf %160, %157 : vector<3x128xf32>
    %162 = arith.addf %144, %161 : vector<3x128xf32>
    %163 = arith.mulf %159, %158 : vector<1x128xf32>
    %164 = arith.addf %146, %163 : vector<1x128xf32>
    %165 = arith.addf %147, %159 : vector<1x128xf32>
    %166 = arith.cmpf oge, %159, %149 : vector<1x128xf32>
    %167 = arith.select %166, %159, %149 : vector<1x128xi1>, vector<1x128xf32>
    %168 = arith.select %166, %158, %150 : vector<1x128xi1>, vector<1x128xf32>
    %cst_46 = arith.constant 1.000000e+00 : f32
    %169 = vector.broadcast %cst_46 : f32 to vector<1x128xf32>
    %170 = arith.subf %169, %156 : vector<1x128xf32>
    %cst_47 = arith.constant 1.000000e-10 : f32
    %171 = vector.broadcast %cst_47 : f32 to vector<1x128xf32>
    %172 = arith.addf %170, %171 : vector<1x128xf32>
    %173 = arith.mulf %155, %172 : vector<1x128xf32>
    %174 = vector.extract_strided_slice %39 {offsets = [0, 896], sizes = [1, 128], strides = [1, 1]} : vector<1x2048xf32> to vector<1x128xf32>
    %175 = vector.extract_strided_slice %28 {offsets = [0, 896], sizes = [3, 128], strides = [1, 1]} : vector<3x2048xf32> to vector<3x128xf32>
    %176 = vector.extract_strided_slice %41 {offsets = [0, 896], sizes = [1, 128], strides = [1, 1]} : vector<1x2048xf32> to vector<1x128xf32>
    %177 = arith.mulf %174, %173 : vector<1x128xf32>
    %178 = vector.broadcast %177 : vector<1x128xf32> to vector<3x128xf32>
    %179 = arith.mulf %178, %175 : vector<3x128xf32>
    %180 = arith.addf %162, %179 : vector<3x128xf32>
    %181 = arith.mulf %177, %176 : vector<1x128xf32>
    %182 = arith.addf %164, %181 : vector<1x128xf32>
    %183 = arith.addf %165, %177 : vector<1x128xf32>
    %184 = arith.cmpf oge, %177, %167 : vector<1x128xf32>
    %185 = arith.select %184, %177, %167 : vector<1x128xi1>, vector<1x128xf32>
    %186 = arith.select %184, %176, %168 : vector<1x128xi1>, vector<1x128xf32>
    %cst_48 = arith.constant 1.000000e+00 : f32
    %187 = vector.broadcast %cst_48 : f32 to vector<1x128xf32>
    %188 = arith.subf %187, %174 : vector<1x128xf32>
    %cst_49 = arith.constant 1.000000e-10 : f32
    %189 = vector.broadcast %cst_49 : f32 to vector<1x128xf32>
    %190 = arith.addf %188, %189 : vector<1x128xf32>
    %191 = arith.mulf %173, %190 : vector<1x128xf32>
    %192 = vector.extract_strided_slice %39 {offsets = [0, 1024], sizes = [1, 128], strides = [1, 1]} : vector<1x2048xf32> to vector<1x128xf32>
    %193 = vector.extract_strided_slice %28 {offsets = [0, 1024], sizes = [3, 128], strides = [1, 1]} : vector<3x2048xf32> to vector<3x128xf32>
    %194 = vector.extract_strided_slice %41 {offsets = [0, 1024], sizes = [1, 128], strides = [1, 1]} : vector<1x2048xf32> to vector<1x128xf32>
    %195 = arith.mulf %192, %191 : vector<1x128xf32>
    %196 = vector.broadcast %195 : vector<1x128xf32> to vector<3x128xf32>
    %197 = arith.mulf %196, %193 : vector<3x128xf32>
    %198 = arith.addf %180, %197 : vector<3x128xf32>
    %199 = arith.mulf %195, %194 : vector<1x128xf32>
    %200 = arith.addf %182, %199 : vector<1x128xf32>
    %201 = arith.addf %183, %195 : vector<1x128xf32>
    %202 = arith.cmpf oge, %195, %185 : vector<1x128xf32>
    %203 = arith.select %202, %195, %185 : vector<1x128xi1>, vector<1x128xf32>
    %204 = arith.select %202, %194, %186 : vector<1x128xi1>, vector<1x128xf32>
    %cst_50 = arith.constant 1.000000e+00 : f32
    %205 = vector.broadcast %cst_50 : f32 to vector<1x128xf32>
    %206 = arith.subf %205, %192 : vector<1x128xf32>
    %cst_51 = arith.constant 1.000000e-10 : f32
    %207 = vector.broadcast %cst_51 : f32 to vector<1x128xf32>
    %208 = arith.addf %206, %207 : vector<1x128xf32>
    %209 = arith.mulf %191, %208 : vector<1x128xf32>
    %210 = vector.extract_strided_slice %39 {offsets = [0, 1152], sizes = [1, 128], strides = [1, 1]} : vector<1x2048xf32> to vector<1x128xf32>
    %211 = vector.extract_strided_slice %28 {offsets = [0, 1152], sizes = [3, 128], strides = [1, 1]} : vector<3x2048xf32> to vector<3x128xf32>
    %212 = vector.extract_strided_slice %41 {offsets = [0, 1152], sizes = [1, 128], strides = [1, 1]} : vector<1x2048xf32> to vector<1x128xf32>
    %213 = arith.mulf %210, %209 : vector<1x128xf32>
    %214 = vector.broadcast %213 : vector<1x128xf32> to vector<3x128xf32>
    %215 = arith.mulf %214, %211 : vector<3x128xf32>
    %216 = arith.addf %198, %215 : vector<3x128xf32>
    %217 = arith.mulf %213, %212 : vector<1x128xf32>
    %218 = arith.addf %200, %217 : vector<1x128xf32>
    %219 = arith.addf %201, %213 : vector<1x128xf32>
    %220 = arith.cmpf oge, %213, %203 : vector<1x128xf32>
    %221 = arith.select %220, %213, %203 : vector<1x128xi1>, vector<1x128xf32>
    %222 = arith.select %220, %212, %204 : vector<1x128xi1>, vector<1x128xf32>
    %cst_52 = arith.constant 1.000000e+00 : f32
    %223 = vector.broadcast %cst_52 : f32 to vector<1x128xf32>
    %224 = arith.subf %223, %210 : vector<1x128xf32>
    %cst_53 = arith.constant 1.000000e-10 : f32
    %225 = vector.broadcast %cst_53 : f32 to vector<1x128xf32>
    %226 = arith.addf %224, %225 : vector<1x128xf32>
    %227 = arith.mulf %209, %226 : vector<1x128xf32>
    %228 = vector.extract_strided_slice %39 {offsets = [0, 1280], sizes = [1, 128], strides = [1, 1]} : vector<1x2048xf32> to vector<1x128xf32>
    %229 = vector.extract_strided_slice %28 {offsets = [0, 1280], sizes = [3, 128], strides = [1, 1]} : vector<3x2048xf32> to vector<3x128xf32>
    %230 = vector.extract_strided_slice %41 {offsets = [0, 1280], sizes = [1, 128], strides = [1, 1]} : vector<1x2048xf32> to vector<1x128xf32>
    %231 = arith.mulf %228, %227 : vector<1x128xf32>
    %232 = vector.broadcast %231 : vector<1x128xf32> to vector<3x128xf32>
    %233 = arith.mulf %232, %229 : vector<3x128xf32>
    %234 = arith.addf %216, %233 : vector<3x128xf32>
    %235 = arith.mulf %231, %230 : vector<1x128xf32>
    %236 = arith.addf %218, %235 : vector<1x128xf32>
    %237 = arith.addf %219, %231 : vector<1x128xf32>
    %238 = arith.cmpf oge, %231, %221 : vector<1x128xf32>
    %239 = arith.select %238, %231, %221 : vector<1x128xi1>, vector<1x128xf32>
    %240 = arith.select %238, %230, %222 : vector<1x128xi1>, vector<1x128xf32>
    %cst_54 = arith.constant 1.000000e+00 : f32
    %241 = vector.broadcast %cst_54 : f32 to vector<1x128xf32>
    %242 = arith.subf %241, %228 : vector<1x128xf32>
    %cst_55 = arith.constant 1.000000e-10 : f32
    %243 = vector.broadcast %cst_55 : f32 to vector<1x128xf32>
    %244 = arith.addf %242, %243 : vector<1x128xf32>
    %245 = arith.mulf %227, %244 : vector<1x128xf32>
    %246 = vector.extract_strided_slice %39 {offsets = [0, 1408], sizes = [1, 128], strides = [1, 1]} : vector<1x2048xf32> to vector<1x128xf32>
    %247 = vector.extract_strided_slice %28 {offsets = [0, 1408], sizes = [3, 128], strides = [1, 1]} : vector<3x2048xf32> to vector<3x128xf32>
    %248 = vector.extract_strided_slice %41 {offsets = [0, 1408], sizes = [1, 128], strides = [1, 1]} : vector<1x2048xf32> to vector<1x128xf32>
    %249 = arith.mulf %246, %245 : vector<1x128xf32>
    %250 = vector.broadcast %249 : vector<1x128xf32> to vector<3x128xf32>
    %251 = arith.mulf %250, %247 : vector<3x128xf32>
    %252 = arith.addf %234, %251 : vector<3x128xf32>
    %253 = arith.mulf %249, %248 : vector<1x128xf32>
    %254 = arith.addf %236, %253 : vector<1x128xf32>
    %255 = arith.addf %237, %249 : vector<1x128xf32>
    %256 = arith.cmpf oge, %249, %239 : vector<1x128xf32>
    %257 = arith.select %256, %249, %239 : vector<1x128xi1>, vector<1x128xf32>
    %258 = arith.select %256, %248, %240 : vector<1x128xi1>, vector<1x128xf32>
    %cst_56 = arith.constant 1.000000e+00 : f32
    %259 = vector.broadcast %cst_56 : f32 to vector<1x128xf32>
    %260 = arith.subf %259, %246 : vector<1x128xf32>
    %cst_57 = arith.constant 1.000000e-10 : f32
    %261 = vector.broadcast %cst_57 : f32 to vector<1x128xf32>
    %262 = arith.addf %260, %261 : vector<1x128xf32>
    %263 = arith.mulf %245, %262 : vector<1x128xf32>
    %264 = vector.extract_strided_slice %39 {offsets = [0, 1536], sizes = [1, 128], strides = [1, 1]} : vector<1x2048xf32> to vector<1x128xf32>
    %265 = vector.extract_strided_slice %28 {offsets = [0, 1536], sizes = [3, 128], strides = [1, 1]} : vector<3x2048xf32> to vector<3x128xf32>
    %266 = vector.extract_strided_slice %41 {offsets = [0, 1536], sizes = [1, 128], strides = [1, 1]} : vector<1x2048xf32> to vector<1x128xf32>
    %267 = arith.mulf %264, %263 : vector<1x128xf32>
    %268 = vector.broadcast %267 : vector<1x128xf32> to vector<3x128xf32>
    %269 = arith.mulf %268, %265 : vector<3x128xf32>
    %270 = arith.addf %252, %269 : vector<3x128xf32>
    %271 = arith.mulf %267, %266 : vector<1x128xf32>
    %272 = arith.addf %254, %271 : vector<1x128xf32>
    %273 = arith.addf %255, %267 : vector<1x128xf32>
    %274 = arith.cmpf oge, %267, %257 : vector<1x128xf32>
    %275 = arith.select %274, %267, %257 : vector<1x128xi1>, vector<1x128xf32>
    %276 = arith.select %274, %266, %258 : vector<1x128xi1>, vector<1x128xf32>
    %cst_58 = arith.constant 1.000000e+00 : f32
    %277 = vector.broadcast %cst_58 : f32 to vector<1x128xf32>
    %278 = arith.subf %277, %264 : vector<1x128xf32>
    %cst_59 = arith.constant 1.000000e-10 : f32
    %279 = vector.broadcast %cst_59 : f32 to vector<1x128xf32>
    %280 = arith.addf %278, %279 : vector<1x128xf32>
    %281 = arith.mulf %263, %280 : vector<1x128xf32>
    %282 = vector.extract_strided_slice %39 {offsets = [0, 1664], sizes = [1, 128], strides = [1, 1]} : vector<1x2048xf32> to vector<1x128xf32>
    %283 = vector.extract_strided_slice %28 {offsets = [0, 1664], sizes = [3, 128], strides = [1, 1]} : vector<3x2048xf32> to vector<3x128xf32>
    %284 = vector.extract_strided_slice %41 {offsets = [0, 1664], sizes = [1, 128], strides = [1, 1]} : vector<1x2048xf32> to vector<1x128xf32>
    %285 = arith.mulf %282, %281 : vector<1x128xf32>
    %286 = vector.broadcast %285 : vector<1x128xf32> to vector<3x128xf32>
    %287 = arith.mulf %286, %283 : vector<3x128xf32>
    %288 = arith.addf %270, %287 : vector<3x128xf32>
    %289 = arith.mulf %285, %284 : vector<1x128xf32>
    %290 = arith.addf %272, %289 : vector<1x128xf32>
    %291 = arith.addf %273, %285 : vector<1x128xf32>
    %292 = arith.cmpf oge, %285, %275 : vector<1x128xf32>
    %293 = arith.select %292, %285, %275 : vector<1x128xi1>, vector<1x128xf32>
    %294 = arith.select %292, %284, %276 : vector<1x128xi1>, vector<1x128xf32>
    %cst_60 = arith.constant 1.000000e+00 : f32
    %295 = vector.broadcast %cst_60 : f32 to vector<1x128xf32>
    %296 = arith.subf %295, %282 : vector<1x128xf32>
    %cst_61 = arith.constant 1.000000e-10 : f32
    %297 = vector.broadcast %cst_61 : f32 to vector<1x128xf32>
    %298 = arith.addf %296, %297 : vector<1x128xf32>
    %299 = arith.mulf %281, %298 : vector<1x128xf32>
    %300 = vector.extract_strided_slice %39 {offsets = [0, 1792], sizes = [1, 128], strides = [1, 1]} : vector<1x2048xf32> to vector<1x128xf32>
    %301 = vector.extract_strided_slice %28 {offsets = [0, 1792], sizes = [3, 128], strides = [1, 1]} : vector<3x2048xf32> to vector<3x128xf32>
    %302 = vector.extract_strided_slice %41 {offsets = [0, 1792], sizes = [1, 128], strides = [1, 1]} : vector<1x2048xf32> to vector<1x128xf32>
    %303 = arith.mulf %300, %299 : vector<1x128xf32>
    %304 = vector.broadcast %303 : vector<1x128xf32> to vector<3x128xf32>
    %305 = arith.mulf %304, %301 : vector<3x128xf32>
    %306 = arith.addf %288, %305 : vector<3x128xf32>
    %307 = arith.mulf %303, %302 : vector<1x128xf32>
    %308 = arith.addf %290, %307 : vector<1x128xf32>
    %309 = arith.addf %291, %303 : vector<1x128xf32>
    %310 = arith.cmpf oge, %303, %293 : vector<1x128xf32>
    %311 = arith.select %310, %303, %293 : vector<1x128xi1>, vector<1x128xf32>
    %312 = arith.select %310, %302, %294 : vector<1x128xi1>, vector<1x128xf32>
    %cst_62 = arith.constant 1.000000e+00 : f32
    %313 = vector.broadcast %cst_62 : f32 to vector<1x128xf32>
    %314 = arith.subf %313, %300 : vector<1x128xf32>
    %cst_63 = arith.constant 1.000000e-10 : f32
    %315 = vector.broadcast %cst_63 : f32 to vector<1x128xf32>
    %316 = arith.addf %314, %315 : vector<1x128xf32>
    %317 = arith.mulf %299, %316 : vector<1x128xf32>
    %318 = vector.extract_strided_slice %39 {offsets = [0, 1920], sizes = [1, 128], strides = [1, 1]} : vector<1x2048xf32> to vector<1x128xf32>
    %319 = vector.extract_strided_slice %28 {offsets = [0, 1920], sizes = [3, 128], strides = [1, 1]} : vector<3x2048xf32> to vector<3x128xf32>
    %320 = vector.extract_strided_slice %41 {offsets = [0, 1920], sizes = [1, 128], strides = [1, 1]} : vector<1x2048xf32> to vector<1x128xf32>
    %321 = arith.mulf %318, %317 : vector<1x128xf32>
    %322 = vector.broadcast %321 : vector<1x128xf32> to vector<3x128xf32>
    %323 = arith.mulf %322, %319 : vector<3x128xf32>
    %324 = arith.addf %306, %323 : vector<3x128xf32>
    %325 = arith.mulf %321, %320 : vector<1x128xf32>
    %326 = arith.addf %308, %325 : vector<1x128xf32>
    %327 = arith.addf %309, %321 : vector<1x128xf32>
    %328 = arith.cmpf oge, %321, %311 : vector<1x128xf32>
    %329 = arith.select %328, %320, %312 : vector<1x128xi1>, vector<1x128xf32>
    %c0_64 = arith.constant 0 : index
    %c0_65 = arith.constant 0 : index
    %c0_66 = arith.constant 0 : index
    %330 = vector.load %arg17[%c0_64, %c0_65, %c0_66] : memref<1x3x128xf32, #tpu.memory_space<vmem>>, vector<1x3x128xf32>
    %331 = vector.shape_cast %330 : vector<1x3x128xf32> to vector<3x128xf32>
    %332 = vector.shape_cast %324 : vector<3x128xf32> to vector<1x3x128xf32>
    tpu.vector_store %arg17[%c0_64, %c0_65, %c0_66], %332 {strides = array<i32>} : memref<1x3x128xf32, #tpu.memory_space<vmem>>, vector<1x3x128xf32>,
    %c0_67 = arith.constant 0 : index
    %c0_68 = arith.constant 0 : index
    %c0_69 = arith.constant 0 : index
    %333 = vector.load %arg18[%c0_67, %c0_68, %c0_69] : memref<1x1x128xf32, #tpu.memory_space<vmem>>, vector<1x1x128xf32>
    %334 = vector.shape_cast %333 : vector<1x1x128xf32> to vector<1x128xf32>
    %335 = vector.shape_cast %326 : vector<1x128xf32> to vector<1x1x128xf32>
    tpu.vector_store %arg18[%c0_67, %c0_68, %c0_69], %335 {strides = array<i32>} : memref<1x1x128xf32, #tpu.memory_space<vmem>>, vector<1x1x128xf32>,
    %c0_70 = arith.constant 0 : index
    %c0_71 = arith.constant 0 : index
    %c0_72 = arith.constant 0 : index
    %336 = vector.load %arg19[%c0_70, %c0_71, %c0_72] : memref<1x1x128xf32, #tpu.memory_space<vmem>>, vector<1x1x128xf32>
    %337 = vector.shape_cast %336 : vector<1x1x128xf32> to vector<1x128xf32>
    %338 = vector.shape_cast %327 : vector<1x128xf32> to vector<1x1x128xf32>
    tpu.vector_store %arg19[%c0_70, %c0_71, %c0_72], %338 {strides = array<i32>} : memref<1x1x128xf32, #tpu.memory_space<vmem>>, vector<1x1x128xf32>,
    %c0_73 = arith.constant 0 : index
    %c0_74 = arith.constant 0 : index
    %c0_75 = arith.constant 0 : index
    %339 = vector.load %arg20[%c0_73, %c0_74, %c0_75] : memref<1x1x128xf32, #tpu.memory_space<vmem>>, vector<1x1x128xf32>
    %340 = vector.shape_cast %339 : vector<1x1x128xf32> to vector<1x128xf32>
    %341 = vector.shape_cast %329 : vector<1x128xf32> to vector<1x1x128xf32>
    tpu.vector_store %arg20[%c0_73, %c0_74, %c0_75], %341 {strides = array<i32>} : memref<1x1x128xf32, #tpu.memory_space<vmem>>, vector<1x1x128xf32>,
    %c0_76 = arith.constant 0 : index
    %c0_77 = arith.constant 0 : index
    %c0_78 = arith.constant 0 : index
    %342 = vector.load %arg4[%c0_76, %c0_77, %c0_78] : memref<1x54x128xbf16, #tpu.memory_space<vmem>>, vector<1x54x128xbf16>
    %343 = vector.shape_cast %342 : vector<1x54x128xbf16> to vector<54x128xbf16>
    %c0_79 = arith.constant 0 : index
    %c0_80 = arith.constant 0 : index
    %344 = vector.load %arg11[%c0_79, %c0_80] : memref<64x54xbf16, #tpu.memory_space<vmem>>, vector<64x54xbf16>
    %cst_81 = arith.constant dense<0.000000e+00> : vector<64x128xf32>
    %345 = tpu.matmul %344, %343, %cst_81 {dimension_numbers = #tpu.dot_dimension_numbers<[1], [0], [0], [1], [0, 0, 1, 1], [], []>} : vector<64x54xbf16>, vector<54x128xbf16>, vector<64x128xf32> -> vector<64x128xf32>
    %c0_82 = arith.constant 0 : index
    %c0_83 = arith.constant 0 : index
    %346 = vector.load %arg12[%c0_82, %c0_83] : memref<64x1xf32, #tpu.memory_space<vmem>>, vector<64x1xf32>
    %347 = vector.broadcast %346 : vector<64x1xf32> to vector<64x128xf32>
    %348 = arith.addf %345, %347 : vector<64x128xf32>
    %cst_84 = arith.constant 0.000000e+00 : f32
    %349 = vector.broadcast %cst_84 : f32 to vector<64x128xf32>
    %350 = arith.maximumf %348, %349 : vector<64x128xf32>
    %c0_85 = arith.constant 0 : index
    %c0_86 = arith.constant 0 : index
    %351 = vector.load %arg13[%c0_85, %c0_86] : memref<64x64xbf16, #tpu.memory_space<vmem>>, vector<64x64xbf16>
    %352 = arith.truncf %350 : vector<64x128xf32> to vector<64x128xbf16>
    %cst_87 = arith.constant dense<0.000000e+00> : vector<64x128xf32>
    %353 = tpu.matmul %351, %352, %cst_87 {dimension_numbers = #tpu.dot_dimension_numbers<[1], [0], [0], [1], [0, 0, 1, 1], [], []>} : vector<64x64xbf16>, vector<64x128xbf16>, vector<64x128xf32> -> vector<64x128xf32>
    %c0_88 = arith.constant 0 : index
    %c0_89 = arith.constant 0 : index
    %354 = vector.load %arg14[%c0_88, %c0_89] : memref<64x1xf32, #tpu.memory_space<vmem>>, vector<64x1xf32>
    %355 = vector.broadcast %354 : vector<64x1xf32> to vector<64x128xf32>
    %356 = arith.addf %353, %355 : vector<64x128xf32>
    %cst_90 = arith.constant 0.000000e+00 : f32
    %357 = vector.broadcast %cst_90 : f32 to vector<64x128xf32>
    %358 = arith.maximumf %356, %357 : vector<64x128xf32>
    %c0_91 = arith.constant 0 : index
    %c0_92 = arith.constant 0 : index
    %359 = vector.load %arg15[%c0_91, %c0_92] : memref<4x64xbf16, #tpu.memory_space<vmem>>, vector<4x64xbf16>
    %360 = arith.truncf %358 : vector<64x128xf32> to vector<64x128xbf16>
    %cst_93 = arith.constant dense<0.000000e+00> : vector<4x128xf32>
    %361 = tpu.matmul %359, %360, %cst_93 {dimension_numbers = #tpu.dot_dimension_numbers<[1], [0], [0], [1], [0, 0, 1, 1], [], []>} : vector<4x64xbf16>, vector<64x128xbf16>, vector<4x128xf32> -> vector<4x128xf32>
    %c0_94 = arith.constant 0 : index
    %c0_95 = arith.constant 0 : index
    %362 = vector.load %arg16[%c0_94, %c0_95] : memref<4x1xf32, #tpu.memory_space<vmem>>, vector<4x1xf32>
    %363 = vector.broadcast %362 : vector<4x1xf32> to vector<4x128xf32>
    %364 = arith.addf %361, %363 : vector<4x128xf32>
    %365 = arith.negf %364 : vector<4x128xf32>
    %366 = math.exp %365 : vector<4x128xf32>
    %cst_96 = arith.constant 1.000000e+00 : f32
    %367 = vector.broadcast %cst_96 : f32 to vector<4x128xf32>
    %368 = arith.addf %367, %366 : vector<4x128xf32>
    %369 = arith.divf %367, %368 : vector<4x128xf32>
    %370 = tpu.iota {dimensions = array<i32: 0>} : vector<4x128xi32>
    %c0_i32 = arith.constant 0 : i32
    %371 = vector.broadcast %c0_i32 : i32 to vector<4x128xi32>
    %372 = arith.cmpi eq, %370, %371 : vector<4x128xi32>
    %cst_97 = arith.constant 4.000000e+00 : f32
    %373 = vector.broadcast %cst_97 : f32 to vector<4x128xf32>
    %374 = arith.mulf %373, %369 : vector<4x128xf32>
    %cst_98 = arith.constant 2.000000e+00 : f32
    %375 = vector.broadcast %cst_98 : f32 to vector<4x128xf32>
    %376 = arith.addf %375, %374 : vector<4x128xf32>
    %377 = arith.select %372, %376, %369 : vector<4x128xi1>, vector<4x128xf32>
    %c0_99 = arith.constant 0 : index
    %c0_100 = arith.constant 0 : index
    %c0_101 = arith.constant 0 : index
    %378 = vector.load %arg21[%c0_99, %c0_100, %c0_101] : memref<1x4x128xf32, #tpu.memory_space<vmem>>, vector<1x4x128xf32>
    %379 = vector.shape_cast %378 : vector<1x4x128xf32> to vector<4x128xf32>
    %380 = vector.shape_cast %377 : vector<4x128xf32> to vector<1x4x128xf32>
    tpu.vector_store %arg21[%c0_99, %c0_100, %c0_101], %380 {strides = array<i32>} : memref<1x4x128xf32, #tpu.memory_space<vmem>>, vector<1x4x128xf32>,
    return
  }
  func.func @transform_0(%arg0: i32) -> (i32, i32, i32) {
    %c0_i32 = arith.constant 0 : i32
    %c0_i32_0 = arith.constant 0 : i32
    %c0_i32_1 = arith.constant 0 : i32
    return %arg0, %c0_i32, %c0_i32_0 : i32, i32, i32
  }
  func.func @transform_1(%arg0: i32) -> (i32, i32, i32) {
    %c0_i32 = arith.constant 0 : i32
    %c0_i32_0 = arith.constant 0 : i32
    %c0_i32_1 = arith.constant 0 : i32
    return %arg0, %c0_i32, %c0_i32_0 : i32, i32, i32
  }
  func.func @transform_2(%arg0: i32) -> (i32, i32, i32) {
    %c0_i32 = arith.constant 0 : i32
    %c0_i32_0 = arith.constant 0 : i32
    %c0_i32_1 = arith.constant 0 : i32
    return %arg0, %c0_i32, %c0_i32_0 : i32, i32, i32
  }
  func.func @transform_3(%arg0: i32) -> (i32, i32, i32) {
    %c0_i32 = arith.constant 0 : i32
    %c0_i32_0 = arith.constant 0 : i32
    %c0_i32_1 = arith.constant 0 : i32
    return %arg0, %c0_i32, %c0_i32_0 : i32, i32, i32
  }
  func.func @transform_4(%arg0: i32) -> (i32, i32) {
    %c0_i32 = arith.constant 0 : i32
    %c0_i32_0 = arith.constant 0 : i32
    %c0_i32_1 = arith.constant 0 : i32
    return %c0_i32, %c0_i32_0 : i32, i32
  }
  func.func @transform_5(%arg0: i32) -> (i32, i32) {
    %c0_i32 = arith.constant 0 : i32
    %c0_i32_0 = arith.constant 0 : i32
    %c0_i32_1 = arith.constant 0 : i32
    return %c0_i32, %c0_i32_0 : i32, i32
  }
  func.func @transform_6(%arg0: i32) -> (i32, i32) {
    %c0_i32 = arith.constant 0 : i32
    %c0_i32_0 = arith.constant 0 : i32
    %c0_i32_1 = arith.constant 0 : i32
    return %c0_i32, %c0_i32_0 : i32, i32
  }
  func.func @transform_7(%arg0: i32) -> (i32, i32) {
    %c0_i32 = arith.constant 0 : i32
    %c0_i32_0 = arith.constant 0 : i32
    %c0_i32_1 = arith.constant 0 : i32
    return %c0_i32, %c0_i32_0 : i32, i32
  }
  func.func @transform_8(%arg0: i32) -> (i32, i32) {
    %c0_i32 = arith.constant 0 : i32
    %c0_i32_0 = arith.constant 0 : i32
    %c0_i32_1 = arith.constant 0 : i32
    return %c0_i32, %c0_i32_0 : i32, i32
  }
  func.func @transform_9(%arg0: i32) -> (i32, i32) {
    %c0_i32 = arith.constant 0 : i32
    %c0_i32_0 = arith.constant 0 : i32
    %c0_i32_1 = arith.constant 0 : i32
    return %c0_i32, %c0_i32_0 : i32, i32
  }
  func.func @transform_10(%arg0: i32) -> (i32, i32) {
    %c0_i32 = arith.constant 0 : i32
    %c0_i32_0 = arith.constant 0 : i32
    %c0_i32_1 = arith.constant 0 : i32
    return %c0_i32, %c0_i32_0 : i32, i32
  }
  func.func @transform_11(%arg0: i32) -> (i32, i32) {
    %c0_i32 = arith.constant 0 : i32
    %c0_i32_0 = arith.constant 0 : i32
    %c0_i32_1 = arith.constant 0 : i32
    return %c0_i32, %c0_i32_0 : i32, i32
  }
  func.func @transform_12(%arg0: i32) -> (i32, i32) {
    %c0_i32 = arith.constant 0 : i32
    %c0_i32_0 = arith.constant 0 : i32
    %c0_i32_1 = arith.constant 0 : i32
    return %c0_i32, %c0_i32_0 : i32, i32
  }
  func.func @transform_13(%arg0: i32) -> (i32, i32) {
    %c0_i32 = arith.constant 0 : i32
    %c0_i32_0 = arith.constant 0 : i32
    %c0_i32_1 = arith.constant 0 : i32
    return %c0_i32, %c0_i32_0 : i32, i32
  }
  func.func @transform_14(%arg0: i32) -> (i32, i32) {
    %c0_i32 = arith.constant 0 : i32
    %c0_i32_0 = arith.constant 0 : i32
    %c0_i32_1 = arith.constant 0 : i32
    return %c0_i32, %c0_i32_0 : i32, i32
  }
  func.func @transform_15(%arg0: i32) -> (i32, i32) {
    %c0_i32 = arith.constant 0 : i32
    %c0_i32_0 = arith.constant 0 : i32
    %c0_i32_1 = arith.constant 0 : i32
    return %c0_i32, %c0_i32_0 : i32, i32
  }
  func.func @transform_16(%arg0: i32) -> (i32, i32, i32) {
    %c0_i32 = arith.constant 0 : i32
    %c0_i32_0 = arith.constant 0 : i32
    %c0_i32_1 = arith.constant 0 : i32
    return %arg0, %c0_i32, %c0_i32_0 : i32, i32, i32
  }
  func.func @transform_17(%arg0: i32) -> (i32, i32, i32) {
    %c0_i32 = arith.constant 0 : i32
    %c0_i32_0 = arith.constant 0 : i32
    %c0_i32_1 = arith.constant 0 : i32
    return %arg0, %c0_i32, %c0_i32_0 : i32, i32, i32
  }
  func.func @transform_18(%arg0: i32) -> (i32, i32, i32) {
    %c0_i32 = arith.constant 0 : i32
    %c0_i32_0 = arith.constant 0 : i32
    %c0_i32_1 = arith.constant 0 : i32
    return %arg0, %c0_i32, %c0_i32_0 : i32, i32, i32
  }
  func.func @transform_19(%arg0: i32) -> (i32, i32, i32) {
    %c0_i32 = arith.constant 0 : i32
    %c0_i32_0 = arith.constant 0 : i32
    %c0_i32_1 = arith.constant 0 : i32
    return %arg0, %c0_i32, %c0_i32_0 : i32, i32, i32
  }
  func.func @transform_20(%arg0: i32) -> (i32, i32, i32) {
    %c0_i32 = arith.constant 0 : i32
    %c0_i32_0 = arith.constant 0 : i32
    %c0_i32_1 = arith.constant 0 : i32
    return %arg0, %c0_i32, %c0_i32_0 : i32, i32, i32
  }
}

</mosaic_0001>

<llo_original>
// kernel: nelf_nerf360_forward.1
$region0: #{nelf_nerf360_forward.1}
  #allocation0 [shape = 'u32[]', space=smem, size = 0x4, offset = 0x4, fixed_abs, tag = 'smem constant byte address 0x4 - core index']
  #allocation1 [shape = 'u32[144,128]{1,0:T(1,128)}', space=vmem, size = 0x12000, scoped, tag = 'internal scratch']
  %s0 = inlined_call_operand.vmem [shape: bf16[2,63,2048], index: 0, kind: input, shape index: {}]
  %s1 = inlined_call_operand.vmem [shape: f32[2,1,2048], index: 1, kind: input, shape index: {}]
  %s2 = inlined_call_operand.vmem [shape: f32[2,1,2048], index: 2, kind: input, shape index: {}]
  %s3 = inlined_call_operand.vmem [shape: bf16[2,54,128], index: 3, kind: input, shape index: {}]
  %s4 = inlined_call_operand.vmem [shape: bf16[64,63], index: 4, kind: input, shape index: {}]
  %s5 = inlined_call_operand.vmem [shape: f32[64,1], index: 5, kind: input, shape index: {}]
  %s6 = inlined_call_operand.vmem [shape: bf16[64,64], index: 6, kind: input, shape index: {}]
  %s7 = inlined_call_operand.vmem [shape: f32[64,1], index: 7, kind: input, shape index: {}]
  %s8 = inlined_call_operand.vmem [shape: bf16[4,64], index: 8, kind: input, shape index: {}]
  %s9 = inlined_call_operand.vmem [shape: f32[4,1], index: 9, kind: input, shape index: {}]
  %s10 = inlined_call_operand.vmem [shape: bf16[64,54], index: 10, kind: input, shape index: {}]
  %s11 = inlined_call_operand.vmem [shape: f32[64,1], index: 11, kind: input, shape index: {}]
  %s12 = inlined_call_operand.vmem [shape: bf16[64,64], index: 12, kind: input, shape index: {}]
  %s13 = inlined_call_operand.vmem [shape: f32[64,1], index: 13, kind: input, shape index: {}]
  %s14 = inlined_call_operand.vmem [shape: bf16[4,64], index: 14, kind: input, shape index: {}]
  %s15 = inlined_call_operand.vmem [shape: f32[4,1], index: 15, kind: input, shape index: {}]
  %s16 = inlined_call_operand.vmem [shape: f32[2,3,128], index: 16, kind: output, shape index: {0}]
  %s17 = inlined_call_operand.hbm [shape: f32[2,1,128], index: 17, kind: output, shape index: {1}]
  %s18 = inlined_call_operand.vmem [shape: f32[2,1,128], index: 18, kind: output, shape index: {2}]
  %s19 = inlined_call_operand.vmem [shape: f32[2,1,128], index: 19, kind: output, shape index: {3}]
  %s20 = inlined_call_operand.vmem [shape: f32[2,4,128], index: 20, kind: output, shape index: {4}]
  %21 = xla_tuple %s16, %s17, %s18, %s19, %s20
  %s22 = sld [smem:[#allocation0]]
  $region129: #{nelf_nerf360_forward.1} parent=0
    _
  %s24 = ssub.s32 1, %s22
  %s25 = scalar_select 0, %s24, %s22
  $region1: #{nelf_nerf360_forward.1} parent=0
    #allocation2 [shape = 'u8[1024]{0}', space=vmem, size = 0x400, scoped, tag = 'output window, operand 1']
    #allocation3 [shape = 's32[2]{0}', space=sflag, size = 0x8, scoped, tag = 'scoped memory for nelf_nerf360_forward.1']
    %26 = vsyncpa [#allocation3], 0
    %s27 = scalar_lea.sflag [#allocation3], 1
    %28 = vsyncpa %s27, 0
    loop: start=0, step=1, limit=4
    $region2: #{nelf_nerf360_forward.1} parent=1 // loop_pre_header
      _
    $region3: #{nelf_nerf360_forward.1} parent=1 // loop_header
      %s30 = sphi 0, %s34
      %p31 = scmp.ge.s32.totalorder %s30, 4
      %s40 = sphi 0, %s42
      %s43 = sphi 0, %s40
      %s44 = sphi 0, %s43
      %s60 = sphi 0, %s44
      %s66 = sphi 0, %s68
      %s69 = sphi 0, %s66
      %s70 = sphi 0, %s69
      %s86 = sphi 0, %s70
      %s92 = sphi 0, %s94
      %s95 = sphi 0, %s92
      %s96 = sphi 0, %s95
      %s112 = sphi 0, %s96
      %s118 = sphi 0, %s120
      %s121 = sphi 0, %s118
      %s122 = sphi 0, %s121
      %s138 = sphi 0, %s122
      %s142 = sphi 0, %s142
      %s144 = sphi 0, %s142
      %s145 = sphi 0, %s144
      %s159 = sphi 0, %s145
      %s163 = sphi 0, %s163
      %s165 = sphi 0, %s163
      %s166 = sphi 0, %s165
      %s180 = sphi 0, %s166
      %s184 = sphi 0, %s184
      %s186 = sphi 0, %s184
      %s187 = sphi 0, %s186
      %s201 = sphi 0, %s187
      %s205 = sphi 0, %s205
      %s207 = sphi 0, %s205
      %s208 = sphi 0, %s207
      %s222 = sphi 0, %s208
      %s226 = sphi 0, %s226
      %s228 = sphi 0, %s226
      %s229 = sphi 0, %s228
      %s243 = sphi 0, %s229
      %s247 = sphi 0, %s247
      %s249 = sphi 0, %s247
      %s250 = sphi 0, %s249
      %s264 = sphi 0, %s250
      %s268 = sphi 0, %s268
      %s270 = sphi 0, %s268
      %s271 = sphi 0, %s270
      %s285 = sphi 0, %s271
      %s289 = sphi 0, %s289
      %s291 = sphi 0, %s289
      %s292 = sphi 0, %s291
      %s306 = sphi 0, %s292
      %s310 = sphi 0, %s310
      %s312 = sphi 0, %s310
      %s313 = sphi 0, %s312
      %s327 = sphi 0, %s313
      %s331 = sphi 0, %s331
      %s333 = sphi 0, %s331
      %s334 = sphi 0, %s333
      %s348 = sphi 0, %s334
      %s352 = sphi 0, %s352
      %s354 = sphi 0, %s352
      %s355 = sphi 0, %s354
      %s369 = sphi 0, %s355
      %s373 = sphi 0, %s373
      %s375 = sphi 0, %s373
      %s376 = sphi 0, %s375
      %s390 = sphi 0, %s376
      %s396 = sphi 0, %s398
      %s399 = sphi 0, %s396
      %s400 = sphi 0, %s399
      %s416 = sphi 0, %s400
      %s422 = sphi 0, %s424
      %s425 = sphi 0, %s422
      %s426 = sphi 0, %s425
      %s442 = sphi 0, %s426
      %s448 = sphi 0, %s450
      %s451 = sphi 0, %s448
      %s452 = sphi 0, %s451
      %s468 = sphi 0, %s452
      %s474 = sphi 0, %s476
      %s477 = sphi 0, %s474
      %s478 = sphi 0, %s477
      %s494 = sphi 0, %s478
      %s500 = sphi 0, %s502
      %s503 = sphi 0, %s500
      %s504 = sphi 0, %s503
      %s520 = sphi 0, %s504
    $region4: #{nelf_nerf360_forward.1} parent=1 // loop_header_branch
      %33 = sbr.rel (%p31) target = $region8
    $region5: #{nelf_nerf360_forward.1} parent=1 // loop_body
      %s35 = ssub.s32 %s30, 1
      %s36 = ssub.s32 %s30, 2
      %s37 = sadd.s32 %s30, 1
      %s38 = ssub.s32 %s30, %s37
      %p39 = scmp.eq.s32.totalorder %s38, 0
      %s41 = sadd.s32 %s40, 1
      %s42 = scalar_select %p39, %s40, %s41
      %p45 = pneg %p39
      %p46 = scmp.eq.s32.totalorder %s30, 1
      %p47 = por %p45, %p46
      %p48 = scmp.ne.s32.totalorder %s40, %s43
      %p49 = scmp.eq.s32.totalorder %s30, 0
      %p50 = por %p48, %p49
      %p51 = scmp.ne.s32.totalorder %s40, %s43
      %p52 = scmp.eq.s32.totalorder %s35, 1
      %p53 = por %p51, %p52
      %p54 = scmp.ne.s32.totalorder %s43, %s44
      %p55 = scmp.eq.s32.totalorder %s35, 0
      %p56 = por %p54, %p55
      %p57 = scmp.ne.s32.totalorder %s43, %s44
      %p58 = scmp.eq.s32.totalorder %s36, 1
      %p59 = por %p57, %p58
      %p61 = scmp.ne.s32.totalorder %s44, %s60
      %p62 = scmp.eq.s32.totalorder %s36, 0
      %p63 = por %p61, %p62
      %s64 = ssub.s32 %s30, %s37
      %p65 = scmp.eq.s32.totalorder %s64, 0
      %s67 = sadd.s32 %s66, 1
      %s68 = scalar_select %p65, %s66, %s67
      %p71 = pneg %p65
      %p72 = scmp.eq.s32.totalorder %s30, 1
      %p73 = por %p71, %p72
      %p74 = scmp.ne.s32.totalorder %s66, %s69
      %p75 = scmp.eq.s32.totalorder %s30, 0
      %p76 = por %p74, %p75
      %p77 = scmp.ne.s32.totalorder %s66, %s69
      %p78 = scmp.eq.s32.totalorder %s35, 1
      %p79 = por %p77, %p78
      %p80 = scmp.ne.s32.totalorder %s69, %s70
      %p81 = scmp.eq.s32.totalorder %s35, 0
      %p82 = por %p80, %p81
      %p83 = scmp.ne.s32.totalorder %s69, %s70
      %p84 = scmp.eq.s32.totalorder %s36, 1
      %p85 = por %p83, %p84
      %p87 = scmp.ne.s32.totalorder %s70, %s86
      %p88 = scmp.eq.s32.totalorder %s36, 0
      %p89 = por %p87, %p88
      %s90 = ssub.s32 %s30, %s37
      %p91 = scmp.eq.s32.totalorder %s90, 0
      %s93 = sadd.s32 %s92, 1
      %s94 = scalar_select %p91, %s92, %s93
      %p97 = pneg %p91
      %p98 = scmp.eq.s32.totalorder %s30, 1
      %p99 = por %p97, %p98
      %p100 = scmp.ne.s32.totalorder %s92, %s95
      %p101 = scmp.eq.s32.totalorder %s30, 0
      %p102 = por %p100, %p101
      %p103 = scmp.ne.s32.totalorder %s92, %s95
      %p104 = scmp.eq.s32.totalorder %s35, 1
      %p105 = por %p103, %p104
      %p106 = scmp.ne.s32.totalorder %s95, %s96
      %p107 = scmp.eq.s32.totalorder %s35, 0
      %p108 = por %p106, %p107
      %p109 = scmp.ne.s32.totalorder %s95, %s96
      %p110 = scmp.eq.s32.totalorder %s36, 1
      %p111 = por %p109, %p110
      %p113 = scmp.ne.s32.totalorder %s96, %s112
      %p114 = scmp.eq.s32.totalorder %s36, 0
      %p115 = por %p113, %p114
      %s116 = ssub.s32 %s30, %s37
      %p117 = scmp.eq.s32.totalorder %s116, 0
      %s119 = sadd.s32 %s118, 1
      %s120 = scalar_select %p117, %s118, %s119
      %p123 = pneg %p117
      %p124 = scmp.eq.s32.totalorder %s30, 1
      %p125 = por %p123, %p124
      %p126 = scmp.ne.s32.totalorder %s118, %s121
      %p127 = scmp.eq.s32.totalorder %s30, 0
      %p128 = por %p126, %p127
      %p129 = scmp.ne.s32.totalorder %s118, %s121
      %p130 = scmp.eq.s32.totalorder %s35, 1
      %p131 = por %p129, %p130
      %p132 = scmp.ne.s32.totalorder %s121, %s122
      %p133 = scmp.eq.s32.totalorder %s35, 0
      %p134 = por %p132, %p133
      %p135 = scmp.ne.s32.totalorder %s121, %s122
      %p136 = scmp.eq.s32.totalorder %s36, 1
      %p137 = por %p135, %p136
      %p139 = scmp.ne.s32.totalorder %s122, %s138
      %p140 = scmp.eq.s32.totalorder %s36, 0
      %p141 = por %p139, %p140
      %s143 = sadd.s32 %s142, 1
      %p146 = scmp.eq.s32.totalorder %s30, 1
      %p147 = scmp.ne.s32.totalorder %s142, %s144
      %p148 = scmp.eq.s32.totalorder %s30, 0
      %p149 = por %p147, %p148
      %p150 = scmp.ne.s32.totalorder %s142, %s144
      %p151 = scmp.eq.s32.totalorder %s35, 1
      %p152 = por %p150, %p151
      %p153 = scmp.ne.s32.totalorder %s144, %s145
      %p154 = scmp.eq.s32.totalorder %s35, 0
      %p155 = por %p153, %p154
      %p156 = scmp.ne.s32.totalorder %s144, %s145
      %p157 = scmp.eq.s32.totalorder %s36, 1
      %p158 = por %p156, %p157
      %p160 = scmp.ne.s32.totalorder %s145, %s159
      %p161 = scmp.eq.s32.totalorder %s36, 0
      %p162 = por %p160, %p161
      %s164 = sadd.s32 %s163, 1
      %p167 = scmp.eq.s32.totalorder %s30, 1
      %p168 = scmp.ne.s32.totalorder %s163, %s165
      %p169 = scmp.eq.s32.totalorder %s30, 0
      %p170 = por %p168, %p169
      %p171 = scmp.ne.s32.totalorder %s163, %s165
      %p172 = scmp.eq.s32.totalorder %s35, 1
      %p173 = por %p171, %p172
      %p174 = scmp.ne.s32.totalorder %s165, %s166
      %p175 = scmp.eq.s32.totalorder %s35, 0
      %p176 = por %p174, %p175
      %p177 = scmp.ne.s32.totalorder %s165, %s166
      %p178 = scmp.eq.s32.totalorder %s36, 1
      %p179 = por %p177, %p178
      %p181 = scmp.ne.s32.totalorder %s166, %s180
      %p182 = scmp.eq.s32.totalorder %s36, 0
      %p183 = por %p181, %p182
      %s185 = sadd.s32 %s184, 1
      %p188 = scmp.eq.s32.totalorder %s30, 1
      %p189 = scmp.ne.s32.totalorder %s184, %s186
      %p190 = scmp.eq.s32.totalorder %s30, 0
      %p191 = por %p189, %p190
      %p192 = scmp.ne.s32.totalorder %s184, %s186
      %p193 = scmp.eq.s32.totalorder %s35, 1
      %p194 = por %p192, %p193
      %p195 = scmp.ne.s32.totalorder %s186, %s187
      %p196 = scmp.eq.s32.totalorder %s35, 0
      %p197 = por %p195, %p196
      %p198 = scmp.ne.s32.totalorder %s186, %s187
      %p199 = scmp.eq.s32.totalorder %s36, 1
      %p200 = por %p198, %p199
      %p202 = scmp.ne.s32.totalorder %s187, %s201
      %p203 = scmp.eq.s32.totalorder %s36, 0
      %p204 = por %p202, %p203
      %s206 = sadd.s32 %s205, 1
      %p209 = scmp.eq.s32.totalorder %s30, 1
      %p210 = scmp.ne.s32.totalorder %s205, %s207
      %p211 = scmp.eq.s32.totalorder %s30, 0
      %p212 = por %p210, %p211
      %p213 = scmp.ne.s32.totalorder %s205, %s207
      %p214 = scmp.eq.s32.totalorder %s35, 1
      %p215 = por %p213, %p214
      %p216 = scmp.ne.s32.totalorder %s207, %s208
      %p217 = scmp.eq.s32.totalorder %s35, 0
      %p218 = por %p216, %p217
      %p219 = scmp.ne.s32.totalorder %s207, %s208
      %p220 = scmp.eq.s32.totalorder %s36, 1
      %p221 = por %p219, %p220
      %p223 = scmp.ne.s32.totalorder %s208, %s222
      %p224 = scmp.eq.s32.totalorder %s36, 0
      %p225 = por %p223, %p224
      %s227 = sadd.s32 %s226, 1
      %p230 = scmp.eq.s32.totalorder %s30, 1
      %p231 = scmp.ne.s32.totalorder %s226, %s228
      %p232 = scmp.eq.s32.totalorder %s30, 0
      %p233 = por %p231, %p232
      %p234 = scmp.ne.s32.totalorder %s226, %s228
      %p235 = scmp.eq.s32.totalorder %s35, 1
      %p236 = por %p234, %p235
      %p237 = scmp.ne.s32.totalorder %s228, %s229
      %p238 = scmp.eq.s32.totalorder %s35, 0
      %p239 = por %p237, %p238
      %p240 = scmp.ne.s32.totalorder %s228, %s229
      %p241 = scmp.eq.s32.totalorder %s36, 1
      %p242 = por %p240, %p241
      %p244 = scmp.ne.s32.totalorder %s229, %s243
      %p245 = scmp.eq.s32.totalorder %s36, 0
      %p246 = por %p244, %p245
      %s248 = sadd.s32 %s247, 1
      %p251 = scmp.eq.s32.totalorder %s30, 1
      %p252 = scmp.ne.s32.totalorder %s247, %s249
      %p253 = scmp.eq.s32.totalorder %s30, 0
      %p254 = por %p252, %p253
      %p255 = scmp.ne.s32.totalorder %s247, %s249
      %p256 = scmp.eq.s32.totalorder %s35, 1
      %p257 = por %p255, %p256
      %p258 = scmp.ne.s32.totalorder %s249, %s250
      %p259 = scmp.eq.s32.totalorder %s35, 0
      %p260 = por %p258, %p259
      %p261 = scmp.ne.s32.totalorder %s249, %s250
      %p262 = scmp.eq.s32.totalorder %s36, 1
      %p263 = por %p261, %p262
      %p265 = scmp.ne.s32.totalorder %s250, %s264
      %p266 = scmp.eq.s32.totalorder %s36, 0
      %p267 = por %p265, %p266
      %s269 = sadd.s32 %s268, 1
      %p272 = scmp.eq.s32.totalorder %s30, 1
      %p273 = scmp.ne.s32.totalorder %s268, %s270
      %p274 = scmp.eq.s32.totalorder %s30, 0
      %p275 = por %p273, %p274
      %p276 = scmp.ne.s32.totalorder %s268, %s270
      %p277 = scmp.eq.s32.totalorder %s35, 1
      %p278 = por %p276, %p277
      %p279 = scmp.ne.s32.totalorder %s270, %s271
      %p280 = scmp.eq.s32.totalorder %s35, 0
      %p281 = por %p279, %p280
      %p282 = scmp.ne.s32.totalorder %s270, %s271
      %p283 = scmp.eq.s32.totalorder %s36, 1
      %p284 = por %p282, %p283
      %p286 = scmp.ne.s32.totalorder %s271, %s285
      %p287 = scmp.eq.s32.totalorder %s36, 0
      %p288 = por %p286, %p287
      %s290 = sadd.s32 %s289, 1
      %p293 = scmp.eq.s32.totalorder %s30, 1
      %p294 = scmp.ne.s32.totalorder %s289, %s291
      %p295 = scmp.eq.s32.totalorder %s30, 0
      %p296 = por %p294, %p295
      %p297 = scmp.ne.s32.totalorder %s289, %s291
      %p298 = scmp.eq.s32.totalorder %s35, 1
      %p299 = por %p297, %p298
      %p300 = scmp.ne.s32.totalorder %s291, %s292
      %p301 = scmp.eq.s32.totalorder %s35, 0
      %p302 = por %p300, %p301
      %p303 = scmp.ne.s32.totalorder %s291, %s292
      %p304 = scmp.eq.s32.totalorder %s36, 1
      %p305 = por %p303, %p304
      %p307 = scmp.ne.s32.totalorder %s292, %s306
      %p308 = scmp.eq.s32.totalorder %s36, 0
      %p309 = por %p307, %p308
      %s311 = sadd.s32 %s310, 1
      %p314 = scmp.eq.s32.totalorder %s30, 1
      %p315 = scmp.ne.s32.totalorder %s310, %s312
      %p316 = scmp.eq.s32.totalorder %s30, 0
      %p317 = por %p315, %p316
      %p318 = scmp.ne.s32.totalorder %s310, %s312
      %p319 = scmp.eq.s32.totalorder %s35, 1
      %p320 = por %p318, %p319
      %p321 = scmp.ne.s32.totalorder %s312, %s313
      %p322 = scmp.eq.s32.totalorder %s35, 0
      %p323 = por %p321, %p322
      %p324 = scmp.ne.s32.totalorder %s312, %s313
      %p325 = scmp.eq.s32.totalorder %s36, 1
      %p326 = por %p324, %p325
      %p328 = scmp.ne.s32.totalorder %s313, %s327
      %p329 = scmp.eq.s32.totalorder %s36, 0
      %p330 = por %p328, %p329
      %s332 = sadd.s32 %s331, 1
      %p335 = scmp.eq.s32.totalorder %s30, 1
      %p336 = scmp.ne.s32.totalorder %s331, %s333
      %p337 = scmp.eq.s32.totalorder %s30, 0
      %p338 = por %p336, %p337
      %p339 = scmp.ne.s32.totalorder %s331, %s333
      %p340 = scmp.eq.s32.totalorder %s35, 1
      %p341 = por %p339, %p340
      %p342 = scmp.ne.s32.totalorder %s333, %s334
      %p343 = scmp.eq.s32.totalorder %s35, 0
      %p344 = por %p342, %p343
      %p345 = scmp.ne.s32.totalorder %s333, %s334
      %p346 = scmp.eq.s32.totalorder %s36, 1
      %p347 = por %p345, %p346
      %p349 = scmp.ne.s32.totalorder %s334, %s348
      %p350 = scmp.eq.s32.totalorder %s36, 0
      %p351 = por %p349, %p350
      %s353 = sadd.s32 %s352, 1
      %p356 = scmp.eq.s32.totalorder %s30, 1
      %p357 = scmp.ne.s32.totalorder %s352, %s354
      %p358 = scmp.eq.s32.totalorder %s30, 0
      %p359 = por %p357, %p358
      %p360 = scmp.ne.s32.totalorder %s352, %s354
      %p361 = scmp.eq.s32.totalorder %s35, 1
      %p362 = por %p360, %p361
      %p363 = scmp.ne.s32.totalorder %s354, %s355
      %p364 = scmp.eq.s32.totalorder %s35, 0
      %p365 = por %p363, %p364
      %p366 = scmp.ne.s32.totalorder %s354, %s355
      %p367 = scmp.eq.s32.totalorder %s36, 1
      %p368 = por %p366, %p367
      %p370 = scmp.ne.s32.totalorder %s355, %s369
      %p371 = scmp.eq.s32.totalorder %s36, 0
      %p372 = por %p370, %p371
      %s374 = sadd.s32 %s373, 1
      %p377 = scmp.eq.s32.totalorder %s30, 1
      %p378 = scmp.ne.s32.totalorder %s373, %s375
      %p379 = scmp.eq.s32.totalorder %s30, 0
      %p380 = por %p378, %p379
      %p381 = scmp.ne.s32.totalorder %s373, %s375
      %p382 = scmp.eq.s32.totalorder %s35, 1
      %p383 = por %p381, %p382
      %p384 = scmp.ne.s32.totalorder %s375, %s376
      %p385 = scmp.eq.s32.totalorder %s35, 0
      %p386 = por %p384, %p385
      %p387 = scmp.ne.s32.totalorder %s375, %s376
      %p388 = scmp.eq.s32.totalorder %s36, 1
      %p389 = por %p387, %p388
      %p391 = scmp.ne.s32.totalorder %s376, %s390
      %p392 = scmp.eq.s32.totalorder %s36, 0
      %p393 = por %p391, %p392
      %s394 = ssub.s32 %s30, %s37
      %p395 = scmp.eq.s32.totalorder %s394, 0
      %s397 = sadd.s32 %s396, 1
      %s398 = scalar_select %p395, %s396, %s397
      %p401 = pneg %p395
      %p402 = scmp.eq.s32.totalorder %s30, 1
      %p403 = por %p401, %p402
      %p404 = scmp.ne.s32.totalorder %s396, %s399
      %p405 = scmp.eq.s32.totalorder %s30, 0
      %p406 = por %p404, %p405
      %p407 = scmp.ne.s32.totalorder %s396, %s399
      %p408 = scmp.eq.s32.totalorder %s35, 1
      %p409 = por %p407, %p408
      %p410 = scmp.ne.s32.totalorder %s399, %s400
      %p411 = scmp.eq.s32.totalorder %s35, 0
      %p412 = por %p410, %p411
      %p413 = scmp.ne.s32.totalorder %s399, %s400
      %p414 = scmp.eq.s32.totalorder %s36, 1
      %p415 = por %p413, %p414
      %p417 = scmp.ne.s32.totalorder %s400, %s416
      %p418 = scmp.eq.s32.totalorder %s36, 0
      %p419 = por %p417, %p418
      %s420 = ssub.s32 %s30, %s37
      %p421 = scmp.eq.s32.totalorder %s420, 0
      %s423 = sadd.s32 %s422, 1
      %s424 = scalar_select %p421, %s422, %s423
      %p427 = pneg %p421
      %p428 = scmp.eq.s32.totalorder %s30, 1
      %p429 = por %p427, %p428
      %p430 = scmp.ne.s32.totalorder %s422, %s425
      %p431 = scmp.eq.s32.totalorder %s30, 0
      %p432 = por %p430, %p431
      %p433 = scmp.ne.s32.totalorder %s422, %s425
      %p434 = scmp.eq.s32.totalorder %s35, 1
      %p435 = por %p433, %p434
      %p436 = scmp.ne.s32.totalorder %s425, %s426
      %p437 = scmp.eq.s32.totalorder %s35, 0
      %p438 = por %p436, %p437
      %p439 = scmp.ne.s32.totalorder %s425, %s426
      %p440 = scmp.eq.s32.totalorder %s36, 1
      %p441 = por %p439, %p440
      %p443 = scmp.ne.s32.totalorder %s426, %s442
      %p444 = scmp.eq.s32.totalorder %s36, 0
      %p445 = por %p443, %p444
      %s446 = ssub.s32 %s30, %s37
      %p447 = scmp.eq.s32.totalorder %s446, 0
      %s449 = sadd.s32 %s448, 1
      %s450 = scalar_select %p447, %s448, %s449
      %p453 = pneg %p447
      %p454 = scmp.eq.s32.totalorder %s30, 1
      %p455 = por %p453, %p454
      %p456 = scmp.ne.s32.totalorder %s448, %s451
      %p457 = scmp.eq.s32.totalorder %s30, 0
      %p458 = por %p456, %p457
      %p459 = scmp.ne.s32.totalorder %s448, %s451
      %p460 = scmp.eq.s32.totalorder %s35, 1
      %p461 = por %p459, %p460
      %p462 = scmp.ne.s32.totalorder %s451, %s452
      %p463 = scmp.eq.s32.totalorder %s35, 0
      %p464 = por %p462, %p463
      %p465 = scmp.ne.s32.totalorder %s451, %s452
      %p466 = scmp.eq.s32.totalorder %s36, 1
      %p467 = por %p465, %p466
      %p469 = scmp.ne.s32.totalorder %s452, %s468
      %p470 = scmp.eq.s32.totalorder %s36, 0
      %p471 = por %p469, %p470
      %s472 = ssub.s32 %s30, %s37
      %p473 = scmp.eq.s32.totalorder %s472, 0
      %s475 = sadd.s32 %s474, 1
      %s476 = scalar_select %p473, %s474, %s475
      %p479 = pneg %p473
      %p480 = scmp.eq.s32.totalorder %s30, 1
      %p481 = por %p479, %p480
      %p482 = scmp.ne.s32.totalorder %s474, %s477
      %p483 = scmp.eq.s32.totalorder %s30, 0
      %p484 = por %p482, %p483
      %p485 = scmp.ne.s32.totalorder %s474, %s477
      %p486 = scmp.eq.s32.totalorder %s35, 1
      %p487 = por %p485, %p486
      %p488 = scmp.ne.s32.totalorder %s477, %s478
      %p489 = scmp.eq.s32.totalorder %s35, 0
      %p490 = por %p488, %p489
      %p491 = scmp.ne.s32.totalorder %s477, %s478
      %p492 = scmp.eq.s32.totalorder %s36, 1
      %p493 = por %p491, %p492
      %p495 = scmp.ne.s32.totalorder %s478, %s494
      %p496 = scmp.eq.s32.totalorder %s36, 0
      %p497 = por %p495, %p496
      %s498 = ssub.s32 %s30, %s37
      %p499 = scmp.eq.s32.totalorder %s498, 0
      %s501 = sadd.s32 %s500, 1
      %s502 = scalar_select %p499, %s500, %s501
      %p505 = pneg %p499
      %p506 = scmp.eq.s32.totalorder %s30, 1
      %p507 = por %p505, %p506
      %p508 = scmp.ne.s32.totalorder %s500, %s503
      %p509 = scmp.eq.s32.totalorder %s30, 0
      %p510 = por %p508, %p509
      %p511 = scmp.ne.s32.totalorder %s500, %s503
      %p512 = scmp.eq.s32.totalorder %s35, 1
      %p513 = por %p511, %p512
      %p514 = scmp.ne.s32.totalorder %s503, %s504
      %p515 = scmp.eq.s32.totalorder %s35, 0
      %p516 = por %p514, %p515
      %p517 = scmp.ne.s32.totalorder %s503, %s504
      %p518 = scmp.eq.s32.totalorder %s36, 1
      %p519 = por %p517, %p518
      %p521 = scmp.ne.s32.totalorder %s504, %s520
      %p522 = scmp.eq.s32.totalorder %s36, 0
      %p523 = por %p521, %p522
      %p524 = scmp.le.s32.totalorder 1, %s30
      %p525 = scmp.lt.s32.totalorder %s30, 3
      %p526 = pnand %p524, %p525
      %p527 = pneg %p526
      // Predicated region
      $region9: #{nelf_nerf360_forward.1} parent=5 // pred_check
        _
      $region10: #{nelf_nerf360_forward.1} parent=5 // pred_check_branch
        %529 = sbr.rel (%p526) target = $region12
      $region11: #{nelf_nerf360_forward.1} parent=5 // pred_region
        %s530 = ssub.s32 %s30, 1
        // Predicated region
        $region13: #{nelf_nerf360_forward.1} parent=11 // pred_check
          %p531 = pneg %p155
        $region14: #{nelf_nerf360_forward.1} parent=11 // pred_check_branch
          %533 = sbr.rel (%p531) target = $region16
        $region15: #{nelf_nerf360_forward.1} parent=11 // pred_region
          _
        $region16: #{nelf_nerf360_forward.1} parent=11 // pred_fallthru
          _
        // Predicated region
        $region17: #{nelf_nerf360_forward.1} parent=11 // pred_check
          %p534 = pneg %p176
        $region18: #{nelf_nerf360_forward.1} parent=11 // pred_check_branch
          %536 = sbr.rel (%p534) target = $region20
        $region19: #{nelf_nerf360_forward.1} parent=11 // pred_region
          _
        $region20: #{nelf_nerf360_forward.1} parent=11 // pred_fallthru
          _
        // Predicated region
        $region21: #{nelf_nerf360_forward.1} parent=11 // pred_check
          %p537 = pneg %p197
        $region22: #{nelf_nerf360_forward.1} parent=11 // pred_check_branch
          %539 = sbr.rel (%p537) target = $region24
        $region23: #{nelf_nerf360_forward.1} parent=11 // pred_region
          _
        $region24: #{nelf_nerf360_forward.1} parent=11 // pred_fallthru
          _
        // Predicated region
        $region25: #{nelf_nerf360_forward.1} parent=11 // pred_check
          %p540 = pneg %p218
        $region26: #{nelf_nerf360_forward.1} parent=11 // pred_check_branch
          %542 = sbr.rel (%p540) target = $region28
        $region27: #{nelf_nerf360_forward.1} parent=11 // pred_region
          _
        $region28: #{nelf_nerf360_forward.1} parent=11 // pred_fallthru
          _
        // Predicated region
        $region29: #{nelf_nerf360_forward.1} parent=11 // pred_check
          %p543 = pneg %p239
        $region30: #{nelf_nerf360_forward.1} parent=11 // pred_check_branch
          %545 = sbr.rel (%p543) target = $region32
        $region31: #{nelf_nerf360_forward.1} parent=11 // pred_region
          _
        $region32: #{nelf_nerf360_forward.1} parent=11 // pred_fallthru
          _
        // Predicated region
        $region33: #{nelf_nerf360_forward.1} parent=11 // pred_check
          %p546 = pneg %p260
        $region34: #{nelf_nerf360_forward.1} parent=11 // pred_check_branch
          %548 = sbr.rel (%p546) target = $region36
        $region35: #{nelf_nerf360_forward.1} parent=11 // pred_region
          _
        $region36: #{nelf_nerf360_forward.1} parent=11 // pred_fallthru
          _
        // Predicated region
        $region37: #{nelf_nerf360_forward.1} parent=11 // pred_check
          %p549 = pneg %p281
        $region38: #{nelf_nerf360_forward.1} parent=11 // pred_check_branch
          %551 = sbr.rel (%p549) target = $region40
        $region39: #{nelf_nerf360_forward.1} parent=11 // pred_region
          _
        $region40: #{nelf_nerf360_forward.1} parent=11 // pred_fallthru
          _
        // Predicated region
        $region41: #{nelf_nerf360_forward.1} parent=11 // pred_check
          %p552 = pneg %p302
        $region42: #{nelf_nerf360_forward.1} parent=11 // pred_check_branch
          %554 = sbr.rel (%p552) target = $region44
        $region43: #{nelf_nerf360_forward.1} parent=11 // pred_region
          _
        $region44: #{nelf_nerf360_forward.1} parent=11 // pred_fallthru
          _
        // Predicated region
        $region45: #{nelf_nerf360_forward.1} parent=11 // pred_check
          %p555 = pneg %p323
        $region46: #{nelf_nerf360_forward.1} parent=11 // pred_check_branch
          %557 = sbr.rel (%p555) target = $region48
        $region47: #{nelf_nerf360_forward.1} parent=11 // pred_region
          _
        $region48: #{nelf_nerf360_forward.1} parent=11 // pred_fallthru
          _
        // Predicated region
        $region49: #{nelf_nerf360_forward.1} parent=11 // pred_check
          %p558 = pneg %p344
        $region50: #{nelf_nerf360_forward.1} parent=11 // pred_check_branch
          %560 = sbr.rel (%p558) target = $region52
        $region51: #{nelf_nerf360_forward.1} parent=11 // pred_region
          _
        $region52: #{nelf_nerf360_forward.1} parent=11 // pred_fallthru
          _
        // Predicated region
        $region53: #{nelf_nerf360_forward.1} parent=11 // pred_check
          %p561 = pneg %p365
        $region54: #{nelf_nerf360_forward.1} parent=11 // pred_check_branch
          %563 = sbr.rel (%p561) target = $region56
        $region55: #{nelf_nerf360_forward.1} parent=11 // pred_region
          _
        $region56: #{nelf_nerf360_forward.1} parent=11 // pred_fallthru
          _
        // Predicated region
        $region57: #{nelf_nerf360_forward.1} parent=11 // pred_check
          %p564 = pneg %p386
        $region58: #{nelf_nerf360_forward.1} parent=11 // pred_check_branch
          %566 = sbr.rel (%p564) target = $region60
        $region59: #{nelf_nerf360_forward.1} parent=11 // pred_region
          _
        $region60: #{nelf_nerf360_forward.1} parent=11 // pred_fallthru
          _
      $region12: #{nelf_nerf360_forward.1} parent=5 // pred_fallthru
        _
      %p567 = scmp.lt.s32.totalorder %s30, 2
      // Predicated region
      $region61: #{nelf_nerf360_forward.1} parent=5 // pred_check
        %p568 = pneg %p567
      $region62: #{nelf_nerf360_forward.1} parent=5 // pred_check_branch
        %570 = sbr.rel (%p568) target = $region64
      $region63: #{nelf_nerf360_forward.1} parent=5 // pred_region
        // Predicated region
        $region65: #{nelf_nerf360_forward.1} parent=63 // pred_check
          %p571 = pneg %p50
        $region66: #{nelf_nerf360_forward.1} parent=63 // pred_check_branch
          %573 = sbr.rel (%p571) target = $region68
        $region67: #{nelf_nerf360_forward.1} parent=63 // pred_region
          %p574 = scmp.lt.s32.totalorder %s30, 1
          %s575 = scalar_select %p574, %s30, 1
          %s576 = smul.addr %s575, 128
          %s577 = smul.addr %s576, 4
          %s578 = scalar_lea.vmem %s0, %s577
        $region68: #{nelf_nerf360_forward.1} parent=63 // pred_fallthru
          _
        // Predicated region
        $region69: #{nelf_nerf360_forward.1} parent=63 // pred_check
          %p579 = pneg %p76
        $region70: #{nelf_nerf360_forward.1} parent=63 // pred_check_branch
          %581 = sbr.rel (%p579) target = $region72
        $region71: #{nelf_nerf360_forward.1} parent=63 // pred_region
          %p582 = scmp.lt.s32.totalorder %s30, 1
          %s583 = scalar_select %p582, %s30, 1
          %s584 = smul.addr %s583, 16
          %s585 = scalar_lea.vmem %s1, %s584
        $region72: #{nelf_nerf360_forward.1} parent=63 // pred_fallthru
          _
        // Predicated region
        $region73: #{nelf_nerf360_forward.1} parent=63 // pred_check
          %p586 = pneg %p102
        $region74: #{nelf_nerf360_forward.1} parent=63 // pred_check_branch
          %588 = sbr.rel (%p586) target = $region76
        $region75: #{nelf_nerf360_forward.1} parent=63 // pred_region
          %p589 = scmp.lt.s32.totalorder %s30, 1
          %s590 = scalar_select %p589, %s30, 1
          %s591 = smul.addr %s590, 16
          %s592 = scalar_lea.vmem %s2, %s591
        $region76: #{nelf_nerf360_forward.1} parent=63 // pred_fallthru
          _
        // Predicated region
        $region77: #{nelf_nerf360_forward.1} parent=63 // pred_check
          %p593 = pneg %p128
        $region78: #{nelf_nerf360_forward.1} parent=63 // pred_check_branch
          %595 = sbr.rel (%p593) target = $region80
        $region79: #{nelf_nerf360_forward.1} parent=63 // pred_region
          %p596 = scmp.lt.s32.totalorder %s30, 1
          %s597 = scalar_select %p596, %s30, 1
          %s598 = smul.addr %s597, 7
          %s599 = smul.addr %s598, 4
          %s600 = scalar_lea.vmem %s3, %s599
        $region80: #{nelf_nerf360_forward.1} parent=63 // pred_fallthru
          _
      $region64: #{nelf_nerf360_forward.1} parent=5 // pred_fallthru
        _
      %p601 = scmp.le.s32.totalorder 1, %s30
      %p602 = scmp.lt.s32.totalorder %s30, 3
      %p603 = pnand %p601, %p602
      %p604 = pneg %p603
      // Predicated region
      $region81: #{nelf_nerf360_forward.1} parent=5 // pred_check
        _
      $region82: #{nelf_nerf360_forward.1} parent=5 // pred_check_branch
        %606 = sbr.rel (%p603) target = $region84
      $region83: #{nelf_nerf360_forward.1} parent=5 // pred_region
        %s607 = ssub.s32 %s30, 1
        %p608 = scmp.lt.s32.totalorder %s35, 1
        %s609 = scalar_select %p608, %s35, 1
        %s610 = smul.addr %s609, 128
        %s611 = smul.addr %s610, 4
        %s612 = scalar_lea.vmem %s0, %s611
        %p613 = pneg %p56
        %p614 = pneg %p53
        %p615 = scmp.lt.s32.totalorder %s35, 1
        %s616 = scalar_select %p615, %s35, 1
        %s617 = smul.addr %s616, 16
        %s618 = scalar_lea.vmem %s1, %s617
        %p619 = pneg %p82
        %p620 = pneg %p79
        %p621 = scmp.lt.s32.totalorder %s35, 1
        %s622 = scalar_select %p621, %s35, 1
        %s623 = smul.addr %s622, 16
        %s624 = scalar_lea.vmem %s2, %s623
        %p625 = pneg %p108
        %p626 = pneg %p105
        %p627 = scmp.lt.s32.totalorder %s35, 1
        %s628 = scalar_select %p627, %s35, 1
        %s629 = smul.addr %s628, 7
        %s630 = smul.addr %s629, 4
        %s631 = scalar_lea.vmem %s3, %s630
        %p632 = pneg %p134
        %p633 = pneg %p131
        %p634 = pneg %p155
        %p635 = pneg %p152
        %p636 = pneg %p176
        %p637 = pneg %p173
        %p638 = pneg %p197
        %p639 = pneg %p194
        %p640 = pneg %p218
        %p641 = pneg %p215
        %p642 = pneg %p239
        %p643 = pneg %p236
        %p644 = pneg %p260
        %p645 = pneg %p257
        %p646 = pneg %p281
        %p647 = pneg %p278
        %p648 = pneg %p302
        %p649 = pneg %p299
        %p650 = pneg %p323
        %p651 = pneg %p320
        %p652 = pneg %p344
        %p653 = pneg %p341
        %p654 = pneg %p365
        %p655 = pneg %p362
        %p656 = pneg %p386
        %p657 = pneg %p383
        %p658 = pneg %p412
        %p659 = pneg %p409
        %p660 = scmp.lt.s32.totalorder %s35, 1
        %s661 = scalar_select %p660, %s35, 1
        %s662 = smul.addr %s661, 4
        %s663 = scalar_lea.vmem %s16, %s662
        %p664 = pneg %p438
        %p665 = pneg %p435
        %s666 = sand.u32 %s425, 1
        %s667 = scalar_lea.sflag [#allocation3], %s666
        %s668 = sand.u32 %s425, 1
        %s669 = scalar_lea.vmem [#allocation2], %s668
        %p670 = pneg %p464
        %p671 = pneg %p461
        %p672 = scmp.lt.s32.totalorder %s35, 1
        %s673 = scalar_select %p672, %s35, 1
        %s674 = scalar_lea.vmem %s18, %s673
        %p675 = pneg %p490
        %p676 = pneg %p487
        %p677 = scmp.lt.s32.totalorder %s35, 1
        %s678 = scalar_select %p677, %s35, 1
        %s679 = scalar_lea.vmem %s19, %s678
        %p680 = pneg %p516
        %p681 = pneg %p513
        %p682 = scmp.lt.s32.totalorder %s35, 1
        %s683 = scalar_select %p682, %s35, 1
        %s684 = smul.addr %s683, 4
        %s685 = scalar_lea.vmem %s20, %s684
        %p686 = scmp.lt.s32.totalorder %s35, 1
        %s687 = scalar_select %p686, %s35, 1
        %s688 = smul.addr %s687, 128
        %s689 = smul.addr %s688, 4
        %s690 = scalar_lea.vmem %s0, %s689
        %p691 = scmp.lt.s32.totalorder %s35, 1
        %s692 = scalar_select %p691, %s35, 1
        %s693 = smul.addr %s692, 16
        %s694 = scalar_lea.vmem %s1, %s693
        %p695 = scmp.lt.s32.totalorder %s35, 1
        %s696 = scalar_select %p695, %s35, 1
        %s697 = smul.addr %s696, 16
        %s698 = scalar_lea.vmem %s2, %s697
        %p699 = scmp.lt.s32.totalorder %s35, 1
        %s700 = scalar_select %p699, %s35, 1
        %s701 = smul.addr %s700, 7
        %s702 = smul.addr %s701, 4
        %s703 = scalar_lea.vmem %s3, %s702
        %p704 = scmp.lt.s32.totalorder %s35, 1
        %s705 = scalar_select %p704, %s35, 1
        %s706 = smul.addr %s705, 4
        %s707 = scalar_lea.vmem %s16, %s706
        %p708 = scmp.lt.s32.totalorder %s35, 1
        %s709 = scalar_select %p708, %s35, 1
        %s710 = scalar_lea.vmem %s18, %s709
        %p711 = scmp.lt.s32.totalorder %s35, 1
        %s712 = scalar_select %p711, %s35, 1
        %s713 = scalar_lea.vmem %s19, %s712
        %p714 = scmp.lt.s32.totalorder %s35, 1
        %s715 = scalar_select %p714, %s35, 1
        %s716 = smul.addr %s715, 4
        %s717 = scalar_lea.vmem %s20, %s716
        %v719 = vld [vmem:[%s690] sm:$0xff]
        %v720 = vld [vmem:[%s690 + $0x8] sm:$0xff]
        %v721 = vld [vmem:[%s690 + $0x10] sm:$0xff]
        %v722 = vld [vmem:[%s690 + $0x18] sm:$0xff]
        %v723 = vld [vmem:[%s690 + $0x20] sm:$0xff]
        %v724 = vld [vmem:[%s690 + $0x28] sm:$0xff]
        %v725 = vld [vmem:[%s690 + $0x30] sm:$0xff]
        %v726 = vld [vmem:[%s690 + $0x38] sm:$0xff]
        %v727 = vld [vmem:[%s690 + $0x40] sm:$0xff]
        %v728 = vld [vmem:[%s690 + $0x48] sm:$0xff]
        %v729 = vld [vmem:[%s690 + $0x50] sm:$0xff]
        %v730 = vld [vmem:[%s690 + $0x58] sm:$0xff]
        %v731 = vld [vmem:[%s690 + $0x60] sm:$0xff]
        %v732 = vld [vmem:[%s690 + $0x68] sm:$0xff]
        %v733 = vld [vmem:[%s690 + $0x70] sm:$0xff]
        %v734 = vld [vmem:[%s690 + $0x78] sm:$0xff]
        %v735 = vld [vmem:[%s690 + $0x80] sm:$0xff]
        %v736 = vld [vmem:[%s690 + $0x88] sm:$0xff]
        %v737 = vld [vmem:[%s690 + $0x90] sm:$0xff]
        %v738 = vld [vmem:[%s690 + $0x98] sm:$0xff]
        %v739 = vld [vmem:[%s690 + $0xa0] sm:$0xff]
        %v740 = vld [vmem:[%s690 + $0xa8] sm:$0xff]
        %v741 = vld [vmem:[%s690 + $0xb0] sm:$0xff]
        %v742 = vld [vmem:[%s690 + $0xb8] sm:$0xff]
        %v743 = vld [vmem:[%s690 + $0xc0] sm:$0xff]
        %v744 = vld [vmem:[%s690 + $0xc8] sm:$0xff]
        %v745 = vld [vmem:[%s690 + $0xd0] sm:$0xff]
        %v746 = vld [vmem:[%s690 + $0xd8] sm:$0xff]
        %v747 = vld [vmem:[%s690 + $0xe0] sm:$0xff]
        %v748 = vld [vmem:[%s690 + $0xe8] sm:$0xff]
        %v749 = vld [vmem:[%s690 + $0xf0] sm:$0xff]
        %v750 = vld [vmem:[%s690 + $0xf8] sm:$0xff]
        %v751 = vld [vmem:[%s690 + $0x100] sm:$0xff]
        %v752 = vld [vmem:[%s690 + $0x108] sm:$0xff]
        %v753 = vld [vmem:[%s690 + $0x110] sm:$0xff]
        %v754 = vld [vmem:[%s690 + $0x118] sm:$0xff]
        %v755 = vld [vmem:[%s690 + $0x120] sm:$0xff]
        %v756 = vld [vmem:[%s690 + $0x128] sm:$0xff]
        %v757 = vld [vmem:[%s690 + $0x130] sm:$0xff]
        %v758 = vld [vmem:[%s690 + $0x138] sm:$0xff]
        %v759 = vld [vmem:[%s690 + $0x140] sm:$0xff]
        %v760 = vld [vmem:[%s690 + $0x148] sm:$0xff]
        %v761 = vld [vmem:[%s690 + $0x150] sm:$0xff]
        %v762 = vld [vmem:[%s690 + $0x158] sm:$0xff]
        %v763 = vld [vmem:[%s690 + $0x160] sm:$0xff]
        %v764 = vld [vmem:[%s690 + $0x168] sm:$0xff]
        %v765 = vld [vmem:[%s690 + $0x170] sm:$0xff]
        %v766 = vld [vmem:[%s690 + $0x178] sm:$0xff]
        %v767 = vld [vmem:[%s690 + $0x180] sm:$0xff]
        %v768 = vld [vmem:[%s690 + $0x188] sm:$0xff]
        %v769 = vld [vmem:[%s690 + $0x190] sm:$0xff]
        %v770 = vld [vmem:[%s690 + $0x198] sm:$0xff]
        %v771 = vld [vmem:[%s690 + $0x1a0] sm:$0xff]
        %v772 = vld [vmem:[%s690 + $0x1a8] sm:$0xff]
        %v773 = vld [vmem:[%s690 + $0x1b0] sm:$0xff]
        %v774 = vld [vmem:[%s690 + $0x1b8] sm:$0xff]
        %v775 = vld [vmem:[%s690 + $0x1c0] sm:$0xff]
        %v776 = vld [vmem:[%s690 + $0x1c8] sm:$0xff]
        %v777 = vld [vmem:[%s690 + $0x1d0] sm:$0xff]
        %v778 = vld [vmem:[%s690 + $0x1d8] sm:$0xff]
        %v779 = vld [vmem:[%s690 + $0x1e0] sm:$0xff]
        %v780 = vld [vmem:[%s690 + $0x1e8] sm:$0xff]
        %v781 = vld [vmem:[%s690 + $0x1f0] sm:$0xff]
        %v782 = vld [vmem:[%s690 + $0x1f8] sm:$0xff]
        %v783 = vld [vmem:[%s4] sm:$0xf]
        %v784 = vld [vmem:[%s4 + $0x4] sm:$0xf]
        %v785 = vld [vmem:[%s4 + $0x8] sm:$0xf]
        %v786 = vld [vmem:[%s4 + $0xc] sm:$0xf]
        %v787 = vld [vmem:[%s4 + $0x10] sm:$0xf]
        %v788 = vld [vmem:[%s4 + $0x14] sm:$0xf]
        %v789 = vld [vmem:[%s4 + $0x18] sm:$0xf]
        %v790 = vld [vmem:[%s4 + $0x1c] sm:$0xf]
        %v791 = vld [vmem:[%s5] sm:$0xff]
        %v792 = vld [vmem:[%s5 + $0x8] sm:$0xff]
        %v793 = vld [vmem:[%s5 + $0x10] sm:$0xff]
        %v794 = vld [vmem:[%s5 + $0x18] sm:$0xff]
        %v795 = vld [vmem:[%s5 + $0x20] sm:$0xff]
        %v796 = vld [vmem:[%s5 + $0x28] sm:$0xff]
        %v797 = vld [vmem:[%s5 + $0x30] sm:$0xff]
        %v798 = vld [vmem:[%s5 + $0x38] sm:$0xff]
        %800 = vset.pattern.permute.xlu0 0
        %801 = vperm.xlu0 %800, %v791
        %v802 = vpop.permute.xlu0 %801
        %805 = vset.pattern.permute.xlu0 0
        %806 = vperm.xlu0 %805, %v792
        %v807 = vpop.permute.xlu0 %806
        %810 = vset.pattern.permute.xlu0 0
        %811 = vperm.xlu0 %810, %v793
        %v812 = vpop.permute.xlu0 %811
        %815 = vset.pattern.permute.xlu0 0
        %816 = vperm.xlu0 %815, %v794
        %v817 = vpop.permute.xlu0 %816
        %820 = vset.pattern.permute.xlu0 0
        %821 = vperm.xlu0 %820, %v795
        %v822 = vpop.permute.xlu0 %821
        %825 = vset.pattern.permute.xlu0 0
        %826 = vperm.xlu0 %825, %v796
        %v827 = vpop.permute.xlu0 %826
        %830 = vset.pattern.permute.xlu0 0
        %831 = vperm.xlu0 %830, %v797
        %v832 = vpop.permute.xlu0 %831
        %835 = vset.pattern.permute.xlu0 0
        %836 = vperm.xlu0 %835, %v798
        %v837 = vpop.permute.xlu0 %836
        %v847 = vunpack.c.l.b16 %v783
        %v848 = vunpack.c.l.b16 %v784
        %v849 = vunpack.c.l.b16 %v785
        %v850 = vunpack.c.l.b16 %v786
        %v851 = vunpack.c.l.b16 %v787
        %v852 = vunpack.c.l.b16 %v788
        %v853 = vunpack.c.l.b16 %v789
        %v854 = vunpack.c.l.b16 %v790
        %v855 = vpack.c.b16 %v848, %v847
        %v856 = vpack.c.b16 %v850, %v849
        %v857 = vpack.c.b16 %v852, %v851
        %v858 = vpack.c.b16 %v854, %v853
        %v923 = vunpack.c.l.b16 %v719
        %v924 = vunpack.c.h.b16 %v719
        %v925 = vunpack.c.l.b16 %v720
        %v926 = vunpack.c.h.b16 %v720
        %v927 = vunpack.c.l.b16 %v721
        %v928 = vunpack.c.h.b16 %v721
        %v929 = vunpack.c.l.b16 %v722
        %v930 = vunpack.c.h.b16 %v722
        %v931 = vunpack.c.l.b16 %v723
        %v932 = vunpack.c.h.b16 %v723
        %v933 = vunpack.c.l.b16 %v724
        %v934 = vunpack.c.h.b16 %v724
        %v935 = vunpack.c.l.b16 %v725
        %v936 = vunpack.c.h.b16 %v725
        %v937 = vunpack.c.l.b16 %v726
        %v938 = vunpack.c.h.b16 %v726
        %v939 = vunpack.c.l.b16 %v727
        %v940 = vunpack.c.h.b16 %v727
        %v941 = vunpack.c.l.b16 %v728
        %v942 = vunpack.c.h.b16 %v728
        %v943 = vunpack.c.l.b16 %v729
        %v944 = vunpack.c.h.b16 %v729
        %v945 = vunpack.c.l.b16 %v730
        %v946 = vunpack.c.h.b16 %v730
        %v947 = vunpack.c.l.b16 %v731
        %v948 = vunpack.c.h.b16 %v731
        %v949 = vunpack.c.l.b16 %v732
        %v950 = vunpack.c.h.b16 %v732
        %v951 = vunpack.c.l.b16 %v733
        %v952 = vunpack.c.h.b16 %v733
        %v953 = vunpack.c.l.b16 %v734
        %v954 = vunpack.c.h.b16 %v734
        %v955 = vunpack.c.l.b16 %v735
        %v956 = vunpack.c.h.b16 %v735
        %v957 = vunpack.c.l.b16 %v736
        %v958 = vunpack.c.h.b16 %v736
        %v959 = vunpack.c.l.b16 %v737
        %v960 = vunpack.c.h.b16 %v737
        %v961 = vunpack.c.l.b16 %v738
        %v962 = vunpack.c.h.b16 %v738
        %v963 = vunpack.c.l.b16 %v739
        %v964 = vunpack.c.h.b16 %v739
        %v965 = vunpack.c.l.b16 %v740
        %v966 = vunpack.c.h.b16 %v740
        %v967 = vunpack.c.l.b16 %v741
        %v968 = vunpack.c.h.b16 %v741
        %v969 = vunpack.c.l.b16 %v742
        %v970 = vunpack.c.h.b16 %v742
        %v971 = vunpack.c.l.b16 %v743
        %v972 = vunpack.c.h.b16 %v743
        %v973 = vunpack.c.l.b16 %v744
        %v974 = vunpack.c.h.b16 %v744
        %v975 = vunpack.c.l.b16 %v745
        %v976 = vunpack.c.h.b16 %v745
        %v977 = vunpack.c.l.b16 %v746
        %v978 = vunpack.c.h.b16 %v746
        %v979 = vunpack.c.l.b16 %v747
        %v980 = vunpack.c.h.b16 %v747
        %v981 = vunpack.c.l.b16 %v748
        %v982 = vunpack.c.h.b16 %v748
        %v983 = vunpack.c.l.b16 %v749
        %v984 = vunpack.c.h.b16 %v749
        %v985 = vunpack.c.l.b16 %v750
        %v986 = vunpack.c.h.b16 %v750
        %v987 = vunpack.c.l.b16 %v751
        %v988 = vunpack.c.h.b16 %v751
        %v989 = vunpack.c.l.b16 %v752
        %v990 = vunpack.c.h.b16 %v752
        %v991 = vunpack.c.l.b16 %v753
        %v992 = vunpack.c.h.b16 %v753
        %v993 = vunpack.c.l.b16 %v754
        %v994 = vunpack.c.h.b16 %v754
        %v995 = vunpack.c.l.b16 %v755
        %v996 = vunpack.c.h.b16 %v755
        %v997 = vunpack.c.l.b16 %v756
        %v998 = vunpack.c.h.b16 %v756
        %v999 = vunpack.c.l.b16 %v757
        %v1000 = vunpack.c.h.b16 %v757
        %v1001 = vunpack.c.l.b16 %v758
        %v1002 = vunpack.c.h.b16 %v758
        %v1003 = vunpack.c.l.b16 %v759
        %v1004 = vunpack.c.h.b16 %v759
        %v1005 = vunpack.c.l.b16 %v760
        %v1006 = vunpack.c.h.b16 %v760
        %v1007 = vunpack.c.l.b16 %v761
        %v1008 = vunpack.c.h.b16 %v761
        %v1009 = vunpack.c.l.b16 %v762
        %v1010 = vunpack.c.h.b16 %v762
        %v1011 = vunpack.c.l.b16 %v763
        %v1012 = vunpack.c.h.b16 %v763
        %v1013 = vunpack.c.l.b16 %v764
        %v1014 = vunpack.c.h.b16 %v764
        %v1015 = vunpack.c.l.b16 %v765
        %v1016 = vunpack.c.h.b16 %v765
        %v1017 = vunpack.c.l.b16 %v766
        %v1018 = vunpack.c.h.b16 %v766
        %v1019 = vunpack.c.l.b16 %v767
        %v1020 = vunpack.c.h.b16 %v767
        %v1021 = vunpack.c.l.b16 %v768
        %v1022 = vunpack.c.h.b16 %v768
        %v1023 = vunpack.c.l.b16 %v769
        %v1024 = vunpack.c.h.b16 %v769
        %v1025 = vunpack.c.l.b16 %v770
        %v1026 = vunpack.c.h.b16 %v770
        %v1027 = vunpack.c.l.b16 %v771
        %v1028 = vunpack.c.h.b16 %v771
        %v1029 = vunpack.c.l.b16 %v772
        %v1030 = vunpack.c.h.b16 %v772
        %v1031 = vunpack.c.l.b16 %v773
        %v1032 = vunpack.c.h.b16 %v773
        %v1033 = vunpack.c.l.b16 %v774
        %v1034 = vunpack.c.h.b16 %v774
        %v1035 = vunpack.c.l.b16 %v775
        %v1036 = vunpack.c.h.b16 %v775
        %v1037 = vunpack.c.l.b16 %v776
        %v1038 = vunpack.c.h.b16 %v776
        %v1039 = vunpack.c.l.b16 %v777
        %v1040 = vunpack.c.h.b16 %v777
        %v1041 = vunpack.c.l.b16 %v778
        %v1042 = vunpack.c.h.b16 %v778
        %v1043 = vunpack.c.l.b16 %v779
        %v1044 = vunpack.c.h.b16 %v779
        %v1045 = vunpack.c.l.b16 %v780
        %v1046 = vunpack.c.h.b16 %v780
        %v1047 = vunpack.c.l.b16 %v781
        %v1048 = vunpack.c.h.b16 %v781
        %v1049 = vunpack.c.l.b16 %v782
        %v1050 = vunpack.c.h.b16 %v782
        %v1051 = vpack.c.b16 %v939, %v923
        %v1052 = vpack.c.b16 %v940, %v924
        %v1053 = vpack.c.b16 %v941, %v925
        %v1054 = vpack.c.b16 %v942, %v926
        %v1055 = vpack.c.b16 %v943, %v927
        %v1056 = vpack.c.b16 %v944, %v928
        %v1057 = vpack.c.b16 %v945, %v929
        %v1058 = vpack.c.b16 %v946, %v930
        %v1059 = vpack.c.b16 %v947, %v931
        %v1060 = vpack.c.b16 %v948, %v932
        %v1061 = vpack.c.b16 %v949, %v933
        %v1062 = vpack.c.b16 %v950, %v934
        %v1063 = vpack.c.b16 %v951, %v935
        %v1064 = vpack.c.b16 %v952, %v936
        %v1065 = vpack.c.b16 %v953, %v937
        %v1066 = vpack.c.b16 %v954, %v938
        %v1067 = vpack.c.b16 %v971, %v955
        %v1068 = vpack.c.b16 %v972, %v956
        %v1069 = vpack.c.b16 %v973, %v957
        %v1070 = vpack.c.b16 %v974, %v958
        %v1071 = vpack.c.b16 %v975, %v959
        %v1072 = vpack.c.b16 %v976, %v960
        %v1073 = vpack.c.b16 %v977, %v961
        %v1074 = vpack.c.b16 %v978, %v962
        %v1075 = vpack.c.b16 %v979, %v963
        %v1076 = vpack.c.b16 %v980, %v964
        %v1077 = vpack.c.b16 %v981, %v965
        %v1078 = vpack.c.b16 %v982, %v966
        %v1079 = vpack.c.b16 %v983, %v967
        %v1080 = vpack.c.b16 %v984, %v968
        %v1081 = vpack.c.b16 %v985, %v969
        %v1082 = vpack.c.b16 %v986, %v970
        %v1083 = vpack.c.b16 %v1003, %v987
        %v1084 = vpack.c.b16 %v1004, %v988
        %v1085 = vpack.c.b16 %v1005, %v989
        %v1086 = vpack.c.b16 %v1006, %v990
        %v1087 = vpack.c.b16 %v1007, %v991
        %v1088 = vpack.c.b16 %v1008, %v992
        %v1089 = vpack.c.b16 %v1009, %v993
        %v1090 = vpack.c.b16 %v1010, %v994
        %v1091 = vpack.c.b16 %v1011, %v995
        %v1092 = vpack.c.b16 %v1012, %v996
        %v1093 = vpack.c.b16 %v1013, %v997
        %v1094 = vpack.c.b16 %v1014, %v998
        %v1095 = vpack.c.b16 %v1015, %v999
        %v1096 = vpack.c.b16 %v1016, %v1000
        %v1097 = vpack.c.b16 %v1017, %v1001
        %v1098 = vpack.c.b16 %v1018, %v1002
        %v1099 = vpack.c.b16 %v1035, %v1019
        %v1100 = vpack.c.b16 %v1036, %v1020
        %v1101 = vpack.c.b16 %v1037, %v1021
        %v1102 = vpack.c.b16 %v1038, %v1022
        %v1103 = vpack.c.b16 %v1039, %v1023
        %v1104 = vpack.c.b16 %v1040, %v1024
        %v1105 = vpack.c.b16 %v1041, %v1025
        %v1106 = vpack.c.b16 %v1042, %v1026
        %v1107 = vpack.c.b16 %v1043, %v1027
        %v1108 = vpack.c.b16 %v1044, %v1028
        %v1109 = vpack.c.b16 %v1045, %v1029
        %v1110 = vpack.c.b16 %v1046, %v1030
        %v1111 = vpack.c.b16 %v1047, %v1031
        %v1112 = vpack.c.b16 %v1048, %v1032
        %v1113 = vpack.c.b16 %v1049, %v1033
        %v1114 = vpack.c.b16 %v1050, %v1034
        %vm1163 = vcmask 515072
        %v1165 = vsel %vm1163, %v855, 0
        %v1168 = vsel %vm1163, %v856, 0
        %v1171 = vsel %vm1163, %v857, 0
        %v1174 = vsel %vm1163, %v858, 0
        %vm1176 = vcmask 1046528
        %vm1177 = vcmask 1047552
        %v1178 = vsel %vm1176, 4294967295, 65535
        %v1179 = vsel %vm1177, %v1178, 0
        %v1181 = vand.u32 %v1099, %v1179
        %v1184 = vand.u32 %v1100, %v1179
        %v1187 = vand.u32 %v1101, %v1179
        %v1190 = vand.u32 %v1102, %v1179
        %v1193 = vand.u32 %v1103, %v1179
        %v1196 = vand.u32 %v1104, %v1179
        %v1199 = vand.u32 %v1105, %v1179
        %v1202 = vand.u32 %v1106, %v1179
        %v1205 = vand.u32 %v1107, %v1179
        %v1208 = vand.u32 %v1108, %v1179
        %v1211 = vand.u32 %v1109, %v1179
        %v1214 = vand.u32 %v1110, %v1179
        %v1217 = vand.u32 %v1111, %v1179
        %v1220 = vand.u32 %v1112, %v1179
        %v1223 = vand.u32 %v1113, %v1179
        %v1226 = vand.u32 %v1114, %v1179
        %1228 = vmatprep.subr.bf16.mxu0 %v1052
        %1229 = vmatpush1.bf16.msra.mxu0 %v1051
        %1230 = vmatprep.subr.bf16.mxu0 %v1068
        %1231 = vmatpush1.bf16.msra.mxu0 %v1067
        %1232 = vmatprep.subr.bf16.mxu0 %v1084
        %1233 = vmatpush1.bf16.msra.mxu0 %v1083
        %1234 = vmatprep.subr.bf16.mxu0 %v1184
        %1235 = vmatpush1.bf16.msra.mxu0 %v1181
        %1236 = vmatprep.subr.bf16.mxu0 0
        %1237 = vmatpush1.bf16.msra.mxu0 0
        %1238 = vmatprep.subr.bf16.mxu0 0
        %1239 = vmatpush1.bf16.msra.mxu0 0
        %1240 = vmatprep.subr.bf16.mxu0 0
        %1241 = vmatpush1.bf16.msra.mxu0 0
        %1242 = vmatprep.subr.bf16.mxu0 0
        %1243 = vmatpush1.bf16.msra.mxu0 0
        %1244 = vmatprep.subr.bf16.mxu0 0
        %1245 = vmatpush1.bf16.msra.mxu0 0
        %1246 = vmatprep.subr.bf16.mxu0 0
        %1247 = vmatpush1.bf16.msra.mxu0 0
        %1248 = vmatprep.subr.bf16.mxu0 0
        %1249 = vmatpush1.bf16.msra.mxu0 0
        %1250 = vmatprep.subr.bf16.mxu0 0
        %1251 = vmatpush1.bf16.msra.mxu0 0
        %1252 = vmatprep.subr.bf16.mxu0 0
        %1253 = vmatpush1.bf16.msra.mxu0 0
        %1254 = vmatprep.subr.bf16.mxu0 0
        %1255 = vmatpush1.bf16.msra.mxu0 0
        %1256 = vmatprep.subr.bf16.mxu0 0
        %1257 = vmatpush1.bf16.msra.mxu0 0
        %1258 = vmatprep.subr.bf16.mxu0 0
        %1259 = vmatpush1.bf16.msra.mxu0 0
        %1260 = vmatprep.mubr.bf16.mxu0 0
        %1261 = vmatmul.mubr.bf16.gmra.mrb[0].mxu0 %v1165
        %v1262 = vpop.f32.mrb[0].mxu0
        %v1263 = vadd.f32 %v802, %v1262
        %v1264 = vpop.f32.mrb[0].mxu0
        %v1265 = vadd.f32 %v802, %v1264
        %v1266 = vpop.f32.mrb[0].mxu0
        %v1267 = vadd.f32 %v807, %v1266
        %v1268 = vpop.f32.mrb[0].mxu0
        %v1269 = vadd.f32 %v807, %v1268
        %1270 = vmatprep.mubr.bf16.mxu0 0
        %1271 = vmatmul.mubr.bf16.gmra.mrb[0].mxu0 %v1168
        %v1272 = vpop.f32.mrb[0].mxu0
        %v1273 = vadd.f32 %v812, %v1272
        %v1274 = vpop.f32.mrb[0].mxu0
        %v1275 = vadd.f32 %v812, %v1274
        %v1276 = vpop.f32.mrb[0].mxu0
        %v1277 = vadd.f32 %v817, %v1276
        %v1278 = vpop.f32.mrb[0].mxu0
        %v1279 = vadd.f32 %v817, %v1278
        %1280 = vmatprep.mubr.bf16.mxu0 0
        %1281 = vmatmul.mubr.bf16.gmra.mrb[0].mxu0 %v1171
        %v1282 = vpop.f32.mrb[0].mxu0
        %v1283 = vadd.f32 %v822, %v1282
        %v1284 = vpop.f32.mrb[0].mxu0
        %v1285 = vadd.f32 %v822, %v1284
        %v1286 = vpop.f32.mrb[0].mxu0
        %v1287 = vadd.f32 %v827, %v1286
        %v1288 = vpop.f32.mrb[0].mxu0
        %v1289 = vadd.f32 %v827, %v1288
        %1290 = vmatprep.mubr.bf16.mxu0 0
        %1291 = vmatmul.mubr.bf16.gmra.mrb[0].mxu0 %v1174
        %v1292 = vpop.f32.mrb[0].mxu0
        %v1293 = vadd.f32 %v832, %v1292
        %v1294 = vpop.f32.mrb[0].mxu0
        %v1295 = vadd.f32 %v832, %v1294
        %v1296 = vpop.f32.mrb[0].mxu0
        %v1297 = vadd.f32 %v837, %v1296
        %v1298 = vpop.f32.mrb[0].mxu0
        %v1299 = vadd.f32 %v837, %v1298
        %1300 = vdwg.mxu0
        %1301 = vmatprep.subr.bf16.mxu0 %v1054
        %1302 = vmatpush1.bf16.msra.mxu0 %v1053
        %1303 = vmatprep.subr.bf16.mxu0 %v1070
        %1304 = vmatpush1.bf16.msra.mxu0 %v1069
        %1305 = vmatprep.subr.bf16.mxu0 %v1086
        %1306 = vmatpush1.bf16.msra.mxu0 %v1085
        %1307 = vmatprep.subr.bf16.mxu0 %v1190
        %1308 = vmatpush1.bf16.msra.mxu0 %v1187
        %1309 = vmatprep.subr.bf16.mxu0 0
        %1310 = vmatpush1.bf16.msra.mxu0 0
        %1311 = vmatprep.subr.bf16.mxu0 0
        %1312 = vmatpush1.bf16.msra.mxu0 0
        %1313 = vmatprep.subr.bf16.mxu0 0
        %1314 = vmatpush1.bf16.msra.mxu0 0
        %1315 = vmatprep.subr.bf16.mxu0 0
        %1316 = vmatpush1.bf16.msra.mxu0 0
        %1317 = vmatprep.subr.bf16.mxu0 0
        %1318 = vmatpush1.bf16.msra.mxu0 0
        %1319 = vmatprep.subr.bf16.mxu0 0
        %1320 = vmatpush1.bf16.msra.mxu0 0
        %1321 = vmatprep.subr.bf16.mxu0 0
        %1322 = vmatpush1.bf16.msra.mxu0 0
        %1323 = vmatprep.subr.bf16.mxu0 0
        %1324 = vmatpush1.bf16.msra.mxu0 0
        %1325 = vmatprep.subr.bf16.mxu0 0
        %1326 = vmatpush1.bf16.msra.mxu0 0
        %1327 = vmatprep.subr.bf16.mxu0 0
        %1328 = vmatpush1.bf16.msra.mxu0 0
        %1329 = vmatprep.subr.bf16.mxu0 0
        %1330 = vmatpush1.bf16.msra.mxu0 0
        %1331 = vmatprep.subr.bf16.mxu0 0
        %1332 = vmatpush1.bf16.msra.mxu0 0
        %1333 = vmatprep.mubr.bf16.mxu0 0
        %1334 = vmatmul.mubr.bf16.gmra.mrb[0].mxu0 %v1165
        %v1335 = vpop.f32.mrb[0].mxu0
        %v1336 = vadd.f32 %v802, %v1335
        %v1337 = vpop.f32.mrb[0].mxu0
        %v1338 = vadd.f32 %v802, %v1337
        %v1339 = vpop.f32.mrb[0].mxu0
        %v1340 = vadd.f32 %v807, %v1339
        %v1341 = vpop.f32.mrb[0].mxu0
        %v1342 = vadd.f32 %v807, %v1341
        %1343 = vmatprep.mubr.bf16.mxu0 0
        %1344 = vmatmul.mubr.bf16.gmra.mrb[0].mxu0 %v1168
        %v1345 = vpop.f32.mrb[0].mxu0
        %v1346 = vadd.f32 %v812, %v1345
        %v1347 = vpop.f32.mrb[0].mxu0
        %v1348 = vadd.f32 %v812, %v1347
        %v1349 = vpop.f32.mrb[0].mxu0
        %v1350 = vadd.f32 %v817, %v1349
        %v1351 = vpop.f32.mrb[0].mxu0
        %v1352 = vadd.f32 %v817, %v1351
        %1353 = vmatprep.mubr.bf16.mxu0 0
        %1354 = vmatmul.mubr.bf16.gmra.mrb[0].mxu0 %v1171
        %v1355 = vpop.f32.mrb[0].mxu0
        %v1356 = vadd.f32 %v822, %v1355
        %v1357 = vpop.f32.mrb[0].mxu0
        %v1358 = vadd.f32 %v822, %v1357
        %v1359 = vpop.f32.mrb[0].mxu0
        %v1360 = vadd.f32 %v827, %v1359
        %v1361 = vpop.f32.mrb[0].mxu0
        %v1362 = vadd.f32 %v827, %v1361
        %1363 = vmatprep.mubr.bf16.mxu0 0
        %1364 = vmatmul.mubr.bf16.gmra.mrb[0].mxu0 %v1174
        %v1365 = vpop.f32.mrb[0].mxu0
        %v1366 = vadd.f32 %v832, %v1365
        %v1367 = vpop.f32.mrb[0].mxu0
        %v1368 = vadd.f32 %v832, %v1367
        %v1369 = vpop.f32.mrb[0].mxu0
        %v1370 = vadd.f32 %v837, %v1369
        %v1371 = vpop.f32.mrb[0].mxu0
        %v1372 = vadd.f32 %v837, %v1371
        %1373 = vdwg.mxu0
        %1374 = vmatprep.subr.bf16.mxu0 %v1056
        %1375 = vmatpush1.bf16.msra.mxu0 %v1055
        %1376 = vmatprep.subr.bf16.mxu0 %v1072
        %1377 = vmatpush1.bf16.msra.mxu0 %v1071
        %1378 = vmatprep.subr.bf16.mxu0 %v1088
        %1379 = vmatpush1.bf16.msra.mxu0 %v1087
        %1380 = vmatprep.subr.bf16.mxu0 %v1196
        %1381 = vmatpush1.bf16.msra.mxu0 %v1193
        %1382 = vmatprep.subr.bf16.mxu0 0
        %1383 = vmatpush1.bf16.msra.mxu0 0
        %1384 = vmatprep.subr.bf16.mxu0 0
        %1385 = vmatpush1.bf16.msra.mxu0 0
        %1386 = vmatprep.subr.bf16.mxu0 0
        %1387 = vmatpush1.bf16.msra.mxu0 0
        %1388 = vmatprep.subr.bf16.mxu0 0
        %1389 = vmatpush1.bf16.msra.mxu0 0
        %1390 = vmatprep.subr.bf16.mxu0 0
        %1391 = vmatpush1.bf16.msra.mxu0 0
        %1392 = vmatprep.subr.bf16.mxu0 0
        %1393 = vmatpush1.bf16.msra.mxu0 0
        %1394 = vmatprep.subr.bf16.mxu0 0
        %1395 = vmatpush1.bf16.msra.mxu0 0
        %1396 = vmatprep.subr.bf16.mxu0 0
        %1397 = vmatpush1.bf16.msra.mxu0 0
        %1398 = vmatprep.subr.bf16.mxu0 0
        %1399 = vmatpush1.bf16.msra.mxu0 0
        %1400 = vmatprep.subr.bf16.mxu0 0
        %1401 = vmatpush1.bf16.msra.mxu0 0
        %1402 = vmatprep.subr.bf16.mxu0 0
        %1403 = vmatpush1.bf16.msra.mxu0 0
        %1404 = vmatprep.subr.bf16.mxu0 0
        %1405 = vmatpush1.bf16.msra.mxu0 0
        %1406 = vmatprep.mubr.bf16.mxu0 0
        %1407 = vmatmul.mubr.bf16.gmra.mrb[0].mxu0 %v1165
        %v1408 = vpop.f32.mrb[0].mxu0
        %v1409 = vadd.f32 %v802, %v1408
        %v1410 = vpop.f32.mrb[0].mxu0
        %v1411 = vadd.f32 %v802, %v1410
        %v1412 = vpop.f32.mrb[0].mxu0
        %v1413 = vadd.f32 %v807, %v1412
        %v1414 = vpop.f32.mrb[0].mxu0
        %v1415 = vadd.f32 %v807, %v1414
        %1416 = vmatprep.mubr.bf16.mxu0 0
        %1417 = vmatmul.mubr.bf16.gmra.mrb[0].mxu0 %v1168
        %v1418 = vpop.f32.mrb[0].mxu0
        %v1419 = vadd.f32 %v812, %v1418
        %v1420 = vpop.f32.mrb[0].mxu0
        %v1421 = vadd.f32 %v812, %v1420
        %v1422 = vpop.f32.mrb[0].mxu0
        %v1423 = vadd.f32 %v817, %v1422
        %v1424 = vpop.f32.mrb[0].mxu0
        %v1425 = vadd.f32 %v817, %v1424
        %1426 = vmatprep.mubr.bf16.mxu0 0
        %1427 = vmatmul.mubr.bf16.gmra.mrb[0].mxu0 %v1171
        %v1428 = vpop.f32.mrb[0].mxu0
        %v1429 = vadd.f32 %v822, %v1428
        %v1430 = vpop.f32.mrb[0].mxu0
        %v1431 = vadd.f32 %v822, %v1430
        %v1432 = vpop.f32.mrb[0].mxu0
        %v1433 = vadd.f32 %v827, %v1432
        %v1434 = vpop.f32.mrb[0].mxu0
        %v1435 = vadd.f32 %v827, %v1434
        %1436 = vmatprep.mubr.bf16.mxu0 0
        %1437 = vmatmul.mubr.bf16.gmra.mrb[0].mxu0 %v1174
        %v1438 = vpop.f32.mrb[0].mxu0
        %v1439 = vadd.f32 %v832, %v1438
        %v1440 = vpop.f32.mrb[0].mxu0
        %v1441 = vadd.f32 %v832, %v1440
        %v1442 = vpop.f32.mrb[0].mxu0
        %v1443 = vadd.f32 %v837, %v1442
        %v1444 = vpop.f32.mrb[0].mxu0
        %v1445 = vadd.f32 %v837, %v1444
        %1446 = vdwg.mxu0
        %1447 = vmatprep.subr.bf16.mxu0 %v1058
        %1448 = vmatpush1.bf16.msra.mxu0 %v1057
        %1449 = vmatprep.subr.bf16.mxu0 %v1074
        %1450 = vmatpush1.bf16.msra.mxu0 %v1073
        %1451 = vmatprep.subr.bf16.mxu0 %v1090
        %1452 = vmatpush1.bf16.msra.mxu0 %v1089
        %1453 = vmatprep.subr.bf16.mxu0 %v1202
        %1454 = vmatpush1.bf16.msra.mxu0 %v1199
        %1455 = vmatprep.subr.bf16.mxu0 0
        %1456 = vmatpush1.bf16.msra.mxu0 0
        %1457 = vmatprep.subr.bf16.mxu0 0
        %1458 = vmatpush1.bf16.msra.mxu0 0
        %1459 = vmatprep.subr.bf16.mxu0 0
        %1460 = vmatpush1.bf16.msra.mxu0 0
        %1461 = vmatprep.subr.bf16.mxu0 0
        %1462 = vmatpush1.bf16.msra.mxu0 0
        %1463 = vmatprep.subr.bf16.mxu0 0
        %1464 = vmatpush1.bf16.msra.mxu0 0
        %1465 = vmatprep.subr.bf16.mxu0 0
        %1466 = vmatpush1.bf16.msra.mxu0 0
        %1467 = vmatprep.subr.bf16.mxu0 0
        %1468 = vmatpush1.bf16.msra.mxu0 0
        %1469 = vmatprep.subr.bf16.mxu0 0
        %1470 = vmatpush1.bf16.msra.mxu0 0
        %1471 = vmatprep.subr.bf16.mxu0 0
        %1472 = vmatpush1.bf16.msra.mxu0 0
        %1473 = vmatprep.subr.bf16.mxu0 0
        %1474 = vmatpush1.bf16.msra.mxu0 0
        %1475 = vmatprep.subr.bf16.mxu0 0
        %1476 = vmatpush1.bf16.msra.mxu0 0
        %1477 = vmatprep.subr.bf16.mxu0 0
        %1478 = vmatpush1.bf16.msra.mxu0 0
        %1479 = vmatprep.mubr.bf16.mxu0 0
        %1480 = vmatmul.mubr.bf16.gmra.mrb[0].mxu0 %v1165
        %v1481 = vpop.f32.mrb[0].mxu0
        %v1482 = vadd.f32 %v802, %v1481
        %v1483 = vpop.f32.mrb[0].mxu0
        %v1484 = vadd.f32 %v802, %v1483
        %v1485 = vpop.f32.mrb[0].mxu0
        %v1486 = vadd.f32 %v807, %v1485
        %v1487 = vpop.f32.mrb[0].mxu0
        %v1488 = vadd.f32 %v807, %v1487
        %1489 = vmatprep.mubr.bf16.mxu0 0
        %1490 = vmatmul.mubr.bf16.gmra.mrb[0].mxu0 %v1168
        %v1491 = vpop.f32.mrb[0].mxu0
        %v1492 = vadd.f32 %v812, %v1491
        %v1493 = vpop.f32.mrb[0].mxu0
        %v1494 = vadd.f32 %v812, %v1493
        %v1495 = vpop.f32.mrb[0].mxu0
        %v1496 = vadd.f32 %v817, %v1495
        %v1497 = vpop.f32.mrb[0].mxu0
        %v1498 = vadd.f32 %v817, %v1497
        %1499 = vmatprep.mubr.bf16.mxu0 0
        %1500 = vmatmul.mubr.bf16.gmra.mrb[0].mxu0 %v1171
        %v1501 = vpop.f32.mrb[0].mxu0
        %v1502 = vadd.f32 %v822, %v1501
        %v1503 = vpop.f32.mrb[0].mxu0
        %v1504 = vadd.f32 %v822, %v1503
        %v1505 = vpop.f32.mrb[0].mxu0
        %v1506 = vadd.f32 %v827, %v1505
        %v1507 = vpop.f32.mrb[0].mxu0
        %v1508 = vadd.f32 %v827, %v1507
        %1509 = vmatprep.mubr.bf16.mxu0 0
        %1510 = vmatmul.mubr.bf16.gmra.mrb[0].mxu0 %v1174
        %v1511 = vpop.f32.mrb[0].mxu0
        %v1512 = vadd.f32 %v832, %v1511
        %v1513 = vpop.f32.mrb[0].mxu0
        %v1514 = vadd.f32 %v832, %v1513
        %v1515 = vpop.f32.mrb[0].mxu0
        %v1516 = vadd.f32 %v837, %v1515
        %v1517 = vpop.f32.mrb[0].mxu0
        %v1518 = vadd.f32 %v837, %v1517
        %1519 = vdwg.mxu0
        %1520 = vmatprep.subr.bf16.mxu0 %v1060
        %1521 = vmatpush1.bf16.msra.mxu0 %v1059
        %1522 = vmatprep.subr.bf16.mxu0 %v1076
        %1523 = vmatpush1.bf16.msra.mxu0 %v1075
        %1524 = vmatprep.subr.bf16.mxu0 %v1092
        %1525 = vmatpush1.bf16.msra.mxu0 %v1091
        %1526 = vmatprep.subr.bf16.mxu0 %v1208
        %1527 = vmatpush1.bf16.msra.mxu0 %v1205
        %1528 = vmatprep.subr.bf16.mxu0 0
        %1529 = vmatpush1.bf16.msra.mxu0 0
        %1530 = vmatprep.subr.bf16.mxu0 0
        %1531 = vmatpush1.bf16.msra.mxu0 0
        %1532 = vmatprep.subr.bf16.mxu0 0
        %1533 = vmatpush1.bf16.msra.mxu0 0
        %1534 = vmatprep.subr.bf16.mxu0 0
        %1535 = vmatpush1.bf16.msra.mxu0 0
        %1536 = vmatprep.subr.bf16.mxu0 0
        %1537 = vmatpush1.bf16.msra.mxu0 0
        %1538 = vmatprep.subr.bf16.mxu0 0
        %1539 = vmatpush1.bf16.msra.mxu0 0
        %1540 = vmatprep.subr.bf16.mxu0 0
        %1541 = vmatpush1.bf16.msra.mxu0 0
        %1542 = vmatprep.subr.bf16.mxu0 0
        %1543 = vmatpush1.bf16.msra.mxu0 0
        %1544 = vmatprep.subr.bf16.mxu0 0
        %1545 = vmatpush1.bf16.msra.mxu0 0
        %1546 = vmatprep.subr.bf16.mxu0 0
        %1547 = vmatpush1.bf16.msra.mxu0 0
        %1548 = vmatprep.subr.bf16.mxu0 0
        %1549 = vmatpush1.bf16.msra.mxu0 0
        %1550 = vmatprep.subr.bf16.mxu0 0
        %1551 = vmatpush1.bf16.msra.mxu0 0
        %1552 = vmatprep.mubr.bf16.mxu0 0
        %1553 = vmatmul.mubr.bf16.gmra.mrb[0].mxu0 %v1165
        %v1554 = vpop.f32.mrb[0].mxu0
        %v1555 = vadd.f32 %v802, %v1554
        %v1556 = vpop.f32.mrb[0].mxu0
        %v1557 = vadd.f32 %v802, %v1556
        %v1558 = vpop.f32.mrb[0].mxu0
        %v1559 = vadd.f32 %v807, %v1558
        %v1560 = vpop.f32.mrb[0].mxu0
        %v1561 = vadd.f32 %v807, %v1560
        %1562 = vmatprep.mubr.bf16.mxu0 0
        %1563 = vmatmul.mubr.bf16.gmra.mrb[0].mxu0 %v1168
        %v1564 = vpop.f32.mrb[0].mxu0
        %v1565 = vadd.f32 %v812, %v1564
        %v1566 = vpop.f32.mrb[0].mxu0
        %v1567 = vadd.f32 %v812, %v1566
        %v1568 = vpop.f32.mrb[0].mxu0
        %v1569 = vadd.f32 %v817, %v1568
        %v1570 = vpop.f32.mrb[0].mxu0
        %v1571 = vadd.f32 %v817, %v1570
        %1572 = vmatprep.mubr.bf16.mxu0 0
        %1573 = vmatmul.mubr.bf16.gmra.mrb[0].mxu0 %v1171
        %v1574 = vpop.f32.mrb[0].mxu0
        %v1575 = vadd.f32 %v822, %v1574
        %v1576 = vpop.f32.mrb[0].mxu0
        %v1577 = vadd.f32 %v822, %v1576
        %v1578 = vpop.f32.mrb[0].mxu0
        %v1579 = vadd.f32 %v827, %v1578
        %v1580 = vpop.f32.mrb[0].mxu0
        %v1581 = vadd.f32 %v827, %v1580
        %1582 = vmatprep.mubr.bf16.mxu0 0
        %1583 = vmatmul.mubr.bf16.gmra.mrb[0].mxu0 %v1174
        %v1584 = vpop.f32.mrb[0].mxu0
        %v1585 = vadd.f32 %v832, %v1584
        %v1586 = vpop.f32.mrb[0].mxu0
        %v1587 = vadd.f32 %v832, %v1586
        %v1588 = vpop.f32.mrb[0].mxu0
        %v1589 = vadd.f32 %v837, %v1588
        %v1590 = vpop.f32.mrb[0].mxu0
        %v1591 = vadd.f32 %v837, %v1590
        %1592 = vdwg.mxu0
        %1593 = vmatprep.subr.bf16.mxu0 %v1062
        %1594 = vmatpush1.bf16.msra.mxu0 %v1061
        %1595 = vmatprep.subr.bf16.mxu0 %v1078
        %1596 = vmatpush1.bf16.msra.mxu0 %v1077
        %1597 = vmatprep.subr.bf16.mxu0 %v1094
        %1598 = vmatpush1.bf16.msra.mxu0 %v1093
        %1599 = vmatprep.subr.bf16.mxu0 %v1214
        %1600 = vmatpush1.bf16.msra.mxu0 %v1211
        %1601 = vmatprep.subr.bf16.mxu0 0
        %1602 = vmatpush1.bf16.msra.mxu0 0
        %1603 = vmatprep.subr.bf16.mxu0 0
        %1604 = vmatpush1.bf16.msra.mxu0 0
        %1605 = vmatprep.subr.bf16.mxu0 0
        %1606 = vmatpush1.bf16.msra.mxu0 0
        %1607 = vmatprep.subr.bf16.mxu0 0
        %1608 = vmatpush1.bf16.msra.mxu0 0
        %1609 = vmatprep.subr.bf16.mxu0 0
        %1610 = vmatpush1.bf16.msra.mxu0 0
        %1611 = vmatprep.subr.bf16.mxu0 0
        %1612 = vmatpush1.bf16.msra.mxu0 0
        %1613 = vmatprep.subr.bf16.mxu0 0
        %1614 = vmatpush1.bf16.msra.mxu0 0
        %1615 = vmatprep.subr.bf16.mxu0 0
        %1616 = vmatpush1.bf16.msra.mxu0 0
        %1617 = vmatprep.subr.bf16.mxu0 0
        %1618 = vmatpush1.bf16.msra.mxu0 0
        %1619 = vmatprep.subr.bf16.mxu0 0
        %1620 = vmatpush1.bf16.msra.mxu0 0
        %1621 = vmatprep.subr.bf16.mxu0 0
        %1622 = vmatpush1.bf16.msra.mxu0 0
        %1623 = vmatprep.subr.bf16.mxu0 0
        %1624 = vmatpush1.bf16.msra.mxu0 0
        %1625 = vmatprep.mubr.bf16.mxu0 0
        %1626 = vmatmul.mubr.bf16.gmra.mrb[0].mxu0 %v1165
        %v1627 = vpop.f32.mrb[0].mxu0
        %v1628 = vadd.f32 %v802, %v1627
        %v1629 = vpop.f32.mrb[0].mxu0
        %v1630 = vadd.f32 %v802, %v1629
        %v1631 = vpop.f32.mrb[0].mxu0
        %v1632 = vadd.f32 %v807, %v1631
        %v1633 = vpop.f32.mrb[0].mxu0
        %v1634 = vadd.f32 %v807, %v1633
        %1635 = vmatprep.mubr.bf16.mxu0 0
        %1636 = vmatmul.mubr.bf16.gmra.mrb[0].mxu0 %v1168
        %v1637 = vpop.f32.mrb[0].mxu0
        %v1638 = vadd.f32 %v812, %v1637
        %v1639 = vpop.f32.mrb[0].mxu0
        %v1640 = vadd.f32 %v812, %v1639
        %v1641 = vpop.f32.mrb[0].mxu0
        %v1642 = vadd.f32 %v817, %v1641
        %v1643 = vpop.f32.mrb[0].mxu0
        %v1644 = vadd.f32 %v817, %v1643
        %1645 = vmatprep.mubr.bf16.mxu0 0
        %1646 = vmatmul.mubr.bf16.gmra.mrb[0].mxu0 %v1171
        %v1647 = vpop.f32.mrb[0].mxu0
        %v1648 = vadd.f32 %v822, %v1647
        %v1649 = vpop.f32.mrb[0].mxu0
        %v1650 = vadd.f32 %v822, %v1649
        %v1651 = vpop.f32.mrb[0].mxu0
        %v1652 = vadd.f32 %v827, %v1651
        %v1653 = vpop.f32.mrb[0].mxu0
        %v1654 = vadd.f32 %v827, %v1653
        %1655 = vmatprep.mubr.bf16.mxu0 0
        %1656 = vmatmul.mubr.bf16.gmra.mrb[0].mxu0 %v1174
        %v1657 = vpop.f32.mrb[0].mxu0
        %v1658 = vadd.f32 %v832, %v1657
        %v1659 = vpop.f32.mrb[0].mxu0
        %v1660 = vadd.f32 %v832, %v1659
        %v1661 = vpop.f32.mrb[0].mxu0
        %v1662 = vadd.f32 %v837, %v1661
        %v1663 = vpop.f32.mrb[0].mxu0
        %v1664 = vadd.f32 %v837, %v1663
        %1665 = vdwg.mxu0
        %1666 = vmatprep.subr.bf16.mxu0 %v1064
        %1667 = vmatpush1.bf16.msra.mxu0 %v1063
        %1668 = vmatprep.subr.bf16.mxu0 %v1080
        %1669 = vmatpush1.bf16.msra.mxu0 %v1079
        %1670 = vmatprep.subr.bf16.mxu0 %v1096
        %1671 = vmatpush1.bf16.msra.mxu0 %v1095
        %1672 = vmatprep.subr.bf16.mxu0 %v1220
        %1673 = vmatpush1.bf16.msra.mxu0 %v1217
        %1674 = vmatprep.subr.bf16.mxu0 0
        %1675 = vmatpush1.bf16.msra.mxu0 0
        %1676 = vmatprep.subr.bf16.mxu0 0
        %1677 = vmatpush1.bf16.msra.mxu0 0
        %1678 = vmatprep.subr.bf16.mxu0 0
        %1679 = vmatpush1.bf16.msra.mxu0 0
        %1680 = vmatprep.subr.bf16.mxu0 0
        %1681 = vmatpush1.bf16.msra.mxu0 0
        %1682 = vmatprep.subr.bf16.mxu0 0
        %1683 = vmatpush1.bf16.msra.mxu0 0
        %1684 = vmatprep.subr.bf16.mxu0 0
        %1685 = vmatpush1.bf16.msra.mxu0 0
        %1686 = vmatprep.subr.bf16.mxu0 0
        %1687 = vmatpush1.bf16.msra.mxu0 0
        %1688 = vmatprep.subr.bf16.mxu0 0
        %1689 = vmatpush1.bf16.msra.mxu0 0
        %1690 = vmatprep.subr.bf16.mxu0 0
        %1691 = vmatpush1.bf16.msra.mxu0 0
        %1692 = vmatprep.subr.bf16.mxu0 0
        %1693 = vmatpush1.bf16.msra.mxu0 0
        %1694 = vmatprep.subr.bf16.mxu0 0
        %1695 = vmatpush1.bf16.msra.mxu0 0
        %1696 = vmatprep.subr.bf16.mxu0 0
        %1697 = vmatpush1.bf16.msra.mxu0 0
        %1698 = vmatprep.mubr.bf16.mxu0 0
        %1699 = vmatmul.mubr.bf16.gmra.mrb[0].mxu0 %v1165
        %v1700 = vpop.f32.mrb[0].mxu0
        %v1701 = vadd.f32 %v802, %v1700
        %v1702 = vpop.f32.mrb[0].mxu0
        %v1703 = vadd.f32 %v802, %v1702
        %v1704 = vpop.f32.mrb[0].mxu0
        %v1705 = vadd.f32 %v807, %v1704
        %v1706 = vpop.f32.mrb[0].mxu0
        %v1707 = vadd.f32 %v807, %v1706
        %1708 = vmatprep.mubr.bf16.mxu0 0
        %1709 = vmatmul.mubr.bf16.gmra.mrb[0].mxu0 %v1168
        %v1710 = vpop.f32.mrb[0].mxu0
        %v1711 = vadd.f32 %v812, %v1710
        %v1712 = vpop.f32.mrb[0].mxu0
        %v1713 = vadd.f32 %v812, %v1712
        %v1714 = vpop.f32.mrb[0].mxu0
        %v1715 = vadd.f32 %v817, %v1714
        %v1716 = vpop.f32.mrb[0].mxu0
        %v1717 = vadd.f32 %v817, %v1716
        %1718 = vmatprep.mubr.bf16.mxu0 0
        %1719 = vmatmul.mubr.bf16.gmra.mrb[0].mxu0 %v1171
        %v1720 = vpop.f32.mrb[0].mxu0
        %v1721 = vadd.f32 %v822, %v1720
        %v1722 = vpop.f32.mrb[0].mxu0
        %v1723 = vadd.f32 %v822, %v1722
        %v1724 = vpop.f32.mrb[0].mxu0
        %v1725 = vadd.f32 %v827, %v1724
        %v1726 = vpop.f32.mrb[0].mxu0
        %v1727 = vadd.f32 %v827, %v1726
        %1728 = vmatprep.mubr.bf16.mxu0 0
        %1729 = vmatmul.mubr.bf16.gmra.mrb[0].mxu0 %v1174
        %v1730 = vpop.f32.mrb[0].mxu0
        %v1731 = vadd.f32 %v832, %v1730
        %v1732 = vpop.f32.mrb[0].mxu0
        %v1733 = vadd.f32 %v832, %v1732
        %v1734 = vpop.f32.mrb[0].mxu0
        %v1735 = vadd.f32 %v837, %v1734
        %v1736 = vpop.f32.mrb[0].mxu0
        %v1737 = vadd.f32 %v837, %v1736
        %1738 = vdwg.mxu0
        %1739 = vmatprep.subr.bf16.mxu0 %v1066
        %1740 = vmatpush1.bf16.msra.mxu0 %v1065
        %1741 = vmatprep.subr.bf16.mxu0 %v1082
        %1742 = vmatpush1.bf16.msra.mxu0 %v1081
        %1743 = vmatprep.subr.bf16.mxu0 %v1098
        %1744 = vmatpush1.bf16.msra.mxu0 %v1097
        %1745 = vmatprep.subr.bf16.mxu0 %v1226
        %1746 = vmatpush1.bf16.msra.mxu0 %v1223
        %1747 = vmatprep.subr.bf16.mxu0 0
        %1748 = vmatpush1.bf16.msra.mxu0 0
        %1749 = vmatprep.subr.bf16.mxu0 0
        %1750 = vmatpush1.bf16.msra.mxu0 0
        %1751 = vmatprep.subr.bf16.mxu0 0
        %1752 = vmatpush1.bf16.msra.mxu0 0
        %1753 = vmatprep.subr.bf16.mxu0 0
        %1754 = vmatpush1.bf16.msra.mxu0 0
        %1755 = vmatprep.subr.bf16.mxu0 0
        %1756 = vmatpush1.bf16.msra.mxu0 0
        %1757 = vmatprep.subr.bf16.mxu0 0
        %1758 = vmatpush1.bf16.msra.mxu0 0
        %1759 = vmatprep.subr.bf16.mxu0 0
        %1760 = vmatpush1.bf16.msra.mxu0 0
        %1761 = vmatprep.subr.bf16.mxu0 0
        %1762 = vmatpush1.bf16.msra.mxu0 0
        %1763 = vmatprep.subr.bf16.mxu0 0
        %1764 = vmatpush1.bf16.msra.mxu0 0
        %1765 = vmatprep.subr.bf16.mxu0 0
        %1766 = vmatpush1.bf16.msra.mxu0 0
        %1767 = vmatprep.subr.bf16.mxu0 0
        %1768 = vmatpush1.bf16.msra.mxu0 0
        %1769 = vmatprep.subr.bf16.mxu0 0
        %1770 = vmatpush1.bf16.msra.mxu0 0
        %1771 = vmatprep.mubr.bf16.mxu0 0
        %1772 = vmatmul.mubr.bf16.gmra.mrb[0].mxu0 %v1165
        %v1773 = vpop.f32.mrb[0].mxu0
        %v1774 = vadd.f32 %v802, %v1773
        %v1775 = vpop.f32.mrb[0].mxu0
        %v1776 = vadd.f32 %v802, %v1775
        %v1777 = vpop.f32.mrb[0].mxu0
        %v1778 = vadd.f32 %v807, %v1777
        %v1779 = vpop.f32.mrb[0].mxu0
        %v1780 = vadd.f32 %v807, %v1779
        %1781 = vmatprep.mubr.bf16.mxu0 0
        %1782 = vmatmul.mubr.bf16.gmra.mrb[0].mxu0 %v1168
        %v1783 = vpop.f32.mrb[0].mxu0
        %v1784 = vadd.f32 %v812, %v1783
        %v1785 = vpop.f32.mrb[0].mxu0
        %v1786 = vadd.f32 %v812, %v1785
        %v1787 = vpop.f32.mrb[0].mxu0
        %v1788 = vadd.f32 %v817, %v1787
        %v1789 = vpop.f32.mrb[0].mxu0
        %v1790 = vadd.f32 %v817, %v1789
        %1791 = vmatprep.mubr.bf16.mxu0 0
        %1792 = vmatmul.mubr.bf16.gmra.mrb[0].mxu0 %v1171
        %v1793 = vpop.f32.mrb[0].mxu0
        %v1794 = vadd.f32 %v822, %v1793
        %v1795 = vpop.f32.mrb[0].mxu0
        %v1796 = vadd.f32 %v822, %v1795
        %v1797 = vpop.f32.mrb[0].mxu0
        %v1798 = vadd.f32 %v827, %v1797
        %v1799 = vpop.f32.mrb[0].mxu0
        %v1800 = vadd.f32 %v827, %v1799
        %1801 = vmatprep.mubr.bf16.mxu0 0
        %1802 = vmatmul.mubr.bf16.gmra.mrb[0].mxu0 %v1174
        %v1803 = vpop.f32.mrb[0].mxu0
        %v1804 = vadd.f32 %v832, %v1803
        %v1805 = vpop.f32.mrb[0].mxu0
        %v1806 = vadd.f32 %v832, %v1805
        %v1807 = vpop.f32.mrb[0].mxu0
        %v1808 = vadd.f32 %v837, %v1807
        %v1809 = vpop.f32.mrb[0].mxu0
        %v1810 = vadd.f32 %v837, %v1809
        %1811 = vdwg.mxu0
        %v1812 = vmax.f32 %v1263, 0.0
        %v1813 = vmax.f32 %v1265, 0.0
        %v1814 = vmax.f32 %v1336, 0.0
        %v1815 = vmax.f32 %v1338, 0.0
        %v1816 = vmax.f32 %v1409, 0.0
        %v1817 = vmax.f32 %v1411, 0.0
        %v1818 = vmax.f32 %v1482, 0.0
        %v1819 = vmax.f32 %v1484, 0.0
        %v1820 = vmax.f32 %v1555, 0.0
        %v1821 = vmax.f32 %v1557, 0.0
        %v1822 = vmax.f32 %v1628, 0.0
        %v1823 = vmax.f32 %v1630, 0.0
        %v1824 = vmax.f32 %v1701, 0.0
        %v1825 = vmax.f32 %v1703, 0.0
        %v1826 = vmax.f32 %v1774, 0.0
        %v1827 = vmax.f32 %v1776, 0.0
        %v1828 = vmax.f32 %v1267, 0.0
        %v1829 = vmax.f32 %v1269, 0.0
        %v1830 = vmax.f32 %v1340, 0.0
        %v1831 = vmax.f32 %v1342, 0.0
        %v1832 = vmax.f32 %v1413, 0.0
        %v1833 = vmax.f32 %v1415, 0.0
        %v1834 = vmax.f32 %v1486, 0.0
        %v1835 = vmax.f32 %v1488, 0.0
        %v1836 = vmax.f32 %v1559, 0.0
        %v1837 = vmax.f32 %v1561, 0.0
        %v1838 = vmax.f32 %v1632, 0.0
        %v1839 = vmax.f32 %v1634, 0.0
        %v1840 = vmax.f32 %v1705, 0.0
        %v1841 = vmax.f32 %v1707, 0.0
        %v1842 = vmax.f32 %v1778, 0.0
        %v1843 = vmax.f32 %v1780, 0.0
        %v1844 = vmax.f32 %v1273, 0.0
        %v1845 = vmax.f32 %v1275, 0.0
        %v1846 = vmax.f32 %v1346, 0.0
        %v1847 = vmax.f32 %v1348, 0.0
        %v1848 = vmax.f32 %v1419, 0.0
        %v1849 = vmax.f32 %v1421, 0.0
        %v1850 = vmax.f32 %v1492, 0.0
        %v1851 = vmax.f32 %v1494, 0.0
        %v1852 = vmax.f32 %v1565, 0.0
        %v1853 = vmax.f32 %v1567, 0.0
        %v1854 = vmax.f32 %v1638, 0.0
        %v1855 = vmax.f32 %v1640, 0.0
        %v1856 = vmax.f32 %v1711, 0.0
        %v1857 = vmax.f32 %v1713, 0.0
        %v1858 = vmax.f32 %v1784, 0.0
        %v1859 = vmax.f32 %v1786, 0.0
        %v1860 = vmax.f32 %v1277, 0.0
        %v1861 = vmax.f32 %v1279, 0.0
        %v1862 = vmax.f32 %v1350, 0.0
        %v1863 = vmax.f32 %v1352, 0.0
        %v1864 = vmax.f32 %v1423, 0.0
        %v1865 = vmax.f32 %v1425, 0.0
        %v1866 = vmax.f32 %v1496, 0.0
        %v1867 = vmax.f32 %v1498, 0.0
        %v1868 = vmax.f32 %v1569, 0.0
        %v1869 = vmax.f32 %v1571, 0.0
        %v1870 = vmax.f32 %v1642, 0.0
        %v1871 = vmax.f32 %v1644, 0.0
        %v1872 = vmax.f32 %v1715, 0.0
        %v1873 = vmax.f32 %v1717, 0.0
        %v1874 = vmax.f32 %v1788, 0.0
        %v1875 = vmax.f32 %v1790, 0.0
        %v1876 = vmax.f32 %v1283, 0.0
        %v1877 = vmax.f32 %v1285, 0.0
        %v1878 = vmax.f32 %v1356, 0.0
        %v1879 = vmax.f32 %v1358, 0.0
        %v1880 = vmax.f32 %v1429, 0.0
        %v1881 = vmax.f32 %v1431, 0.0
        %v1882 = vmax.f32 %v1502, 0.0
        %v1883 = vmax.f32 %v1504, 0.0
        %v1884 = vmax.f32 %v1575, 0.0
        %v1885 = vmax.f32 %v1577, 0.0
        %v1886 = vmax.f32 %v1648, 0.0
        %v1887 = vmax.f32 %v1650, 0.0
        %v1888 = vmax.f32 %v1721, 0.0
        %v1889 = vmax.f32 %v1723, 0.0
        %v1890 = vmax.f32 %v1794, 0.0
        %v1891 = vmax.f32 %v1796, 0.0
        %v1892 = vmax.f32 %v1287, 0.0
        %v1893 = vmax.f32 %v1289, 0.0
        %v1894 = vmax.f32 %v1360, 0.0
        %v1895 = vmax.f32 %v1362, 0.0
        %v1896 = vmax.f32 %v1433, 0.0
        %v1897 = vmax.f32 %v1435, 0.0
        %v1898 = vmax.f32 %v1506, 0.0
        %v1899 = vmax.f32 %v1508, 0.0
        %v1900 = vmax.f32 %v1579, 0.0
        %v1901 = vmax.f32 %v1581, 0.0
        %v1902 = vmax.f32 %v1652, 0.0
        %v1903 = vmax.f32 %v1654, 0.0
        %v1904 = vmax.f32 %v1725, 0.0
        %v1905 = vmax.f32 %v1727, 0.0
        %v1906 = vmax.f32 %v1798, 0.0
        %v1907 = vmax.f32 %v1800, 0.0
        %v1908 = vmax.f32 %v1293, 0.0
        %v1909 = vmax.f32 %v1295, 0.0
        %v1910 = vmax.f32 %v1366, 0.0
        %v1911 = vmax.f32 %v1368, 0.0
        %v1912 = vmax.f32 %v1439, 0.0
        %v1913 = vmax.f32 %v1441, 0.0
        %v1914 = vmax.f32 %v1512, 0.0
        %v1915 = vmax.f32 %v1514, 0.0
        %v1916 = vmax.f32 %v1585, 0.0
        %v1917 = vmax.f32 %v1587, 0.0
        %v1918 = vmax.f32 %v1658, 0.0
        %v1919 = vmax.f32 %v1660, 0.0
        %v1920 = vmax.f32 %v1731, 0.0
        %v1921 = vmax.f32 %v1733, 0.0
        %v1922 = vmax.f32 %v1804, 0.0
        %v1923 = vmax.f32 %v1806, 0.0
        %v1924 = vmax.f32 %v1297, 0.0
        %v1925 = vmax.f32 %v1299, 0.0
        %v1926 = vmax.f32 %v1370, 0.0
        %v1927 = vmax.f32 %v1372, 0.0
        %v1928 = vmax.f32 %v1443, 0.0
        %v1929 = vmax.f32 %v1445, 0.0
        %v1930 = vmax.f32 %v1516, 0.0
        %v1931 = vmax.f32 %v1518, 0.0
        %v1932 = vmax.f32 %v1589, 0.0
        %v1933 = vmax.f32 %v1591, 0.0
        %v1934 = vmax.f32 %v1662, 0.0
        %v1935 = vmax.f32 %v1664, 0.0
        %v1936 = vmax.f32 %v1735, 0.0
        %v1937 = vmax.f32 %v1737, 0.0
        %v1938 = vmax.f32 %v1808, 0.0
        %v1939 = vmax.f32 %v1810, 0.0
        %v1940 = vld [vmem:[%s6] sm:$0xf]
        %v1941 = vld [vmem:[%s6 + $0x4] sm:$0xf]
        %v1942 = vld [vmem:[%s6 + $0x8] sm:$0xf]
        %v1943 = vld [vmem:[%s6 + $0xc] sm:$0xf]
        %v1944 = vld [vmem:[%s6 + $0x10] sm:$0xf]
        %v1945 = vld [vmem:[%s6 + $0x14] sm:$0xf]
        %v1946 = vld [vmem:[%s6 + $0x18] sm:$0xf]
        %v1947 = vld [vmem:[%s6 + $0x1c] sm:$0xf]
        %v1948 = vpack.c.bf16 %v1828, %v1812
        %v1949 = vpack.c.bf16 %v1829, %v1813
        %v1950 = vpack.c.bf16 %v1830, %v1814
        %v1951 = vpack.c.bf16 %v1831, %v1815
        %v1952 = vpack.c.bf16 %v1832, %v1816
        %v1953 = vpack.c.bf16 %v1833, %v1817
        %v1954 = vpack.c.bf16 %v1834, %v1818
        %v1955 = vpack.c.bf16 %v1835, %v1819
        %v1956 = vpack.c.bf16 %v1836, %v1820
        %v1957 = vpack.c.bf16 %v1837, %v1821
        %v1958 = vpack.c.bf16 %v1838, %v1822
        %v1959 = vpack.c.bf16 %v1839, %v1823
        %v1960 = vpack.c.bf16 %v1840, %v1824
        %v1961 = vpack.c.bf16 %v1841, %v1825
        %v1962 = vpack.c.bf16 %v1842, %v1826
        %v1963 = vpack.c.bf16 %v1843, %v1827
        %v1964 = vpack.c.bf16 %v1860, %v1844
        %v1965 = vpack.c.bf16 %v1861, %v1845
        %v1966 = vpack.c.bf16 %v1862, %v1846
        %v1967 = vpack.c.bf16 %v1863, %v1847
        %v1968 = vpack.c.bf16 %v1864, %v1848
        %v1969 = vpack.c.bf16 %v1865, %v1849
        %v1970 = vpack.c.bf16 %v1866, %v1850
        %v1971 = vpack.c.bf16 %v1867, %v1851
        %v1972 = vpack.c.bf16 %v1868, %v1852
        %v1973 = vpack.c.bf16 %v1869, %v1853
        %v1974 = vpack.c.bf16 %v1870, %v1854
        %v1975 = vpack.c.bf16 %v1871, %v1855
        %v1976 = vpack.c.bf16 %v1872, %v1856
        %v1977 = vpack.c.bf16 %v1873, %v1857
        %v1978 = vpack.c.bf16 %v1874, %v1858
        %v1979 = vpack.c.bf16 %v1875, %v1859
        %v1980 = vpack.c.bf16 %v1892, %v1876
        %v1981 = vpack.c.bf16 %v1893, %v1877
        %v1982 = vpack.c.bf16 %v1894, %v1878
        %v1983 = vpack.c.bf16 %v1895, %v1879
        %v1984 = vpack.c.bf16 %v1896, %v1880
        %v1985 = vpack.c.bf16 %v1897, %v1881
        %v1986 = vpack.c.bf16 %v1898, %v1882
        %v1987 = vpack.c.bf16 %v1899, %v1883
        %v1988 = vpack.c.bf16 %v1900, %v1884
        %v1989 = vpack.c.bf16 %v1901, %v1885
        %v1990 = vpack.c.bf16 %v1902, %v1886
        %v1991 = vpack.c.bf16 %v1903, %v1887
        %v1992 = vpack.c.bf16 %v1904, %v1888
        %v1993 = vpack.c.bf16 %v1905, %v1889
        %v1994 = vpack.c.bf16 %v1906, %v1890
        %v1995 = vpack.c.bf16 %v1907, %v1891
        %v1996 = vpack.c.bf16 %v1924, %v1908
        %v1997 = vpack.c.bf16 %v1925, %v1909
        %v1998 = vpack.c.bf16 %v1926, %v1910
        %v1999 = vpack.c.bf16 %v1927, %v1911
        %v2000 = vpack.c.bf16 %v1928, %v1912
        %v2001 = vpack.c.bf16 %v1929, %v1913
        %v2002 = vpack.c.bf16 %v1930, %v1914
        %v2003 = vpack.c.bf16 %v1931, %v1915
        %v2004 = vpack.c.bf16 %v1932, %v1916
        %v2005 = vpack.c.bf16 %v1933, %v1917
        %v2006 = vpack.c.bf16 %v1934, %v1918
        %v2007 = vpack.c.bf16 %v1935, %v1919
        %v2008 = vpack.c.bf16 %v1936, %v1920
        %v2009 = vpack.c.bf16 %v1937, %v1921
        %v2010 = vpack.c.bf16 %v1938, %v1922
        %v2011 = vpack.c.bf16 %v1939, %v1923
        %v2012 = vld [vmem:[%s7] sm:$0xff]
        %v2013 = vld [vmem:[%s7 + $0x8] sm:$0xff]
        %v2014 = vld [vmem:[%s7 + $0x10] sm:$0xff]
        %v2015 = vld [vmem:[%s7 + $0x18] sm:$0xff]
        %v2016 = vld [vmem:[%s7 + $0x20] sm:$0xff]
        %v2017 = vld [vmem:[%s7 + $0x28] sm:$0xff]
        %v2018 = vld [vmem:[%s7 + $0x30] sm:$0xff]
        %v2019 = vld [vmem:[%s7 + $0x38] sm:$0xff]
        %2021 = vset.pattern.permute.xlu0 0
        %2022 = vperm.xlu0 %2021, %v2012
        %v2023 = vpop.permute.xlu0 %2022
        %2026 = vset.pattern.permute.xlu0 0
        %2027 = vperm.xlu0 %2026, %v2013
        %v2028 = vpop.permute.xlu0 %2027
        %2031 = vset.pattern.permute.xlu0 0
        %2032 = vperm.xlu0 %2031, %v2014
        %v2033 = vpop.permute.xlu0 %2032
        %2036 = vset.pattern.permute.xlu0 0
        %2037 = vperm.xlu0 %2036, %v2015
        %v2038 = vpop.permute.xlu0 %2037
        %2041 = vset.pattern.permute.xlu0 0
        %2042 = vperm.xlu0 %2041, %v2016
        %v2043 = vpop.permute.xlu0 %2042
        %2046 = vset.pattern.permute.xlu0 0
        %2047 = vperm.xlu0 %2046, %v2017
        %v2048 = vpop.permute.xlu0 %2047
        %2051 = vset.pattern.permute.xlu0 0
        %2052 = vperm.xlu0 %2051, %v2018
        %v2053 = vpop.permute.xlu0 %2052
        %2056 = vset.pattern.permute.xlu0 0
        %2057 = vperm.xlu0 %2056, %v2019
        %v2058 = vpop.permute.xlu0 %2057
        %v2068 = vunpack.c.l.b16 %v1940
        %v2069 = vunpack.c.l.b16 %v1941
        %v2070 = vunpack.c.l.b16 %v1942
        %v2071 = vunpack.c.l.b16 %v1943
        %v2072 = vunpack.c.l.b16 %v1944
        %v2073 = vunpack.c.l.b16 %v1945
        %v2074 = vunpack.c.l.b16 %v1946
        %v2075 = vunpack.c.l.b16 %v1947
        %v2076 = vpack.c.b16 %v2069, %v2068
        %v2077 = vpack.c.b16 %v2071, %v2070
        %v2078 = vpack.c.b16 %v2073, %v2072
        %v2079 = vpack.c.b16 %v2075, %v2074
        %vm2080 = vcmask 523264
        %v2082 = vsel %vm2080, %v2076, 0
        %v2085 = vsel %vm2080, %v2077, 0
        %v2088 = vsel %vm2080, %v2078, 0
        %v2091 = vsel %vm2080, %v2079, 0
        %2093 = vmatprep.subr.bf16.mxu0 %v1949
        %2094 = vmatpush1.bf16.msra.mxu0 %v1948
        %2095 = vmatprep.subr.bf16.mxu0 %v1965
        %2096 = vmatpush1.bf16.msra.mxu0 %v1964
        %2097 = vmatprep.subr.bf16.mxu0 %v1981
        %2098 = vmatpush1.bf16.msra.mxu0 %v1980
        %2099 = vmatprep.subr.bf16.mxu0 %v1997
        %2100 = vmatpush1.bf16.msra.mxu0 %v1996
        %2101 = vmatprep.subr.bf16.mxu0 0
        %2102 = vmatpush1.bf16.msra.mxu0 0
        %2103 = vmatprep.subr.bf16.mxu0 0
        %2104 = vmatpush1.bf16.msra.mxu0 0
        %2105 = vmatprep.subr.bf16.mxu0 0
        %2106 = vmatpush1.bf16.msra.mxu0 0
        %2107 = vmatprep.subr.bf16.mxu0 0
        %2108 = vmatpush1.bf16.msra.mxu0 0
        %2109 = vmatprep.subr.bf16.mxu0 0
        %2110 = vmatpush1.bf16.msra.mxu0 0
        %2111 = vmatprep.subr.bf16.mxu0 0
        %2112 = vmatpush1.bf16.msra.mxu0 0
        %2113 = vmatprep.subr.bf16.mxu0 0
        %2114 = vmatpush1.bf16.msra.mxu0 0
        %2115 = vmatprep.subr.bf16.mxu0 0
        %2116 = vmatpush1.bf16.msra.mxu0 0
        %2117 = vmatprep.subr.bf16.mxu0 0
        %2118 = vmatpush1.bf16.msra.mxu0 0
        %2119 = vmatprep.subr.bf16.mxu0 0
        %2120 = vmatpush1.bf16.msra.mxu0 0
        %2121 = vmatprep.subr.bf16.mxu0 0
        %2122 = vmatpush1.bf16.msra.mxu0 0
        %2123 = vmatprep.subr.bf16.mxu0 0
        %2124 = vmatpush1.bf16.msra.mxu0 0
        %2125 = vmatprep.mubr.bf16.mxu0 0
        %2126 = vmatmul.mubr.bf16.gmra.mrb[0].mxu0 %v2082
        %v2127 = vpop.f32.mrb[0].mxu0
        %v2128 = vadd.f32 %v2023, %v2127
        %v2129 = vpop.f32.mrb[0].mxu0
        %v2130 = vadd.f32 %v2023, %v2129
        %v2131 = vpop.f32.mrb[0].mxu0
        %v2132 = vadd.f32 %v2028, %v2131
        %v2133 = vpop.f32.mrb[0].mxu0
        %v2134 = vadd.f32 %v2028, %v2133
        %2135 = vmatprep.mubr.bf16.mxu0 0
        %2136 = vmatmul.mubr.bf16.gmra.mrb[0].mxu0 %v2085
        %v2137 = vpop.f32.mrb[0].mxu0
        %v2138 = vadd.f32 %v2033, %v2137
        %v2139 = vpop.f32.mrb[0].mxu0
        %v2140 = vadd.f32 %v2033, %v2139
        %v2141 = vpop.f32.mrb[0].mxu0
        %v2142 = vadd.f32 %v2038, %v2141
        %v2143 = vpop.f32.mrb[0].mxu0
        %v2144 = vadd.f32 %v2038, %v2143
        %2145 = vmatprep.mubr.bf16.mxu0 0
        %2146 = vmatmul.mubr.bf16.gmra.mrb[0].mxu0 %v2088
        %v2147 = vpop.f32.mrb[0].mxu0
        %v2148 = vadd.f32 %v2043, %v2147
        %v2149 = vpop.f32.mrb[0].mxu0
        %v2150 = vadd.f32 %v2043, %v2149
        %v2151 = vpop.f32.mrb[0].mxu0
        %v2152 = vadd.f32 %v2048, %v2151
        %v2153 = vpop.f32.mrb[0].mxu0
        %v2154 = vadd.f32 %v2048, %v2153
        %2155 = vmatprep.mubr.bf16.mxu0 0
        %2156 = vmatmul.mubr.bf16.gmra.mrb[0].mxu0 %v2091
        %v2157 = vpop.f32.mrb[0].mxu0
        %v2158 = vadd.f32 %v2053, %v2157
        %v2159 = vpop.f32.mrb[0].mxu0
        %v2160 = vadd.f32 %v2053, %v2159
        %v2161 = vpop.f32.mrb[0].mxu0
        %v2162 = vadd.f32 %v2058, %v2161
        %v2163 = vpop.f32.mrb[0].mxu0
        %v2164 = vadd.f32 %v2058, %v2163
        %2165 = vdwg.mxu0
        %2166 = vmatprep.subr.bf16.mxu0 %v1951
        %2167 = vmatpush1.bf16.msra.mxu0 %v1950
        %2168 = vmatprep.subr.bf16.mxu0 %v1967
        %2169 = vmatpush1.bf16.msra.mxu0 %v1966
        %2170 = vmatprep.subr.bf16.mxu0 %v1983
        %2171 = vmatpush1.bf16.msra.mxu0 %v1982
        %2172 = vmatprep.subr.bf16.mxu0 %v1999
        %2173 = vmatpush1.bf16.msra.mxu0 %v1998
        %2174 = vmatprep.subr.bf16.mxu0 0
        %2175 = vmatpush1.bf16.msra.mxu0 0
        %2176 = vmatprep.subr.bf16.mxu0 0
        %2177 = vmatpush1.bf16.msra.mxu0 0
        %2178 = vmatprep.subr.bf16.mxu0 0
        %2179 = vmatpush1.bf16.msra.mxu0 0
        %2180 = vmatprep.subr.bf16.mxu0 0
        %2181 = vmatpush1.bf16.msra.mxu0 0
        %2182 = vmatprep.subr.bf16.mxu0 0
        %2183 = vmatpush1.bf16.msra.mxu0 0
        %2184 = vmatprep.subr.bf16.mxu0 0
        %2185 = vmatpush1.bf16.msra.mxu0 0
        %2186 = vmatprep.subr.bf16.mxu0 0
        %2187 = vmatpush1.bf16.msra.mxu0 0
        %2188 = vmatprep.subr.bf16.mxu0 0
        %2189 = vmatpush1.bf16.msra.mxu0 0
        %2190 = vmatprep.subr.bf16.mxu0 0
        %2191 = vmatpush1.bf16.msra.mxu0 0
        %2192 = vmatprep.subr.bf16.mxu0 0
        %2193 = vmatpush1.bf16.msra.mxu0 0
        %2194 = vmatprep.subr.bf16.mxu0 0
        %2195 = vmatpush1.bf16.msra.mxu0 0
        %2196 = vmatprep.subr.bf16.mxu0 0
        %2197 = vmatpush1.bf16.msra.mxu0 0
        %2198 = vmatprep.mubr.bf16.mxu0 0
        %2199 = vmatmul.mubr.bf16.gmra.mrb[0].mxu0 %v2082
        %v2200 = vpop.f32.mrb[0].mxu0
        %v2201 = vadd.f32 %v2023, %v2200
        %v2202 = vpop.f32.mrb[0].mxu0
        %v2203 = vadd.f32 %v2023, %v2202
        %v2204 = vpop.f32.mrb[0].mxu0
        %v2205 = vadd.f32 %v2028, %v2204
        %v2206 = vpop.f32.mrb[0].mxu0
        %v2207 = vadd.f32 %v2028, %v2206
        %2208 = vmatprep.mubr.bf16.mxu0 0
        %2209 = vmatmul.mubr.bf16.gmra.mrb[0].mxu0 %v2085
        %v2210 = vpop.f32.mrb[0].mxu0
        %v2211 = vadd.f32 %v2033, %v2210
        %v2212 = vpop.f32.mrb[0].mxu0
        %v2213 = vadd.f32 %v2033, %v2212
        %v2214 = vpop.f32.mrb[0].mxu0
        %v2215 = vadd.f32 %v2038, %v2214
        %v2216 = vpop.f32.mrb[0].mxu0
        %v2217 = vadd.f32 %v2038, %v2216
        %2218 = vmatprep.mubr.bf16.mxu0 0
        %2219 = vmatmul.mubr.bf16.gmra.mrb[0].mxu0 %v2088
        %v2220 = vpop.f32.mrb[0].mxu0
        %v2221 = vadd.f32 %v2043, %v2220
        %v2222 = vpop.f32.mrb[0].mxu0
        %v2223 = vadd.f32 %v2043, %v2222
        %v2224 = vpop.f32.mrb[0].mxu0
        %v2225 = vadd.f32 %v2048, %v2224
        %v2226 = vpop.f32.mrb[0].mxu0
        %v2227 = vadd.f32 %v2048, %v2226
        %2228 = vmatprep.mubr.bf16.mxu0 0
        %2229 = vmatmul.mubr.bf16.gmra.mrb[0].mxu0 %v2091
        %v2230 = vpop.f32.mrb[0].mxu0
        %v2231 = vadd.f32 %v2053, %v2230
        %v2232 = vpop.f32.mrb[0].mxu0
        %v2233 = vadd.f32 %v2053, %v2232
        %v2234 = vpop.f32.mrb[0].mxu0
        %v2235 = vadd.f32 %v2058, %v2234
        %v2236 = vpop.f32.mrb[0].mxu0
        %v2237 = vadd.f32 %v2058, %v2236
        %2238 = vdwg.mxu0
        %2239 = vmatprep.subr.bf16.mxu0 %v1953
        %2240 = vmatpush1.bf16.msra.mxu0 %v1952
        %2241 = vmatprep.subr.bf16.mxu0 %v1969
        %2242 = vmatpush1.bf16.msra.mxu0 %v1968
        %2243 = vmatprep.subr.bf16.mxu0 %v1985
        %2244 = vmatpush1.bf16.msra.mxu0 %v1984
        %2245 = vmatprep.subr.bf16.mxu0 %v2001
        %2246 = vmatpush1.bf16.msra.mxu0 %v2000
        %2247 = vmatprep.subr.bf16.mxu0 0
        %2248 = vmatpush1.bf16.msra.mxu0 0
        %2249 = vmatprep.subr.bf16.mxu0 0
        %2250 = vmatpush1.bf16.msra.mxu0 0
        %2251 = vmatprep.subr.bf16.mxu0 0
        %2252 = vmatpush1.bf16.msra.mxu0 0
        %2253 = vmatprep.subr.bf16.mxu0 0
        %2254 = vmatpush1.bf16.msra.mxu0 0
        %2255 = vmatprep.subr.bf16.mxu0 0
        %2256 = vmatpush1.bf16.msra.mxu0 0
        %2257 = vmatprep.subr.bf16.mxu0 0
        %2258 = vmatpush1.bf16.msra.mxu0 0
        %2259 = vmatprep.subr.bf16.mxu0 0
        %2260 = vmatpush1.bf16.msra.mxu0 0
        %2261 = vmatprep.subr.bf16.mxu0 0
        %2262 = vmatpush1.bf16.msra.mxu0 0
        %2263 = vmatprep.subr.bf16.mxu0 0
        %2264 = vmatpush1.bf16.msra.mxu0 0
        %2265 = vmatprep.subr.bf16.mxu0 0
        %2266 = vmatpush1.bf16.msra.mxu0 0
        %2267 = vmatprep.subr.bf16.mxu0 0
        %2268 = vmatpush1.bf16.msra.mxu0 0
        %2269 = vmatprep.subr.bf16.mxu0 0
        %2270 = vmatpush1.bf16.msra.mxu0 0
        %2271 = vmatprep.mubr.bf16.mxu0 0
        %2272 = vmatmul.mubr.bf16.gmra.mrb[0].mxu0 %v2082
        %v2273 = vpop.f32.mrb[0].mxu0
        %v2274 = vadd.f32 %v2023, %v2273
        %v2275 = vpop.f32.mrb[0].mxu0
        %v2276 = vadd.f32 %v2023, %v2275
        %v2277 = vpop.f32.mrb[0].mxu0
        %v2278 = vadd.f32 %v2028, %v2277
        %v2279 = vpop.f32.mrb[0].mxu0
        %v2280 = vadd.f32 %v2028, %v2279
        %2281 = vmatprep.mubr.bf16.mxu0 0
        %2282 = vmatmul.mubr.bf16.gmra.mrb[0].mxu0 %v2085
        %v2283 = vpop.f32.mrb[0].mxu0
        %v2284 = vadd.f32 %v2033, %v2283
        %v2285 = vpop.f32.mrb[0].mxu0
        %v2286 = vadd.f32 %v2033, %v2285
        %v2287 = vpop.f32.mrb[0].mxu0
        %v2288 = vadd.f32 %v2038, %v2287
        %v2289 = vpop.f32.mrb[0].mxu0
        %v2290 = vadd.f32 %v2038, %v2289
        %2291 = vmatprep.mubr.bf16.mxu0 0
        %2292 = vmatmul.mubr.bf16.gmra.mrb[0].mxu0 %v2088
        %v2293 = vpop.f32.mrb[0].mxu0
        %v2294 = vadd.f32 %v2043, %v2293
        %v2295 = vpop.f32.mrb[0].mxu0
        %v2296 = vadd.f32 %v2043, %v2295
        %v2297 = vpop.f32.mrb[0].mxu0
        %v2298 = vadd.f32 %v2048, %v2297
        %v2299 = vpop.f32.mrb[0].mxu0
        %v2300 = vadd.f32 %v2048, %v2299
        %2301 = vmatprep.mubr.bf16.mxu0 0
        %2302 = vmatmul.mubr.bf16.gmra.mrb[0].mxu0 %v2091
        %v2303 = vpop.f32.mrb[0].mxu0
        %v2304 = vadd.f32 %v2053, %v2303
        %v2305 = vpop.f32.mrb[0].mxu0
        %v2306 = vadd.f32 %v2053, %v2305
        %v2307 = vpop.f32.mrb[0].mxu0
        %v2308 = vadd.f32 %v2058, %v2307
        %v2309 = vpop.f32.mrb[0].mxu0
        %v2310 = vadd.f32 %v2058, %v2309
        %2311 = vdwg.mxu0
        %2312 = vmatprep.subr.bf16.mxu0 %v1955
        %2313 = vmatpush1.bf16.msra.mxu0 %v1954
        %2314 = vmatprep.subr.bf16.mxu0 %v1971
        %2315 = vmatpush1.bf16.msra.mxu0 %v1970
        %2316 = vmatprep.subr.bf16.mxu0 %v1987
        %2317 = vmatpush1.bf16.msra.mxu0 %v1986
        %2318 = vmatprep.subr.bf16.mxu0 %v2003
        %2319 = vmatpush1.bf16.msra.mxu0 %v2002
        %2320 = vmatprep.subr.bf16.mxu0 0
        %2321 = vmatpush1.bf16.msra.mxu0 0
        %2322 = vmatprep.subr.bf16.mxu0 0
        %2323 = vmatpush1.bf16.msra.mxu0 0
        %2324 = vmatprep.subr.bf16.mxu0 0
        %2325 = vmatpush1.bf16.msra.mxu0 0
        %2326 = vmatprep.subr.bf16.mxu0 0
        %2327 = vmatpush1.bf16.msra.mxu0 0
        %2328 = vmatprep.subr.bf16.mxu0 0
        %2329 = vmatpush1.bf16.msra.mxu0 0
        %2330 = vmatprep.subr.bf16.mxu0 0
        %2331 = vmatpush1.bf16.msra.mxu0 0
        %2332 = vmatprep.subr.bf16.mxu0 0
        %2333 = vmatpush1.bf16.msra.mxu0 0
        %2334 = vmatprep.subr.bf16.mxu0 0
        %2335 = vmatpush1.bf16.msra.mxu0 0
        %2336 = vmatprep.subr.bf16.mxu0 0
        %2337 = vmatpush1.bf16.msra.mxu0 0
        %2338 = vmatprep.subr.bf16.mxu0 0
        %2339 = vmatpush1.bf16.msra.mxu0 0
        %2340 = vmatprep.subr.bf16.mxu0 0
        %2341 = vmatpush1.bf16.msra.mxu0 0
        %2342 = vmatprep.subr.bf16.mxu0 0
        %2343 = vmatpush1.bf16.msra.mxu0 0
        %2344 = vmatprep.mubr.bf16.mxu0 0
        %2345 = vmatmul.mubr.bf16.gmra.mrb[0].mxu0 %v2082
        %v2346 = vpop.f32.mrb[0].mxu0
        %v2347 = vadd.f32 %v2023, %v2346
        %v2348 = vpop.f32.mrb[0].mxu0
        %v2349 = vadd.f32 %v2023, %v2348
        %v2350 = vpop.f32.mrb[0].mxu0
        %v2351 = vadd.f32 %v2028, %v2350
        %v2352 = vpop.f32.mrb[0].mxu0
        %v2353 = vadd.f32 %v2028, %v2352
        %2354 = vmatprep.mubr.bf16.mxu0 0
        %2355 = vmatmul.mubr.bf16.gmra.mrb[0].mxu0 %v2085
        %v2356 = vpop.f32.mrb[0].mxu0
        %v2357 = vadd.f32 %v2033, %v2356
        %v2358 = vpop.f32.mrb[0].mxu0
        %v2359 = vadd.f32 %v2033, %v2358
        %v2360 = vpop.f32.mrb[0].mxu0
        %v2361 = vadd.f32 %v2038, %v2360
        %v2362 = vpop.f32.mrb[0].mxu0
        %v2363 = vadd.f32 %v2038, %v2362
        %2364 = vmatprep.mubr.bf16.mxu0 0
        %2365 = vmatmul.mubr.bf16.gmra.mrb[0].mxu0 %v2088
        %v2366 = vpop.f32.mrb[0].mxu0
        %v2367 = vadd.f32 %v2043, %v2366
        %v2368 = vpop.f32.mrb[0].mxu0
        %v2369 = vadd.f32 %v2043, %v2368
        %v2370 = vpop.f32.mrb[0].mxu0
        %v2371 = vadd.f32 %v2048, %v2370
        %v2372 = vpop.f32.mrb[0].mxu0
        %v2373 = vadd.f32 %v2048, %v2372
        %2374 = vmatprep.mubr.bf16.mxu0 0
        %2375 = vmatmul.mubr.bf16.gmra.mrb[0].mxu0 %v2091
        %v2376 = vpop.f32.mrb[0].mxu0
        %v2377 = vadd.f32 %v2053, %v2376
        %v2378 = vpop.f32.mrb[0].mxu0
        %v2379 = vadd.f32 %v2053, %v2378
        %v2380 = vpop.f32.mrb[0].mxu0
        %v2381 = vadd.f32 %v2058, %v2380
        %v2382 = vpop.f32.mrb[0].mxu0
        %v2383 = vadd.f32 %v2058, %v2382
        %2384 = vdwg.mxu0
        %2385 = vmatprep.subr.bf16.mxu0 %v1957
        %2386 = vmatpush1.bf16.msra.mxu0 %v1956
        %2387 = vmatprep.subr.bf16.mxu0 %v1973
        %2388 = vmatpush1.bf16.msra.mxu0 %v1972
        %2389 = vmatprep.subr.bf16.mxu0 %v1989
        %2390 = vmatpush1.bf16.msra.mxu0 %v1988
        %2391 = vmatprep.subr.bf16.mxu0 %v2005
        %2392 = vmatpush1.bf16.msra.mxu0 %v2004
        %2393 = vmatprep.subr.bf16.mxu0 0
        %2394 = vmatpush1.bf16.msra.mxu0 0
        %2395 = vmatprep.subr.bf16.mxu0 0
        %2396 = vmatpush1.bf16.msra.mxu0 0
        %2397 = vmatprep.subr.bf16.mxu0 0
        %2398 = vmatpush1.bf16.msra.mxu0 0
        %2399 = vmatprep.subr.bf16.mxu0 0
        %2400 = vmatpush1.bf16.msra.mxu0 0
        %2401 = vmatprep.subr.bf16.mxu0 0
        %2402 = vmatpush1.bf16.msra.mxu0 0
        %2403 = vmatprep.subr.bf16.mxu0 0
        %2404 = vmatpush1.bf16.msra.mxu0 0
        %2405 = vmatprep.subr.bf16.mxu0 0
        %2406 = vmatpush1.bf16.msra.mxu0 0
        %2407 = vmatprep.subr.bf16.mxu0 0
        %2408 = vmatpush1.bf16.msra.mxu0 0
        %2409 = vmatprep.subr.bf16.mxu0 0
        %2410 = vmatpush1.bf16.msra.mxu0 0
        %2411 = vmatprep.subr.bf16.mxu0 0
        %2412 = vmatpush1.bf16.msra.mxu0 0
        %2413 = vmatprep.subr.bf16.mxu0 0
        %2414 = vmatpush1.bf16.msra.mxu0 0
        %2415 = vmatprep.subr.bf16.mxu0 0
        %2416 = vmatpush1.bf16.msra.mxu0 0
        %2417 = vmatprep.mubr.bf16.mxu0 0
        %2418 = vmatmul.mubr.bf16.gmra.mrb[0].mxu0 %v2082
        %v2419 = vpop.f32.mrb[0].mxu0
        %v2420 = vadd.f32 %v2023, %v2419
        %v2421 = vpop.f32.mrb[0].mxu0
        %v2422 = vadd.f32 %v2023, %v2421
        %v2423 = vpop.f32.mrb[0].mxu0
        %v2424 = vadd.f32 %v2028, %v2423
        %v2425 = vpop.f32.mrb[0].mxu0
        %v2426 = vadd.f32 %v2028, %v2425
        %2427 = vmatprep.mubr.bf16.mxu0 0
        %2428 = vmatmul.mubr.bf16.gmra.mrb[0].mxu0 %v2085
        %v2429 = vpop.f32.mrb[0].mxu0
        %v2430 = vadd.f32 %v2033, %v2429
        %v2431 = vpop.f32.mrb[0].mxu0
        %v2432 = vadd.f32 %v2033, %v2431
        %v2433 = vpop.f32.mrb[0].mxu0
        %v2434 = vadd.f32 %v2038, %v2433
        %v2435 = vpop.f32.mrb[0].mxu0
        %v2436 = vadd.f32 %v2038, %v2435
        %2437 = vmatprep.mubr.bf16.mxu0 0
        %2438 = vmatmul.mubr.bf16.gmra.mrb[0].mxu0 %v2088
        %v2439 = vpop.f32.mrb[0].mxu0
        %v2440 = vadd.f32 %v2043, %v2439
        %v2441 = vpop.f32.mrb[0].mxu0
        %v2442 = vadd.f32 %v2043, %v2441
        %v2443 = vpop.f32.mrb[0].mxu0
        %v2444 = vadd.f32 %v2048, %v2443
        %v2445 = vpop.f32.mrb[0].mxu0
        %v2446 = vadd.f32 %v2048, %v2445
        %2447 = vmatprep.mubr.bf16.mxu0 0
        %2448 = vmatmul.mubr.bf16.gmra.mrb[0].mxu0 %v2091
        %v2449 = vpop.f32.mrb[0].mxu0
        %v2450 = vadd.f32 %v2053, %v2449
        %v2451 = vpop.f32.mrb[0].mxu0
        %v2452 = vadd.f32 %v2053, %v2451
        %v2453 = vpop.f32.mrb[0].mxu0
        %v2454 = vadd.f32 %v2058, %v2453
        %v2455 = vpop.f32.mrb[0].mxu0
        %v2456 = vadd.f32 %v2058, %v2455
        %2457 = vdwg.mxu0
        %2458 = vmatprep.subr.bf16.mxu0 %v1959
        %2459 = vmatpush1.bf16.msra.mxu0 %v1958
        %2460 = vmatprep.subr.bf16.mxu0 %v1975
        %2461 = vmatpush1.bf16.msra.mxu0 %v1974
        %2462 = vmatprep.subr.bf16.mxu0 %v1991
        %2463 = vmatpush1.bf16.msra.mxu0 %v1990
        %2464 = vmatprep.subr.bf16.mxu0 %v2007
        %2465 = vmatpush1.bf16.msra.mxu0 %v2006
        %2466 = vmatprep.subr.bf16.mxu0 0
        %2467 = vmatpush1.bf16.msra.mxu0 0
        %2468 = vmatprep.subr.bf16.mxu0 0
        %2469 = vmatpush1.bf16.msra.mxu0 0
        %2470 = vmatprep.subr.bf16.mxu0 0
        %2471 = vmatpush1.bf16.msra.mxu0 0
        %2472 = vmatprep.subr.bf16.mxu0 0
        %2473 = vmatpush1.bf16.msra.mxu0 0
        %2474 = vmatprep.subr.bf16.mxu0 0
        %2475 = vmatpush1.bf16.msra.mxu0 0
        %2476 = vmatprep.subr.bf16.mxu0 0
        %2477 = vmatpush1.bf16.msra.mxu0 0
        %2478 = vmatprep.subr.bf16.mxu0 0
        %2479 = vmatpush1.bf16.msra.mxu0 0
        %2480 = vmatprep.subr.bf16.mxu0 0
        %2481 = vmatpush1.bf16.msra.mxu0 0
        %2482 = vmatprep.subr.bf16.mxu0 0
        %2483 = vmatpush1.bf16.msra.mxu0 0
        %2484 = vmatprep.subr.bf16.mxu0 0
        %2485 = vmatpush1.bf16.msra.mxu0 0
        %2486 = vmatprep.subr.bf16.mxu0 0
        %2487 = vmatpush1.bf16.msra.mxu0 0
        %2488 = vmatprep.subr.bf16.mxu0 0
        %2489 = vmatpush1.bf16.msra.mxu0 0
        %2490 = vmatprep.mubr.bf16.mxu0 0
        %2491 = vmatmul.mubr.bf16.gmra.mrb[0].mxu0 %v2082
        %v2492 = vpop.f32.mrb[0].mxu0
        %v2493 = vadd.f32 %v2023, %v2492
        %v2494 = vpop.f32.mrb[0].mxu0
        %v2495 = vadd.f32 %v2023, %v2494
        %v2496 = vpop.f32.mrb[0].mxu0
        %v2497 = vadd.f32 %v2028, %v2496
        %v2498 = vpop.f32.mrb[0].mxu0
        %v2499 = vadd.f32 %v2028, %v2498
        %2500 = vmatprep.mubr.bf16.mxu0 0
        %2501 = vmatmul.mubr.bf16.gmra.mrb[0].mxu0 %v2085
        %v2502 = vpop.f32.mrb[0].mxu0
        %v2503 = vadd.f32 %v2033, %v2502
        %v2504 = vpop.f32.mrb[0].mxu0
        %v2505 = vadd.f32 %v2033, %v2504
        %v2506 = vpop.f32.mrb[0].mxu0
        %v2507 = vadd.f32 %v2038, %v2506
        %v2508 = vpop.f32.mrb[0].mxu0
        %v2509 = vadd.f32 %v2038, %v2508
        %2510 = vmatprep.mubr.bf16.mxu0 0
        %2511 = vmatmul.mubr.bf16.gmra.mrb[0].mxu0 %v2088
        %v2512 = vpop.f32.mrb[0].mxu0
        %v2513 = vadd.f32 %v2043, %v2512
        %v2514 = vpop.f32.mrb[0].mxu0
        %v2515 = vadd.f32 %v2043, %v2514
        %v2516 = vpop.f32.mrb[0].mxu0
        %v2517 = vadd.f32 %v2048, %v2516
        %v2518 = vpop.f32.mrb[0].mxu0
        %v2519 = vadd.f32 %v2048, %v2518
        %2520 = vmatprep.mubr.bf16.mxu0 0
        %2521 = vmatmul.mubr.bf16.gmra.mrb[0].mxu0 %v2091
        %v2522 = vpop.f32.mrb[0].mxu0
        %v2523 = vadd.f32 %v2053, %v2522
        %v2524 = vpop.f32.mrb[0].mxu0
        %v2525 = vadd.f32 %v2053, %v2524
        %v2526 = vpop.f32.mrb[0].mxu0
        %v2527 = vadd.f32 %v2058, %v2526
        %v2528 = vpop.f32.mrb[0].mxu0
        %v2529 = vadd.f32 %v2058, %v2528
        %2530 = vdwg.mxu0
        %2531 = vmatprep.subr.bf16.mxu0 %v1961
        %2532 = vmatpush1.bf16.msra.mxu0 %v1960
        %2533 = vmatprep.subr.bf16.mxu0 %v1977
        %2534 = vmatpush1.bf16.msra.mxu0 %v1976
        %2535 = vmatprep.subr.bf16.mxu0 %v1993
        %2536 = vmatpush1.bf16.msra.mxu0 %v1992
        %2537 = vmatprep.subr.bf16.mxu0 %v2009
        %2538 = vmatpush1.bf16.msra.mxu0 %v2008
        %2539 = vmatprep.subr.bf16.mxu0 0
        %2540 = vmatpush1.bf16.msra.mxu0 0
        %2541 = vmatprep.subr.bf16.mxu0 0
        %2542 = vmatpush1.bf16.msra.mxu0 0
        %2543 = vmatprep.subr.bf16.mxu0 0
        %2544 = vmatpush1.bf16.msra.mxu0 0
        %2545 = vmatprep.subr.bf16.mxu0 0
        %2546 = vmatpush1.bf16.msra.mxu0 0
        %2547 = vmatprep.subr.bf16.mxu0 0
        %2548 = vmatpush1.bf16.msra.mxu0 0
        %2549 = vmatprep.subr.bf16.mxu0 0
        %2550 = vmatpush1.bf16.msra.mxu0 0
        %2551 = vmatprep.subr.bf16.mxu0 0
        %2552 = vmatpush1.bf16.msra.mxu0 0
        %2553 = vmatprep.subr.bf16.mxu0 0
        %2554 = vmatpush1.bf16.msra.mxu0 0
        %2555 = vmatprep.subr.bf16.mxu0 0
        %2556 = vmatpush1.bf16.msra.mxu0 0
        %2557 = vmatprep.subr.bf16.mxu0 0
        %2558 = vmatpush1.bf16.msra.mxu0 0
        %2559 = vmatprep.subr.bf16.mxu0 0
        %2560 = vmatpush1.bf16.msra.mxu0 0
        %2561 = vmatprep.subr.bf16.mxu0 0
        %2562 = vmatpush1.bf16.msra.mxu0 0
        %2563 = vmatprep.mubr.bf16.mxu0 0
        %2564 = vmatmul.mubr.bf16.gmra.mrb[0].mxu0 %v2082
        %v2565 = vpop.f32.mrb[0].mxu0
        %v2566 = vadd.f32 %v2023, %v2565
        %v2567 = vpop.f32.mrb[0].mxu0
        %v2568 = vadd.f32 %v2023, %v2567
        %v2569 = vpop.f32.mrb[0].mxu0
        %v2570 = vadd.f32 %v2028, %v2569
        %v2571 = vpop.f32.mrb[0].mxu0
        %v2572 = vadd.f32 %v2028, %v2571
        %2573 = vmatprep.mubr.bf16.mxu0 0
        %2574 = vmatmul.mubr.bf16.gmra.mrb[0].mxu0 %v2085
        %v2575 = vpop.f32.mrb[0].mxu0
        %v2576 = vadd.f32 %v2033, %v2575
        %v2577 = vpop.f32.mrb[0].mxu0
        %v2578 = vadd.f32 %v2033, %v2577
        %v2579 = vpop.f32.mrb[0].mxu0
        %v2580 = vadd.f32 %v2038, %v2579
        %v2581 = vpop.f32.mrb[0].mxu0
        %v2582 = vadd.f32 %v2038, %v2581
        %2583 = vmatprep.mubr.bf16.mxu0 0
        %2584 = vmatmul.mubr.bf16.gmra.mrb[0].mxu0 %v2088
        %v2585 = vpop.f32.mrb[0].mxu0
        %v2586 = vadd.f32 %v2043, %v2585
        %v2587 = vpop.f32.mrb[0].mxu0
        %v2588 = vadd.f32 %v2043, %v2587
        %v2589 = vpop.f32.mrb[0].mxu0
        %v2590 = vadd.f32 %v2048, %v2589
        %v2591 = vpop.f32.mrb[0].mxu0
        %v2592 = vadd.f32 %v2048, %v2591
        %2593 = vmatprep.mubr.bf16.mxu0 0
        %2594 = vmatmul.mubr.bf16.gmra.mrb[0].mxu0 %v2091
        %v2595 = vpop.f32.mrb[0].mxu0
        %v2596 = vadd.f32 %v2053, %v2595
        %v2597 = vpop.f32.mrb[0].mxu0
        %v2598 = vadd.f32 %v2053, %v2597
        %v2599 = vpop.f32.mrb[0].mxu0
        %v2600 = vadd.f32 %v2058, %v2599
        %v2601 = vpop.f32.mrb[0].mxu0
        %v2602 = vadd.f32 %v2058, %v2601
        %2603 = vdwg.mxu0
        %2604 = vmatprep.subr.bf16.mxu0 %v1963
        %2605 = vmatpush1.bf16.msra.mxu0 %v1962
        %2606 = vmatprep.subr.bf16.mxu0 %v1979
        %2607 = vmatpush1.bf16.msra.mxu0 %v1978
        %2608 = vmatprep.subr.bf16.mxu0 %v1995
        %2609 = vmatpush1.bf16.msra.mxu0 %v1994
        %2610 = vmatprep.subr.bf16.mxu0 %v2011
        %2611 = vmatpush1.bf16.msra.mxu0 %v2010
        %2612 = vmatprep.subr.bf16.mxu0 0
        %2613 = vmatpush1.bf16.msra.mxu0 0
        %2614 = vmatprep.subr.bf16.mxu0 0
        %2615 = vmatpush1.bf16.msra.mxu0 0
        %2616 = vmatprep.subr.bf16.mxu0 0
        %2617 = vmatpush1.bf16.msra.mxu0 0
        %2618 = vmatprep.subr.bf16.mxu0 0
        %2619 = vmatpush1.bf16.msra.mxu0 0
        %2620 = vmatprep.subr.bf16.mxu0 0
        %2621 = vmatpush1.bf16.msra.mxu0 0
        %2622 = vmatprep.subr.bf16.mxu0 0
        %2623 = vmatpush1.bf16.msra.mxu0 0
        %2624 = vmatprep.subr.bf16.mxu0 0
        %2625 = vmatpush1.bf16.msra.mxu0 0
        %2626 = vmatprep.subr.bf16.mxu0 0
        %2627 = vmatpush1.bf16.msra.mxu0 0
        %2628 = vmatprep.subr.bf16.mxu0 0
        %2629 = vmatpush1.bf16.msra.mxu0 0
        %2630 = vmatprep.subr.bf16.mxu0 0
        %2631 = vmatpush1.bf16.msra.mxu0 0
        %2632 = vmatprep.subr.bf16.mxu0 0
        %2633 = vmatpush1.bf16.msra.mxu0 0
        %2634 = vmatprep.subr.bf16.mxu0 0
        %2635 = vmatpush1.bf16.msra.mxu0 0
        %2636 = vmatprep.mubr.bf16.mxu0 0
        %2637 = vmatmul.mubr.bf16.gmra.mrb[0].mxu0 %v2082
        %v2638 = vpop.f32.mrb[0].mxu0
        %v2639 = vadd.f32 %v2023, %v2638
        %v2640 = vpop.f32.mrb[0].mxu0
        %v2641 = vadd.f32 %v2023, %v2640
        %v2642 = vpop.f32.mrb[0].mxu0
        %v2643 = vadd.f32 %v2028, %v2642
        %v2644 = vpop.f32.mrb[0].mxu0
        %v2645 = vadd.f32 %v2028, %v2644
        %2646 = vmatprep.mubr.bf16.mxu0 0
        %2647 = vmatmul.mubr.bf16.gmra.mrb[0].mxu0 %v2085
        %v2648 = vpop.f32.mrb[0].mxu0
        %v2649 = vadd.f32 %v2033, %v2648
        %v2650 = vpop.f32.mrb[0].mxu0
        %v2651 = vadd.f32 %v2033, %v2650
        %v2652 = vpop.f32.mrb[0].mxu0
        %v2653 = vadd.f32 %v2038, %v2652
        %v2654 = vpop.f32.mrb[0].mxu0
        %v2655 = vadd.f32 %v2038, %v2654
        %2656 = vmatprep.mubr.bf16.mxu0 0
        %2657 = vmatmul.mubr.bf16.gmra.mrb[0].mxu0 %v2088
        %v2658 = vpop.f32.mrb[0].mxu0
        %v2659 = vadd.f32 %v2043, %v2658
        %v2660 = vpop.f32.mrb[0].mxu0
        %v2661 = vadd.f32 %v2043, %v2660
        %v2662 = vpop.f32.mrb[0].mxu0
        %v2663 = vadd.f32 %v2048, %v2662
        %v2664 = vpop.f32.mrb[0].mxu0
        %v2665 = vadd.f32 %v2048, %v2664
        %2666 = vmatprep.mubr.bf16.mxu0 0
        %2667 = vmatmul.mubr.bf16.gmra.mrb[0].mxu0 %v2091
        %v2668 = vpop.f32.mrb[0].mxu0
        %v2669 = vadd.f32 %v2053, %v2668
        %v2670 = vpop.f32.mrb[0].mxu0
        %v2671 = vadd.f32 %v2053, %v2670
        %v2672 = vpop.f32.mrb[0].mxu0
        %v2673 = vadd.f32 %v2058, %v2672
        %v2674 = vpop.f32.mrb[0].mxu0
        %v2675 = vadd.f32 %v2058, %v2674
        %2676 = vdwg.mxu0
        %v2677 = vmax.f32 %v2128, 0.0
        %v2678 = vmax.f32 %v2130, 0.0
        %v2679 = vmax.f32 %v2201, 0.0
        %v2680 = vmax.f32 %v2203, 0.0
        %v2681 = vmax.f32 %v2274, 0.0
        %v2682 = vmax.f32 %v2276, 0.0
        %v2683 = vmax.f32 %v2347, 0.0
        %v2684 = vmax.f32 %v2349, 0.0
        %v2685 = vmax.f32 %v2420, 0.0
        %v2686 = vmax.f32 %v2422, 0.0
        %v2687 = vmax.f32 %v2493, 0.0
        %v2688 = vmax.f32 %v2495, 0.0
        %v2689 = vmax.f32 %v2566, 0.0
        %v2690 = vmax.f32 %v2568, 0.0
        %v2691 = vmax.f32 %v2639, 0.0
        %v2692 = vmax.f32 %v2641, 0.0
        %v2693 = vmax.f32 %v2132, 0.0
        %v2694 = vmax.f32 %v2134, 0.0
        %v2695 = vmax.f32 %v2205, 0.0
        %v2696 = vmax.f32 %v2207, 0.0
        %v2697 = vmax.f32 %v2278, 0.0
        %v2698 = vmax.f32 %v2280, 0.0
        %v2699 = vmax.f32 %v2351, 0.0
        %v2700 = vmax.f32 %v2353, 0.0
        %v2701 = vmax.f32 %v2424, 0.0
        %v2702 = vmax.f32 %v2426, 0.0
        %v2703 = vmax.f32 %v2497, 0.0
        %v2704 = vmax.f32 %v2499, 0.0
        %v2705 = vmax.f32 %v2570, 0.0
        %v2706 = vmax.f32 %v2572, 0.0
        %v2707 = vmax.f32 %v2643, 0.0
        %v2708 = vmax.f32 %v2645, 0.0
        %v2709 = vmax.f32 %v2138, 0.0
        %v2710 = vmax.f32 %v2140, 0.0
        %v2711 = vmax.f32 %v2211, 0.0
        %v2712 = vmax.f32 %v2213, 0.0
        %v2713 = vmax.f32 %v2284, 0.0
        %v2714 = vmax.f32 %v2286, 0.0
        %v2715 = vmax.f32 %v2357, 0.0
        %v2716 = vmax.f32 %v2359, 0.0
        %v2717 = vmax.f32 %v2430, 0.0
        %v2718 = vmax.f32 %v2432, 0.0
        %v2719 = vmax.f32 %v2503, 0.0
        %v2720 = vmax.f32 %v2505, 0.0
        %v2721 = vmax.f32 %v2576, 0.0
        %v2722 = vmax.f32 %v2578, 0.0
        %v2723 = vmax.f32 %v2649, 0.0
        %v2724 = vmax.f32 %v2651, 0.0
        %v2725 = vmax.f32 %v2142, 0.0
        %v2726 = vmax.f32 %v2144, 0.0
        %v2727 = vmax.f32 %v2215, 0.0
        %v2728 = vmax.f32 %v2217, 0.0
        %v2729 = vmax.f32 %v2288, 0.0
        %v2730 = vmax.f32 %v2290, 0.0
        %v2731 = vmax.f32 %v2361, 0.0
        %v2732 = vmax.f32 %v2363, 0.0
        %v2733 = vmax.f32 %v2434, 0.0
        %v2734 = vmax.f32 %v2436, 0.0
        %v2735 = vmax.f32 %v2507, 0.0
        %v2736 = vmax.f32 %v2509, 0.0
        %v2737 = vmax.f32 %v2580, 0.0
        %v2738 = vmax.f32 %v2582, 0.0
        %v2739 = vmax.f32 %v2653, 0.0
        %v2740 = vmax.f32 %v2655, 0.0
        %v2741 = vmax.f32 %v2148, 0.0
        %v2742 = vmax.f32 %v2150, 0.0
        %v2743 = vmax.f32 %v2221, 0.0
        %v2744 = vmax.f32 %v2223, 0.0
        %v2745 = vmax.f32 %v2294, 0.0
        %v2746 = vmax.f32 %v2296, 0.0
        %v2747 = vmax.f32 %v2367, 0.0
        %v2748 = vmax.f32 %v2369, 0.0
        %v2749 = vmax.f32 %v2440, 0.0
        %v2750 = vmax.f32 %v2442, 0.0
        %v2751 = vmax.f32 %v2513, 0.0
        %v2752 = vmax.f32 %v2515, 0.0
        %v2753 = vmax.f32 %v2586, 0.0
        %v2754 = vmax.f32 %v2588, 0.0
        %v2755 = vmax.f32 %v2659, 0.0
        %v2756 = vmax.f32 %v2661, 0.0
        %v2757 = vmax.f32 %v2152, 0.0
        %v2758 = vmax.f32 %v2154, 0.0
        %v2759 = vmax.f32 %v2225, 0.0
        %v2760 = vmax.f32 %v2227, 0.0
        %v2761 = vmax.f32 %v2298, 0.0
        %v2762 = vmax.f32 %v2300, 0.0
        %v2763 = vmax.f32 %v2371, 0.0
        %v2764 = vmax.f32 %v2373, 0.0
        %v2765 = vmax.f32 %v2444, 0.0
        %v2766 = vmax.f32 %v2446, 0.0
        %v2767 = vmax.f32 %v2517, 0.0
        %v2768 = vmax.f32 %v2519, 0.0
        %v2769 = vmax.f32 %v2590, 0.0
        %v2770 = vmax.f32 %v2592, 0.0
        %v2771 = vmax.f32 %v2663, 0.0
        %v2772 = vmax.f32 %v2665, 0.0
        %v2773 = vmax.f32 %v2158, 0.0
        %v2774 = vmax.f32 %v2160, 0.0
        %v2775 = vmax.f32 %v2231, 0.0
        %v2776 = vmax.f32 %v2233, 0.0
        %v2777 = vmax.f32 %v2304, 0.0
        %v2778 = vmax.f32 %v2306, 0.0
        %v2779 = vmax.f32 %v2377, 0.0
        %v2780 = vmax.f32 %v2379, 0.0
        %v2781 = vmax.f32 %v2450, 0.0
        %v2782 = vmax.f32 %v2452, 0.0
        %v2783 = vmax.f32 %v2523, 0.0
        %v2784 = vmax.f32 %v2525, 0.0
        %v2785 = vmax.f32 %v2596, 0.0
        %v2786 = vmax.f32 %v2598, 0.0
        %v2787 = vmax.f32 %v2669, 0.0
        %v2788 = vmax.f32 %v2671, 0.0
        %v2789 = vmax.f32 %v2162, 0.0
        %v2790 = vmax.f32 %v2164, 0.0
        %v2791 = vmax.f32 %v2235, 0.0
        %v2792 = vmax.f32 %v2237, 0.0
        %v2793 = vmax.f32 %v2308, 0.0
        %v2794 = vmax.f32 %v2310, 0.0
        %v2795 = vmax.f32 %v2381, 0.0
        %v2796 = vmax.f32 %v2383, 0.0
        %v2797 = vmax.f32 %v2454, 0.0
        %v2798 = vmax.f32 %v2456, 0.0
        %v2799 = vmax.f32 %v2527, 0.0
        %v2800 = vmax.f32 %v2529, 0.0
        %v2801 = vmax.f32 %v2600, 0.0
        %v2802 = vmax.f32 %v2602, 0.0
        %v2803 = vmax.f32 %v2673, 0.0
        %v2804 = vmax.f32 %v2675, 0.0
        %v2805 = vld [vmem:[%s8] sm:$0x3]
        %v2806 = vpack.c.bf16 %v2693, %v2677
        %v2807 = vpack.c.bf16 %v2694, %v2678
        %v2808 = vpack.c.bf16 %v2695, %v2679
        %v2809 = vpack.c.bf16 %v2696, %v2680
        %v2810 = vpack.c.bf16 %v2697, %v2681
        %v2811 = vpack.c.bf16 %v2698, %v2682
        %v2812 = vpack.c.bf16 %v2699, %v2683
        %v2813 = vpack.c.bf16 %v2700, %v2684
        %v2814 = vpack.c.bf16 %v2701, %v2685
        %v2815 = vpack.c.bf16 %v2702, %v2686
        %v2816 = vpack.c.bf16 %v2703, %v2687
        %v2817 = vpack.c.bf16 %v2704, %v2688
        %v2818 = vpack.c.bf16 %v2705, %v2689
        %v2819 = vpack.c.bf16 %v2706, %v2690
        %v2820 = vpack.c.bf16 %v2707, %v2691
        %v2821 = vpack.c.bf16 %v2708, %v2692
        %v2822 = vpack.c.bf16 %v2725, %v2709
        %v2823 = vpack.c.bf16 %v2726, %v2710
        %v2824 = vpack.c.bf16 %v2727, %v2711
        %v2825 = vpack.c.bf16 %v2728, %v2712
        %v2826 = vpack.c.bf16 %v2729, %v2713
        %v2827 = vpack.c.bf16 %v2730, %v2714
        %v2828 = vpack.c.bf16 %v2731, %v2715
        %v2829 = vpack.c.bf16 %v2732, %v2716
        %v2830 = vpack.c.bf16 %v2733, %v2717
        %v2831 = vpack.c.bf16 %v2734, %v2718
        %v2832 = vpack.c.bf16 %v2735, %v2719
        %v2833 = vpack.c.bf16 %v2736, %v2720
        %v2834 = vpack.c.bf16 %v2737, %v2721
        %v2835 = vpack.c.bf16 %v2738, %v2722
        %v2836 = vpack.c.bf16 %v2739, %v2723
        %v2837 = vpack.c.bf16 %v2740, %v2724
        %v2838 = vpack.c.bf16 %v2757, %v2741
        %v2839 = vpack.c.bf16 %v2758, %v2742
        %v2840 = vpack.c.bf16 %v2759, %v2743
        %v2841 = vpack.c.bf16 %v2760, %v2744
        %v2842 = vpack.c.bf16 %v2761, %v2745
        %v2843 = vpack.c.bf16 %v2762, %v2746
        %v2844 = vpack.c.bf16 %v2763, %v2747
        %v2845 = vpack.c.bf16 %v2764, %v2748
        %v2846 = vpack.c.bf16 %v2765, %v2749
        %v2847 = vpack.c.bf16 %v2766, %v2750
        %v2848 = vpack.c.bf16 %v2767, %v2751
        %v2849 = vpack.c.bf16 %v2768, %v2752
        %v2850 = vpack.c.bf16 %v2769, %v2753
        %v2851 = vpack.c.bf16 %v2770, %v2754
        %v2852 = vpack.c.bf16 %v2771, %v2755
        %v2853 = vpack.c.bf16 %v2772, %v2756
        %v2854 = vpack.c.bf16 %v2789, %v2773
        %v2855 = vpack.c.bf16 %v2790, %v2774
        %v2856 = vpack.c.bf16 %v2791, %v2775
        %v2857 = vpack.c.bf16 %v2792, %v2776
        %v2858 = vpack.c.bf16 %v2793, %v2777
        %v2859 = vpack.c.bf16 %v2794, %v2778
        %v2860 = vpack.c.bf16 %v2795, %v2779
        %v2861 = vpack.c.bf16 %v2796, %v2780
        %v2862 = vpack.c.bf16 %v2797, %v2781
        %v2863 = vpack.c.bf16 %v2798, %v2782
        %v2864 = vpack.c.bf16 %v2799, %v2783
        %v2865 = vpack.c.bf16 %v2800, %v2784
        %v2866 = vpack.c.bf16 %v2801, %v2785
        %v2867 = vpack.c.bf16 %v2802, %v2786
        %v2868 = vpack.c.bf16 %v2803, %v2787
        %v2869 = vpack.c.bf16 %v2804, %v2788
        %v2870 = vld [vmem:[%s9] sm:$0xf]
        %2872 = vset.pattern.permute.xlu0 0
        %2873 = vperm.xlu0 %2872, %v2870
        %v2874 = vpop.permute.xlu0 %2873
        %v2877 = vsel %vm2080, %v2805, 0
        %2879 = vmatprep.subr.bf16.mxu0 %v2807
        %2880 = vmatpush1.bf16.msra.mxu0 %v2806
        %2881 = vmatprep.subr.bf16.mxu0 %v2823
        %2882 = vmatpush1.bf16.msra.mxu0 %v2822
        %2883 = vmatprep.subr.bf16.mxu0 %v2839
        %2884 = vmatpush1.bf16.msra.mxu0 %v2838
        %2885 = vmatprep.subr.bf16.mxu0 %v2855
        %2886 = vmatpush1.bf16.msra.mxu0 %v2854
        %2887 = vmatprep.subr.bf16.mxu0 0
        %2888 = vmatpush1.bf16.msra.mxu0 0
        %2889 = vmatprep.subr.bf16.mxu0 0
        %2890 = vmatpush1.bf16.msra.mxu0 0
        %2891 = vmatprep.subr.bf16.mxu0 0
        %2892 = vmatpush1.bf16.msra.mxu0 0
        %2893 = vmatprep.subr.bf16.mxu0 0
        %2894 = vmatpush1.bf16.msra.mxu0 0
        %2895 = vmatprep.subr.bf16.mxu0 0
        %2896 = vmatpush1.bf16.msra.mxu0 0
        %2897 = vmatprep.subr.bf16.mxu0 0
        %2898 = vmatpush1.bf16.msra.mxu0 0
        %2899 = vmatprep.subr.bf16.mxu0 0
        %2900 = vmatpush1.bf16.msra.mxu0 0
        %2901 = vmatprep.subr.bf16.mxu0 0
        %2902 = vmatpush1.bf16.msra.mxu0 0
        %2903 = vmatprep.subr.bf16.mxu0 0
        %2904 = vmatpush1.bf16.msra.mxu0 0
        %2905 = vmatprep.subr.bf16.mxu0 0
        %2906 = vmatpush1.bf16.msra.mxu0 0
        %2907 = vmatprep.subr.bf16.mxu0 0
        %2908 = vmatpush1.bf16.msra.mxu0 0
        %2909 = vmatprep.subr.bf16.mxu0 0
        %2910 = vmatpush1.bf16.msra.mxu0 0
        %2911 = vmatprep.mubr.bf16.mxu0 0
        %2912 = vmatmul.mubr.bf16.gmra.mrb[0].mxu0 %v2877
        %v2913 = vpop.f32.mrb[0].mxu0
        %v2914 = vadd.f32 %v2874, %v2913
        %v2915 = vpop.f32.mrb[0].mxu0
        %v2916 = vadd.f32 %v2874, %v2915
        %v2917 = vpop.f32.mrb[0].mxu0
        %v2918 = vpop.f32.mrb[0].mxu0
        %2919 = vdwg.mxu0
        %2920 = vmatprep.subr.bf16.mxu0 %v2809
        %2921 = vmatpush1.bf16.msra.mxu0 %v2808
        %2922 = vmatprep.subr.bf16.mxu0 %v2825
        %2923 = vmatpush1.bf16.msra.mxu0 %v2824
        %2924 = vmatprep.subr.bf16.mxu0 %v2841
        %2925 = vmatpush1.bf16.msra.mxu0 %v2840
        %2926 = vmatprep.subr.bf16.mxu0 %v2857
        %2927 = vmatpush1.bf16.msra.mxu0 %v2856
        %2928 = vmatprep.subr.bf16.mxu0 0
        %2929 = vmatpush1.bf16.msra.mxu0 0
        %2930 = vmatprep.subr.bf16.mxu0 0
        %2931 = vmatpush1.bf16.msra.mxu0 0
        %2932 = vmatprep.subr.bf16.mxu0 0
        %2933 = vmatpush1.bf16.msra.mxu0 0
        %2934 = vmatprep.subr.bf16.mxu0 0
        %2935 = vmatpush1.bf16.msra.mxu0 0
        %2936 = vmatprep.subr.bf16.mxu0 0
        %2937 = vmatpush1.bf16.msra.mxu0 0
        %2938 = vmatprep.subr.bf16.mxu0 0
        %2939 = vmatpush1.bf16.msra.mxu0 0
        %2940 = vmatprep.subr.bf16.mxu0 0
        %2941 = vmatpush1.bf16.msra.mxu0 0
        %2942 = vmatprep.subr.bf16.mxu0 0
        %2943 = vmatpush1.bf16.msra.mxu0 0
        %2944 = vmatprep.subr.bf16.mxu0 0
        %2945 = vmatpush1.bf16.msra.mxu0 0
        %2946 = vmatprep.subr.bf16.mxu0 0
        %2947 = vmatpush1.bf16.msra.mxu0 0
        %2948 = vmatprep.subr.bf16.mxu0 0
        %2949 = vmatpush1.bf16.msra.mxu0 0
        %2950 = vmatprep.subr.bf16.mxu0 0
        %2951 = vmatpush1.bf16.msra.mxu0 0
        %2952 = vmatprep.mubr.bf16.mxu0 0
        %2953 = vmatmul.mubr.bf16.gmra.mrb[0].mxu0 %v2877
        %v2954 = vpop.f32.mrb[0].mxu0
        %v2955 = vadd.f32 %v2874, %v2954
        %v2956 = vpop.f32.mrb[0].mxu0
        %v2957 = vadd.f32 %v2874, %v2956
        %v2958 = vpop.f32.mrb[0].mxu0
        %v2959 = vpop.f32.mrb[0].mxu0
        %2960 = vdwg.mxu0
        %2961 = vmatprep.subr.bf16.mxu0 %v2811
        %2962 = vmatpush1.bf16.msra.mxu0 %v2810
        %2963 = vmatprep.subr.bf16.mxu0 %v2827
        %2964 = vmatpush1.bf16.msra.mxu0 %v2826
        %2965 = vmatprep.subr.bf16.mxu0 %v2843
        %2966 = vmatpush1.bf16.msra.mxu0 %v2842
        %2967 = vmatprep.subr.bf16.mxu0 %v2859
        %2968 = vmatpush1.bf16.msra.mxu0 %v2858
        %2969 = vmatprep.subr.bf16.mxu0 0
        %2970 = vmatpush1.bf16.msra.mxu0 0
        %2971 = vmatprep.subr.bf16.mxu0 0
        %2972 = vmatpush1.bf16.msra.mxu0 0
        %2973 = vmatprep.subr.bf16.mxu0 0
        %2974 = vmatpush1.bf16.msra.mxu0 0
        %2975 = vmatprep.subr.bf16.mxu0 0
        %2976 = vmatpush1.bf16.msra.mxu0 0
        %2977 = vmatprep.subr.bf16.mxu0 0
        %2978 = vmatpush1.bf16.msra.mxu0 0
        %2979 = vmatprep.subr.bf16.mxu0 0
        %2980 = vmatpush1.bf16.msra.mxu0 0
        %2981 = vmatprep.subr.bf16.mxu0 0
        %2982 = vmatpush1.bf16.msra.mxu0 0
        %2983 = vmatprep.subr.bf16.mxu0 0
        %2984 = vmatpush1.bf16.msra.mxu0 0
        %2985 = vmatprep.subr.bf16.mxu0 0
        %2986 = vmatpush1.bf16.msra.mxu0 0
        %2987 = vmatprep.subr.bf16.mxu0 0
        %2988 = vmatpush1.bf16.msra.mxu0 0
        %2989 = vmatprep.subr.bf16.mxu0 0
        %2990 = vmatpush1.bf16.msra.mxu0 0
        %2991 = vmatprep.subr.bf16.mxu0 0
        %2992 = vmatpush1.bf16.msra.mxu0 0
        %2993 = vmatprep.mubr.bf16.mxu0 0
        %2994 = vmatmul.mubr.bf16.gmra.mrb[0].mxu0 %v2877
        %v2995 = vpop.f32.mrb[0].mxu0
        %v2996 = vadd.f32 %v2874, %v2995
        %v2997 = vpop.f32.mrb[0].mxu0
        %v2998 = vadd.f32 %v2874, %v2997
        %v2999 = vpop.f32.mrb[0].mxu0
        %v3000 = vpop.f32.mrb[0].mxu0
        %3001 = vdwg.mxu0
        %3002 = vmatprep.subr.bf16.mxu0 %v2813
        %3003 = vmatpush1.bf16.msra.mxu0 %v2812
        %3004 = vmatprep.subr.bf16.mxu0 %v2829
        %3005 = vmatpush1.bf16.msra.mxu0 %v2828
        %3006 = vmatprep.subr.bf16.mxu0 %v2845
        %3007 = vmatpush1.bf16.msra.mxu0 %v2844
        %3008 = vmatprep.subr.bf16.mxu0 %v2861
        %3009 = vmatpush1.bf16.msra.mxu0 %v2860
        %3010 = vmatprep.subr.bf16.mxu0 0
        %3011 = vmatpush1.bf16.msra.mxu0 0
        %3012 = vmatprep.subr.bf16.mxu0 0
        %3013 = vmatpush1.bf16.msra.mxu0 0
        %3014 = vmatprep.subr.bf16.mxu0 0
        %3015 = vmatpush1.bf16.msra.mxu0 0
        %3016 = vmatprep.subr.bf16.mxu0 0
        %3017 = vmatpush1.bf16.msra.mxu0 0
        %3018 = vmatprep.subr.bf16.mxu0 0
        %3019 = vmatpush1.bf16.msra.mxu0 0
        %3020 = vmatprep.subr.bf16.mxu0 0
        %3021 = vmatpush1.bf16.msra.mxu0 0
        %3022 = vmatprep.subr.bf16.mxu0 0
        %3023 = vmatpush1.bf16.msra.mxu0 0
        %3024 = vmatprep.subr.bf16.mxu0 0
        %3025 = vmatpush1.bf16.msra.mxu0 0
        %3026 = vmatprep.subr.bf16.mxu0 0
        %3027 = vmatpush1.bf16.msra.mxu0 0
        %3028 = vmatprep.subr.bf16.mxu0 0
        %3029 = vmatpush1.bf16.msra.mxu0 0
        %3030 = vmatprep.subr.bf16.mxu0 0
        %3031 = vmatpush1.bf16.msra.mxu0 0
        %3032 = vmatprep.subr.bf16.mxu0 0
        %3033 = vmatpush1.bf16.msra.mxu0 0
        %3034 = vmatprep.mubr.bf16.mxu0 0
        %3035 = vmatmul.mubr.bf16.gmra.mrb[0].mxu0 %v2877
        %v3036 = vpop.f32.mrb[0].mxu0
        %v3037 = vadd.f32 %v2874, %v3036
        %v3038 = vpop.f32.mrb[0].mxu0
        %v3039 = vadd.f32 %v2874, %v3038
        %v3040 = vpop.f32.mrb[0].mxu0
        %v3041 = vpop.f32.mrb[0].mxu0
        %3042 = vdwg.mxu0
        %3043 = vmatprep.subr.bf16.mxu0 %v2815
        %3044 = vmatpush1.bf16.msra.mxu0 %v2814
        %3045 = vmatprep.subr.bf16.mxu0 %v2831
        %3046 = vmatpush1.bf16.msra.mxu0 %v2830
        %3047 = vmatprep.subr.bf16.mxu0 %v2847
        %3048 = vmatpush1.bf16.msra.mxu0 %v2846
        %3049 = vmatprep.subr.bf16.mxu0 %v2863
        %3050 = vmatpush1.bf16.msra.mxu0 %v2862
        %3051 = vmatprep.subr.bf16.mxu0 0
        %3052 = vmatpush1.bf16.msra.mxu0 0
        %3053 = vmatprep.subr.bf16.mxu0 0
        %3054 = vmatpush1.bf16.msra.mxu0 0
        %3055 = vmatprep.subr.bf16.mxu0 0
        %3056 = vmatpush1.bf16.msra.mxu0 0
        %3057 = vmatprep.subr.bf16.mxu0 0
        %3058 = vmatpush1.bf16.msra.mxu0 0
        %3059 = vmatprep.subr.bf16.mxu0 0
        %3060 = vmatpush1.bf16.msra.mxu0 0
        %3061 = vmatprep.subr.bf16.mxu0 0
        %3062 = vmatpush1.bf16.msra.mxu0 0
        %3063 = vmatprep.subr.bf16.mxu0 0
        %3064 = vmatpush1.bf16.msra.mxu0 0
        %3065 = vmatprep.subr.bf16.mxu0 0
        %3066 = vmatpush1.bf16.msra.mxu0 0
        %3067 = vmatprep.subr.bf16.mxu0 0
        %3068 = vmatpush1.bf16.msra.mxu0 0
        %3069 = vmatprep.subr.bf16.mxu0 0
        %3070 = vmatpush1.bf16.msra.mxu0 0
        %3071 = vmatprep.subr.bf16.mxu0 0
        %3072 = vmatpush1.bf16.msra.mxu0 0
        %3073 = vmatprep.subr.bf16.mxu0 0
        %3074 = vmatpush1.bf16.msra.mxu0 0
        %3075 = vmatprep.mubr.bf16.mxu0 0
        %3076 = vmatmul.mubr.bf16.gmra.mrb[0].mxu0 %v2877
        %v3077 = vpop.f32.mrb[0].mxu0
        %v3078 = vadd.f32 %v2874, %v3077
        %v3079 = vpop.f32.mrb[0].mxu0
        %v3080 = vadd.f32 %v2874, %v3079
        %v3081 = vpop.f32.mrb[0].mxu0
        %v3082 = vpop.f32.mrb[0].mxu0
        %3083 = vdwg.mxu0
        %3084 = vmatprep.subr.bf16.mxu0 %v2817
        %3085 = vmatpush1.bf16.msra.mxu0 %v2816
        %3086 = vmatprep.subr.bf16.mxu0 %v2833
        %3087 = vmatpush1.bf16.msra.mxu0 %v2832
        %3088 = vmatprep.subr.bf16.mxu0 %v2849
        %3089 = vmatpush1.bf16.msra.mxu0 %v2848
        %3090 = vmatprep.subr.bf16.mxu0 %v2865
        %3091 = vmatpush1.bf16.msra.mxu0 %v2864
        %3092 = vmatprep.subr.bf16.mxu0 0
        %3093 = vmatpush1.bf16.msra.mxu0 0
        %3094 = vmatprep.subr.bf16.mxu0 0
        %3095 = vmatpush1.bf16.msra.mxu0 0
        %3096 = vmatprep.subr.bf16.mxu0 0
        %3097 = vmatpush1.bf16.msra.mxu0 0
        %3098 = vmatprep.subr.bf16.mxu0 0
        %3099 = vmatpush1.bf16.msra.mxu0 0
        %3100 = vmatprep.subr.bf16.mxu0 0
        %3101 = vmatpush1.bf16.msra.mxu0 0
        %3102 = vmatprep.subr.bf16.mxu0 0
        %3103 = vmatpush1.bf16.msra.mxu0 0
        %3104 = vmatprep.subr.bf16.mxu0 0
        %3105 = vmatpush1.bf16.msra.mxu0 0
        %3106 = vmatprep.subr.bf16.mxu0 0
        %3107 = vmatpush1.bf16.msra.mxu0 0
        %3108 = vmatprep.subr.bf16.mxu0 0
        %3109 = vmatpush1.bf16.msra.mxu0 0
        %3110 = vmatprep.subr.bf16.mxu0 0
        %3111 = vmatpush1.bf16.msra.mxu0 0
        %3112 = vmatprep.subr.bf16.mxu0 0
        %3113 = vmatpush1.bf16.msra.mxu0 0
        %3114 = vmatprep.subr.bf16.mxu0 0
        %3115 = vmatpush1.bf16.msra.mxu0 0
        %3116 = vmatprep.mubr.bf16.mxu0 0
        %3117 = vmatmul.mubr.bf16.gmra.mrb[0].mxu0 %v2877
        %v3118 = vpop.f32.mrb[0].mxu0
        %v3119 = vadd.f32 %v2874, %v3118
        %v3120 = vpop.f32.mrb[0].mxu0
        %v3121 = vadd.f32 %v2874, %v3120
        %v3122 = vpop.f32.mrb[0].mxu0
        %v3123 = vpop.f32.mrb[0].mxu0
        %3124 = vdwg.mxu0
        %3125 = vmatprep.subr.bf16.mxu0 %v2819
        %3126 = vmatpush1.bf16.msra.mxu0 %v2818
        %3127 = vmatprep.subr.bf16.mxu0 %v2835
        %3128 = vmatpush1.bf16.msra.mxu0 %v2834
        %3129 = vmatprep.subr.bf16.mxu0 %v2851
        %3130 = vmatpush1.bf16.msra.mxu0 %v2850
        %3131 = vmatprep.subr.bf16.mxu0 %v2867
        %3132 = vmatpush1.bf16.msra.mxu0 %v2866
        %3133 = vmatprep.subr.bf16.mxu0 0
        %3134 = vmatpush1.bf16.msra.mxu0 0
        %3135 = vmatprep.subr.bf16.mxu0 0
        %3136 = vmatpush1.bf16.msra.mxu0 0
        %3137 = vmatprep.subr.bf16.mxu0 0
        %3138 = vmatpush1.bf16.msra.mxu0 0
        %3139 = vmatprep.subr.bf16.mxu0 0
        %3140 = vmatpush1.bf16.msra.mxu0 0
        %3141 = vmatprep.subr.bf16.mxu0 0
        %3142 = vmatpush1.bf16.msra.mxu0 0
        %3143 = vmatprep.subr.bf16.mxu0 0
        %3144 = vmatpush1.bf16.msra.mxu0 0
        %3145 = vmatprep.subr.bf16.mxu0 0
        %3146 = vmatpush1.bf16.msra.mxu0 0
        %3147 = vmatprep.subr.bf16.mxu0 0
        %3148 = vmatpush1.bf16.msra.mxu0 0
        %3149 = vmatprep.subr.bf16.mxu0 0
        %3150 = vmatpush1.bf16.msra.mxu0 0
        %3151 = vmatprep.subr.bf16.mxu0 0
        %3152 = vmatpush1.bf16.msra.mxu0 0
        %3153 = vmatprep.subr.bf16.mxu0 0
        %3154 = vmatpush1.bf16.msra.mxu0 0
        %3155 = vmatprep.subr.bf16.mxu0 0
        %3156 = vmatpush1.bf16.msra.mxu0 0
        %3157 = vmatprep.mubr.bf16.mxu0 0
        %3158 = vmatmul.mubr.bf16.gmra.mrb[0].mxu0 %v2877
        %v3159 = vpop.f32.mrb[0].mxu0
        %v3160 = vadd.f32 %v2874, %v3159
        %v3161 = vpop.f32.mrb[0].mxu0
        %v3162 = vadd.f32 %v2874, %v3161
        %v3163 = vpop.f32.mrb[0].mxu0
        %v3164 = vpop.f32.mrb[0].mxu0
        %3165 = vdwg.mxu0
        %3166 = vmatprep.subr.bf16.mxu0 %v2821
        %3167 = vmatpush1.bf16.msra.mxu0 %v2820
        %3168 = vmatprep.subr.bf16.mxu0 %v2837
        %3169 = vmatpush1.bf16.msra.mxu0 %v2836
        %3170 = vmatprep.subr.bf16.mxu0 %v2853
        %3171 = vmatpush1.bf16.msra.mxu0 %v2852
        %3172 = vmatprep.subr.bf16.mxu0 %v2869
        %3173 = vmatpush1.bf16.msra.mxu0 %v2868
        %3174 = vmatprep.subr.bf16.mxu0 0
        %3175 = vmatpush1.bf16.msra.mxu0 0
        %3176 = vmatprep.subr.bf16.mxu0 0
        %3177 = vmatpush1.bf16.msra.mxu0 0
        %3178 = vmatprep.subr.bf16.mxu0 0
        %3179 = vmatpush1.bf16.msra.mxu0 0
        %3180 = vmatprep.subr.bf16.mxu0 0
        %3181 = vmatpush1.bf16.msra.mxu0 0
        %3182 = vmatprep.subr.bf16.mxu0 0
        %3183 = vmatpush1.bf16.msra.mxu0 0
        %3184 = vmatprep.subr.bf16.mxu0 0
        %3185 = vmatpush1.bf16.msra.mxu0 0
        %3186 = vmatprep.subr.bf16.mxu0 0
        %3187 = vmatpush1.bf16.msra.mxu0 0
        %3188 = vmatprep.subr.bf16.mxu0 0
        %3189 = vmatpush1.bf16.msra.mxu0 0
        %3190 = vmatprep.subr.bf16.mxu0 0
        %3191 = vmatpush1.bf16.msra.mxu0 0
        %3192 = vmatprep.subr.bf16.mxu0 0
        %3193 = vmatpush1.bf16.msra.mxu0 0
        %3194 = vmatprep.subr.bf16.mxu0 0
        %3195 = vmatpush1.bf16.msra.mxu0 0
        %3196 = vmatprep.subr.bf16.mxu0 0
        %3197 = vmatpush1.bf16.msra.mxu0 0
        %3198 = vmatprep.mubr.bf16.mxu0 0
        %3199 = vmatmul.mubr.bf16.gmra.mrb[0].mxu0 %v2877
        %v3200 = vpop.f32.mrb[0].mxu0
        %v3201 = vadd.f32 %v2874, %v3200
        %v3202 = vpop.f32.mrb[0].mxu0
        %v3203 = vadd.f32 %v2874, %v3202
        %v3204 = vpop.f32.mrb[0].mxu0
        %v3205 = vpop.f32.mrb[0].mxu0
        %3206 = vdwg.mxu0
        %v3207 = vxor.u32 %v2914, 2147483648
        %v3208 = vxor.u32 %v2916, 2147483648
        %v3209 = vxor.u32 %v2955, 2147483648
        %v3210 = vxor.u32 %v2957, 2147483648
        %v3211 = vxor.u32 %v2996, 2147483648
        %v3212 = vxor.u32 %v2998, 2147483648
        %v3213 = vxor.u32 %v3037, 2147483648
        %v3214 = vxor.u32 %v3039, 2147483648
        %v3215 = vxor.u32 %v3078, 2147483648
        %v3216 = vxor.u32 %v3080, 2147483648
        %v3217 = vxor.u32 %v3119, 2147483648
        %v3218 = vxor.u32 %v3121, 2147483648
        %v3219 = vxor.u32 %v3160, 2147483648
        %v3220 = vxor.u32 %v3162, 2147483648
        %v3221 = vxor.u32 %v3201, 2147483648
        %v3222 = vxor.u32 %v3203, 2147483648
        %v3223 = vmul.f32 %v3207, 1.442695
        %v3224 = vpow.pop %v3223
        %v3225 = vmul.f32 %v3208, 1.442695
        %v3226 = vpow.pop %v3225
        %v3227 = vmul.f32 %v3209, 1.442695
        %v3228 = vpow.pop %v3227
        %v3229 = vmul.f32 %v3210, 1.442695
        %v3230 = vpow.pop %v3229
        %v3231 = vmul.f32 %v3211, 1.442695
        %v3232 = vpow.pop %v3231
        %v3233 = vmul.f32 %v3212, 1.442695
        %v3234 = vpow.pop %v3233
        %v3235 = vmul.f32 %v3213, 1.442695
        %v3236 = vpow.pop %v3235
        %v3237 = vmul.f32 %v3214, 1.442695
        %v3238 = vpow.pop %v3237
        %v3239 = vmul.f32 %v3215, 1.442695
        %v3240 = vpow.pop %v3239
        %v3241 = vmul.f32 %v3216, 1.442695
        %v3242 = vpow.pop %v3241
        %v3243 = vmul.f32 %v3217, 1.442695
        %v3244 = vpow.pop %v3243
        %v3245 = vmul.f32 %v3218, 1.442695
        %v3246 = vpow.pop %v3245
        %v3247 = vmul.f32 %v3219, 1.442695
        %v3248 = vpow.pop %v3247
        %v3249 = vmul.f32 %v3220, 1.442695
        %v3250 = vpow.pop %v3249
        %v3251 = vmul.f32 %v3221, 1.442695
        %v3252 = vpow.pop %v3251
        %v3253 = vmul.f32 %v3222, 1.442695
        %v3254 = vpow.pop %v3253
        %v3255 = vadd.f32 %v3224, 1.0
        %v3256 = vadd.f32 %v3226, 1.0
        %v3257 = vadd.f32 %v3228, 1.0
        %v3258 = vadd.f32 %v3230, 1.0
        %v3259 = vadd.f32 %v3232, 1.0
        %v3260 = vadd.f32 %v3234, 1.0
        %v3261 = vadd.f32 %v3236, 1.0
        %v3262 = vadd.f32 %v3238, 1.0
        %v3263 = vadd.f32 %v3240, 1.0
        %v3264 = vadd.f32 %v3242, 1.0
        %v3265 = vadd.f32 %v3244, 1.0
        %v3266 = vadd.f32 %v3246, 1.0
        %v3267 = vadd.f32 %v3248, 1.0
        %v3268 = vadd.f32 %v3250, 1.0
        %v3269 = vadd.f32 %v3252, 1.0
        %v3270 = vadd.f32 %v3254, 1.0
        %v3271 = vrcp.pop %v3255
        %v3272 = vmul.f32 1.0, %v3271
        %v3273 = vrcp.pop %v3256
        %v3274 = vmul.f32 1.0, %v3273
        %v3275 = vrcp.pop %v3257
        %v3276 = vmul.f32 1.0, %v3275
        %v3277 = vrcp.pop %v3258
        %v3278 = vmul.f32 1.0, %v3277
        %v3279 = vrcp.pop %v3259
        %v3280 = vmul.f32 1.0, %v3279
        %v3281 = vrcp.pop %v3260
        %v3282 = vmul.f32 1.0, %v3281
        %v3283 = vrcp.pop %v3261
        %v3284 = vmul.f32 1.0, %v3283
        %v3285 = vrcp.pop %v3262
        %v3286 = vmul.f32 1.0, %v3285
        %v3287 = vrcp.pop %v3263
        %v3288 = vmul.f32 1.0, %v3287
        %v3289 = vrcp.pop %v3264
        %v3290 = vmul.f32 1.0, %v3289
        %v3291 = vrcp.pop %v3265
        %v3292 = vmul.f32 1.0, %v3291
        %v3293 = vrcp.pop %v3266
        %v3294 = vmul.f32 1.0, %v3293
        %v3295 = vrcp.pop %v3267
        %v3296 = vmul.f32 1.0, %v3295
        %v3297 = vrcp.pop %v3268
        %v3298 = vmul.f32 1.0, %v3297
        %v3299 = vrcp.pop %v3269
        %v3300 = vmul.f32 1.0, %v3299
        %v3301 = vrcp.pop %v3270
        %v3302 = vmul.f32 1.0, %v3301
        %v3303 = vmax.f32 %v2914, 0.0
        %v3304 = vmax.f32 %v2916, 0.0
        %v3305 = vmax.f32 %v2955, 0.0
        %v3306 = vmax.f32 %v2957, 0.0
        %v3307 = vmax.f32 %v2996, 0.0
        %v3308 = vmax.f32 %v2998, 0.0
        %v3309 = vmax.f32 %v3037, 0.0
        %v3310 = vmax.f32 %v3039, 0.0
        %v3311 = vmax.f32 %v3078, 0.0
        %v3312 = vmax.f32 %v3080, 0.0
        %v3313 = vmax.f32 %v3119, 0.0
        %v3314 = vmax.f32 %v3121, 0.0
        %v3315 = vmax.f32 %v3160, 0.0
        %v3316 = vmax.f32 %v3162, 0.0
        %v3317 = vmax.f32 %v3201, 0.0
        %v3318 = vmax.f32 %v3203, 0.0
        %v3319 = vsub.f32 0.0, %v3303
        %v3320 = vsub.f32 0.0, %v3304
        %v3321 = vsub.f32 0.0, %v3305
        %v3322 = vsub.f32 0.0, %v3306
        %v3323 = vsub.f32 0.0, %v3307
        %v3324 = vsub.f32 0.0, %v3308
        %v3325 = vsub.f32 0.0, %v3309
        %v3326 = vsub.f32 0.0, %v3310
        %v3327 = vsub.f32 0.0, %v3311
        %v3328 = vsub.f32 0.0, %v3312
        %v3329 = vsub.f32 0.0, %v3313
        %v3330 = vsub.f32 0.0, %v3314
        %v3331 = vsub.f32 0.0, %v3315
        %v3332 = vsub.f32 0.0, %v3316
        %v3333 = vsub.f32 0.0, %v3317
        %v3334 = vsub.f32 0.0, %v3318
        %v3335 = vld [vmem:[%s698] sm:$0xff]
        %v3336 = vld [vmem:[%s698 + $0x8] sm:$0xff]
        %v3339 = vlaneseq
        %v3340 = vshrl.u32 %v3339, 7
        %v3341 = vsub.s32 0, %v3340
        %v3342 = vrot.slane %v3335, %v3341
        %v3343 = vlaneseq
        %v3344 = vshrl.u32 %v3343, 7
        %v3345 = vsub.s32 1, %v3344
        %v3346 = vrot.slane %v3335, %v3345
        %v3347 = vlaneseq
        %v3348 = vshrl.u32 %v3347, 7
        %v3349 = vsub.s32 2, %v3348
        %v3350 = vrot.slane %v3335, %v3349
        %v3351 = vlaneseq
        %v3352 = vshrl.u32 %v3351, 7
        %v3353 = vsub.s32 3, %v3352
        %v3354 = vrot.slane %v3335, %v3353
        %v3355 = vlaneseq
        %v3356 = vshrl.u32 %v3355, 7
        %v3357 = vsub.s32 4, %v3356
        %v3358 = vrot.slane %v3335, %v3357
        %v3359 = vlaneseq
        %v3360 = vshrl.u32 %v3359, 7
        %v3361 = vsub.s32 5, %v3360
        %v3362 = vrot.slane %v3335, %v3361
        %v3363 = vlaneseq
        %v3364 = vshrl.u32 %v3363, 7
        %v3365 = vsub.s32 6, %v3364
        %v3366 = vrot.slane %v3335, %v3365
        %v3367 = vlaneseq
        %v3368 = vshrl.u32 %v3367, 7
        %v3369 = vsub.s32 7, %v3368
        %v3370 = vrot.slane %v3335, %v3369
        %v3371 = vlaneseq
        %v3372 = vshrl.u32 %v3371, 7
        %v3373 = vsub.s32 0, %v3372
        %v3374 = vrot.slane %v3336, %v3373
        %v3375 = vlaneseq
        %v3376 = vshrl.u32 %v3375, 7
        %v3377 = vsub.s32 1, %v3376
        %v3378 = vrot.slane %v3336, %v3377
        %v3379 = vlaneseq
        %v3380 = vshrl.u32 %v3379, 7
        %v3381 = vsub.s32 2, %v3380
        %v3382 = vrot.slane %v3336, %v3381
        %v3383 = vlaneseq
        %v3384 = vshrl.u32 %v3383, 7
        %v3385 = vsub.s32 3, %v3384
        %v3386 = vrot.slane %v3336, %v3385
        %v3387 = vlaneseq
        %v3388 = vshrl.u32 %v3387, 7
        %v3389 = vsub.s32 4, %v3388
        %v3390 = vrot.slane %v3336, %v3389
        %v3391 = vlaneseq
        %v3392 = vshrl.u32 %v3391, 7
        %v3393 = vsub.s32 5, %v3392
        %v3394 = vrot.slane %v3336, %v3393
        %v3395 = vlaneseq
        %v3396 = vshrl.u32 %v3395, 7
        %v3397 = vsub.s32 6, %v3396
        %v3398 = vrot.slane %v3336, %v3397
        %v3399 = vlaneseq
        %v3400 = vshrl.u32 %v3399, 7
        %v3401 = vsub.s32 7, %v3400
        %v3402 = vrot.slane %v3336, %v3401
        %v3419 = vmul.f32 %v3319, %v3342
        %v3420 = vmul.f32 %v3320, %v3346
        %v3421 = vmul.f32 %v3321, %v3350
        %v3422 = vmul.f32 %v3322, %v3354
        %v3423 = vmul.f32 %v3323, %v3358
        %v3424 = vmul.f32 %v3324, %v3362
        %v3425 = vmul.f32 %v3325, %v3366
        %v3426 = vmul.f32 %v3326, %v3370
        %v3427 = vmul.f32 %v3327, %v3374
        %v3428 = vmul.f32 %v3328, %v3378
        %v3429 = vmul.f32 %v3329, %v3382
        %v3430 = vmul.f32 %v3330, %v3386
        %v3431 = vmul.f32 %v3331, %v3390
        %v3432 = vmul.f32 %v3332, %v3394
        %v3433 = vmul.f32 %v3333, %v3398
        %v3434 = vmul.f32 %v3334, %v3402
        %v3435 = vmul.f32 %v3419, 1.442695
        %v3436 = vpow.pop %v3435
        %v3437 = vmul.f32 %v3420, 1.442695
        %v3438 = vpow.pop %v3437
        %v3439 = vmul.f32 %v3421, 1.442695
        %v3440 = vpow.pop %v3439
        %v3441 = vmul.f32 %v3422, 1.442695
        %v3442 = vpow.pop %v3441
        %v3443 = vmul.f32 %v3423, 1.442695
        %v3444 = vpow.pop %v3443
        %v3445 = vmul.f32 %v3424, 1.442695
        %v3446 = vpow.pop %v3445
        %v3447 = vmul.f32 %v3425, 1.442695
        %v3448 = vpow.pop %v3447
        %v3449 = vmul.f32 %v3426, 1.442695
        %v3450 = vpow.pop %v3449
        %v3451 = vmul.f32 %v3427, 1.442695
        %v3452 = vpow.pop %v3451
        %v3453 = vmul.f32 %v3428, 1.442695
        %v3454 = vpow.pop %v3453
        %v3455 = vmul.f32 %v3429, 1.442695
        %v3456 = vpow.pop %v3455
        %v3457 = vmul.f32 %v3430, 1.442695
        %v3458 = vpow.pop %v3457
        %v3459 = vmul.f32 %v3431, 1.442695
        %v3460 = vpow.pop %v3459
        %v3461 = vmul.f32 %v3432, 1.442695
        %v3462 = vpow.pop %v3461
        %v3463 = vmul.f32 %v3433, 1.442695
        %v3464 = vpow.pop %v3463
        %v3465 = vmul.f32 %v3434, 1.442695
        %v3466 = vpow.pop %v3465
        %v3467 = vsub.f32 1.0, %v3436
        %v3468 = vsub.f32 1.0, %v3438
        %v3469 = vsub.f32 1.0, %v3440
        %v3470 = vsub.f32 1.0, %v3442
        %v3471 = vsub.f32 1.0, %v3444
        %v3472 = vsub.f32 1.0, %v3446
        %v3473 = vsub.f32 1.0, %v3448
        %v3474 = vsub.f32 1.0, %v3450
        %v3475 = vsub.f32 1.0, %v3452
        %v3476 = vsub.f32 1.0, %v3454
        %v3477 = vsub.f32 1.0, %v3456
        %v3478 = vsub.f32 1.0, %v3458
        %v3479 = vsub.f32 1.0, %v3460
        %v3480 = vsub.f32 1.0, %v3462
        %v3481 = vsub.f32 1.0, %v3464
        %v3482 = vsub.f32 1.0, %v3466
        %v3483 = vld [vmem:[%s694] sm:$0xff]
        %v3484 = vld [vmem:[%s694 + $0x8] sm:$0xff]
        %v3485 = vlaneseq
        %v3486 = vshrl.u32 %v3485, 7
        %v3487 = vsub.s32 0, %v3486
        %v3488 = vrot.slane %v3467, %v3487
        %v3489 = vmul.f32 %v3488, %v3272
        %v3490 = vadd.f32 %v3489, 0.0
        %v3491 = vmul.f32 %v3467, %v3483
        %v3492 = vadd.f32 %v3491, 0.0
        %v3493 = vadd.f32 %v3467, 0.0
        %vm3494 = vcmp.ge.f32.partialorder %v3467, -1.0
        %v3495 = vsel %vm3494, %v3467, -1.0
        %v3496 = vsel %vm3494, %v3483, 0.0
        %v3497 = vsub.f32 1.0, %v3467
        %v3498 = vadd.f32 %v3497, 1e-10
        %v3499 = vmul.f32 %v3468, %v3498
        %v3500 = vlaneseq
        %v3501 = vshrl.u32 %v3500, 7
        %v3502 = vsub.s32 0, %v3501
        %v3503 = vrot.slane %v3499, %v3502
        %v3504 = vmul.f32 %v3503, %v3274
        %v3505 = vadd.f32 %v3490, %v3504
        %v3507 = vlaneseq
        %v3508 = vshrl.u32 %v3507, 7
        %v3509 = vsub.s32 1, %v3508
        %v3510 = vrot.slane %v3483, %v3509
        %v3512 = vmul.f32 %v3499, %v3510
        %v3513 = vadd.f32 %v3492, %v3512
        %v3514 = vadd.f32 %v3493, %v3499
        %vm3515 = vcmp.ge.f32.partialorder %v3499, %v3495
        %v3516 = vsel %vm3515, %v3499, %v3495
        %v3517 = vsel %vm3515, %v3510, %v3496
        %v3518 = vsub.f32 1.0, %v3468
        %v3519 = vadd.f32 %v3518, 1e-10
        %v3520 = vmul.f32 %v3498, %v3519
        %v3521 = vmul.f32 %v3469, %v3520
        %v3522 = vlaneseq
        %v3523 = vshrl.u32 %v3522, 7
        %v3524 = vsub.s32 0, %v3523
        %v3525 = vrot.slane %v3521, %v3524
        %v3526 = vmul.f32 %v3525, %v3276
        %v3527 = vadd.f32 %v3505, %v3526
        %v3528 = vlaneseq
        %v3529 = vshrl.u32 %v3528, 7
        %v3530 = vsub.s32 2, %v3529
        %v3531 = vrot.slane %v3483, %v3530
        %v3533 = vmul.f32 %v3521, %v3531
        %v3534 = vadd.f32 %v3513, %v3533
        %v3535 = vadd.f32 %v3514, %v3521
        %vm3536 = vcmp.ge.f32.partialorder %v3521, %v3516
        %v3537 = vsel %vm3536, %v3521, %v3516
        %v3538 = vsel %vm3536, %v3531, %v3517
        %v3539 = vsub.f32 1.0, %v3469
        %v3540 = vadd.f32 %v3539, 1e-10
        %v3541 = vmul.f32 %v3520, %v3540
        %v3542 = vmul.f32 %v3470, %v3541
        %v3543 = vlaneseq
        %v3544 = vshrl.u32 %v3543, 7
        %v3545 = vsub.s32 0, %v3544
        %v3546 = vrot.slane %v3542, %v3545
        %v3547 = vmul.f32 %v3546, %v3278
        %v3548 = vadd.f32 %v3527, %v3547
        %v3549 = vlaneseq
        %v3550 = vshrl.u32 %v3549, 7
        %v3551 = vsub.s32 3, %v3550
        %v3552 = vrot.slane %v3483, %v3551
        %v3554 = vmul.f32 %v3542, %v3552
        %v3555 = vadd.f32 %v3534, %v3554
        %v3556 = vadd.f32 %v3535, %v3542
        %vm3557 = vcmp.ge.f32.partialorder %v3542, %v3537
        %v3558 = vsel %vm3557, %v3542, %v3537
        %v3559 = vsel %vm3557, %v3552, %v3538
        %v3560 = vsub.f32 1.0, %v3470
        %v3561 = vadd.f32 %v3560, 1e-10
        %v3562 = vmul.f32 %v3541, %v3561
        %v3563 = vmul.f32 %v3471, %v3562
        %v3564 = vlaneseq
        %v3565 = vshrl.u32 %v3564, 7
        %v3566 = vsub.s32 0, %v3565
        %v3567 = vrot.slane %v3563, %v3566
        %v3568 = vmul.f32 %v3567, %v3280
        %v3569 = vadd.f32 %v3548, %v3568
        %v3570 = vlaneseq
        %v3571 = vshrl.u32 %v3570, 7
        %v3572 = vsub.s32 4, %v3571
        %v3573 = vrot.slane %v3483, %v3572
        %v3575 = vmul.f32 %v3563, %v3573
        %v3576 = vadd.f32 %v3555, %v3575
        %v3577 = vadd.f32 %v3556, %v3563
        %vm3578 = vcmp.ge.f32.partialorder %v3563, %v3558
        %v3579 = vsel %vm3578, %v3563, %v3558
        %v3580 = vsel %vm3578, %v3573, %v3559
        %v3581 = vsub.f32 1.0, %v3471
        %v3582 = vadd.f32 %v3581, 1e-10
        %v3583 = vmul.f32 %v3562, %v3582
        %v3584 = vmul.f32 %v3472, %v3583
        %v3585 = vlaneseq
        %v3586 = vshrl.u32 %v3585, 7
        %v3587 = vsub.s32 0, %v3586
        %v3588 = vrot.slane %v3584, %v3587
        %v3589 = vmul.f32 %v3588, %v3282
        %v3590 = vadd.f32 %v3569, %v3589
        %v3591 = vlaneseq
        %v3592 = vshrl.u32 %v3591, 7
        %v3593 = vsub.s32 5, %v3592
        %v3594 = vrot.slane %v3483, %v3593
        %v3596 = vmul.f32 %v3584, %v3594
        %v3597 = vadd.f32 %v3576, %v3596
        %v3598 = vadd.f32 %v3577, %v3584
        %vm3599 = vcmp.ge.f32.partialorder %v3584, %v3579
        %v3600 = vsel %vm3599, %v3584, %v3579
        %v3601 = vsel %vm3599, %v3594, %v3580
        %v3602 = vsub.f32 1.0, %v3472
        %v3603 = vadd.f32 %v3602, 1e-10
        %v3604 = vmul.f32 %v3583, %v3603
        %v3605 = vmul.f32 %v3473, %v3604
        %v3606 = vlaneseq
        %v3607 = vshrl.u32 %v3606, 7
        %v3608 = vsub.s32 0, %v3607
        %v3609 = vrot.slane %v3605, %v3608
        %v3610 = vmul.f32 %v3609, %v3284
        %v3611 = vadd.f32 %v3590, %v3610
        %v3612 = vlaneseq
        %v3613 = vshrl.u32 %v3612, 7
        %v3614 = vsub.s32 6, %v3613
        %v3615 = vrot.slane %v3483, %v3614
        %v3617 = vmul.f32 %v3605, %v3615
        %v3618 = vadd.f32 %v3597, %v3617
        %v3619 = vadd.f32 %v3598, %v3605
        %vm3620 = vcmp.ge.f32.partialorder %v3605, %v3600
        %v3621 = vsel %vm3620, %v3605, %v3600
        %v3622 = vsel %vm3620, %v3615, %v3601
        %v3623 = vsub.f32 1.0, %v3473
        %v3624 = vadd.f32 %v3623, 1e-10
        %v3625 = vmul.f32 %v3604, %v3624
        %v3626 = vmul.f32 %v3474, %v3625
        %v3627 = vlaneseq
        %v3628 = vshrl.u32 %v3627, 7
        %v3629 = vsub.s32 0, %v3628
        %v3630 = vrot.slane %v3626, %v3629
        %v3631 = vmul.f32 %v3630, %v3286
        %v3632 = vadd.f32 %v3611, %v3631
        %v3633 = vlaneseq
        %v3634 = vshrl.u32 %v3633, 7
        %v3635 = vsub.s32 7, %v3634
        %v3636 = vrot.slane %v3483, %v3635
        %v3638 = vmul.f32 %v3626, %v3636
        %v3639 = vadd.f32 %v3618, %v3638
        %v3640 = vadd.f32 %v3619, %v3626
        %vm3641 = vcmp.ge.f32.partialorder %v3626, %v3621
        %v3642 = vsel %vm3641, %v3626, %v3621
        %v3643 = vsel %vm3641, %v3636, %v3622
        %v3644 = vsub.f32 1.0, %v3474
        %v3645 = vadd.f32 %v3644, 1e-10
        %v3646 = vmul.f32 %v3625, %v3645
        %v3647 = vmul.f32 %v3475, %v3646
        %v3648 = vlaneseq
        %v3649 = vshrl.u32 %v3648, 7
        %v3650 = vsub.s32 0, %v3649
        %v3651 = vrot.slane %v3647, %v3650
        %v3652 = vmul.f32 %v3651, %v3288
        %v3653 = vadd.f32 %v3632, %v3652
        %v3654 = vmul.f32 %v3647, %v3484
        %v3655 = vadd.f32 %v3639, %v3654
        %v3656 = vadd.f32 %v3640, %v3647
        %vm3657 = vcmp.ge.f32.partialorder %v3647, %v3642
        %v3658 = vsel %vm3657, %v3647, %v3642
        %v3659 = vsel %vm3657, %v3484, %v3643
        %v3660 = vsub.f32 1.0, %v3475
        %v3661 = vadd.f32 %v3660, 1e-10
        %v3662 = vmul.f32 %v3646, %v3661
        %v3663 = vmul.f32 %v3476, %v3662
        %v3664 = vlaneseq
        %v3665 = vshrl.u32 %v3664, 7
        %v3666 = vsub.s32 0, %v3665
        %v3667 = vrot.slane %v3663, %v3666
        %v3668 = vmul.f32 %v3667, %v3290
        %v3669 = vadd.f32 %v3653, %v3668
        %v3671 = vlaneseq
        %v3672 = vshrl.u32 %v3671, 7
        %v3673 = vsub.s32 1, %v3672
        %v3674 = vrot.slane %v3484, %v3673
        %v3676 = vmul.f32 %v3663, %v3674
        %v3677 = vadd.f32 %v3655, %v3676
        %v3678 = vadd.f32 %v3656, %v3663
        %vm3679 = vcmp.ge.f32.partialorder %v3663, %v3658
        %v3680 = vsel %vm3679, %v3663, %v3658
        %v3681 = vsel %vm3679, %v3674, %v3659
        %v3682 = vsub.f32 1.0, %v3476
        %v3683 = vadd.f32 %v3682, 1e-10
        %v3684 = vmul.f32 %v3662, %v3683
        %v3685 = vmul.f32 %v3477, %v3684
        %v3686 = vlaneseq
        %v3687 = vshrl.u32 %v3686, 7
        %v3688 = vsub.s32 0, %v3687
        %v3689 = vrot.slane %v3685, %v3688
        %v3690 = vmul.f32 %v3689, %v3292
        %v3691 = vadd.f32 %v3669, %v3690
        %v3692 = vlaneseq
        %v3693 = vshrl.u32 %v3692, 7
        %v3694 = vsub.s32 2, %v3693
        %v3695 = vrot.slane %v3484, %v3694
        %v3697 = vmul.f32 %v3685, %v3695
        %v3698 = vadd.f32 %v3677, %v3697
        %v3699 = vadd.f32 %v3678, %v3685
        %vm3700 = vcmp.ge.f32.partialorder %v3685, %v3680
        %v3701 = vsel %vm3700, %v3685, %v3680
        %v3702 = vsel %vm3700, %v3695, %v3681
        %v3703 = vsub.f32 1.0, %v3477
        %v3704 = vadd.f32 %v3703, 1e-10
        %v3705 = vmul.f32 %v3684, %v3704
        %v3706 = vmul.f32 %v3478, %v3705
        %v3707 = vlaneseq
        %v3708 = vshrl.u32 %v3707, 7
        %v3709 = vsub.s32 0, %v3708
        %v3710 = vrot.slane %v3706, %v3709
        %v3711 = vmul.f32 %v3710, %v3294
        %v3712 = vadd.f32 %v3691, %v3711
        %v3713 = vlaneseq
        %v3714 = vshrl.u32 %v3713, 7
        %v3715 = vsub.s32 3, %v3714
        %v3716 = vrot.slane %v3484, %v3715
        %v3718 = vmul.f32 %v3706, %v3716
        %v3719 = vadd.f32 %v3698, %v3718
        %v3720 = vadd.f32 %v3699, %v3706
        %vm3721 = vcmp.ge.f32.partialorder %v3706, %v3701
        %v3722 = vsel %vm3721, %v3706, %v3701
        %v3723 = vsel %vm3721, %v3716, %v3702
        %v3724 = vsub.f32 1.0, %v3478
        %v3725 = vadd.f32 %v3724, 1e-10
        %v3726 = vmul.f32 %v3705, %v3725
        %v3727 = vmul.f32 %v3479, %v3726
        %v3728 = vlaneseq
        %v3729 = vshrl.u32 %v3728, 7
        %v3730 = vsub.s32 0, %v3729
        %v3731 = vrot.slane %v3727, %v3730
        %v3732 = vmul.f32 %v3731, %v3296
        %v3733 = vadd.f32 %v3712, %v3732
        %v3734 = vlaneseq
        %v3735 = vshrl.u32 %v3734, 7
        %v3736 = vsub.s32 4, %v3735
        %v3737 = vrot.slane %v3484, %v3736
        %v3739 = vmul.f32 %v3727, %v3737
        %v3740 = vadd.f32 %v3719, %v3739
        %v3741 = vadd.f32 %v3720, %v3727
        %vm3742 = vcmp.ge.f32.partialorder %v3727, %v3722
        %v3743 = vsel %vm3742, %v3727, %v3722
        %v3744 = vsel %vm3742, %v3737, %v3723
        %v3745 = vsub.f32 1.0, %v3479
        %v3746 = vadd.f32 %v3745, 1e-10
        %v3747 = vmul.f32 %v3726, %v3746
        %v3748 = vmul.f32 %v3480, %v3747
        %v3749 = vlaneseq
        %v3750 = vshrl.u32 %v3749, 7
        %v3751 = vsub.s32 0, %v3750
        %v3752 = vrot.slane %v3748, %v3751
        %v3753 = vmul.f32 %v3752, %v3298
        %v3754 = vadd.f32 %v3733, %v3753
        %v3755 = vlaneseq
        %v3756 = vshrl.u32 %v3755, 7
        %v3757 = vsub.s32 5, %v3756
        %v3758 = vrot.slane %v3484, %v3757
        %v3760 = vmul.f32 %v3748, %v3758
        %v3761 = vadd.f32 %v3740, %v3760
        %v3762 = vadd.f32 %v3741, %v3748
        %vm3763 = vcmp.ge.f32.partialorder %v3748, %v3743
        %v3764 = vsel %vm3763, %v3748, %v3743
        %v3765 = vsel %vm3763, %v3758, %v3744
        %v3766 = vsub.f32 1.0, %v3480
        %v3767 = vadd.f32 %v3766, 1e-10
        %v3768 = vmul.f32 %v3747, %v3767
        %v3769 = vmul.f32 %v3481, %v3768
        %v3770 = vlaneseq
        %v3771 = vshrl.u32 %v3770, 7
        %v3772 = vsub.s32 0, %v3771
        %v3773 = vrot.slane %v3769, %v3772
        %v3774 = vmul.f32 %v3773, %v3300
        %v3775 = vadd.f32 %v3754, %v3774
        %v3776 = vlaneseq
        %v3777 = vshrl.u32 %v3776, 7
        %v3778 = vsub.s32 6, %v3777
        %v3779 = vrot.slane %v3484, %v3778
        %v3781 = vmul.f32 %v3769, %v3779
        %v3782 = vadd.f32 %v3761, %v3781
        %v3783 = vadd.f32 %v3762, %v3769
        %vm3784 = vcmp.ge.f32.partialorder %v3769, %v3764
        %v3785 = vsel %vm3784, %v3769, %v3764
        %v3786 = vsel %vm3784, %v3779, %v3765
        %v3787 = vsub.f32 1.0, %v3481
        %v3788 = vadd.f32 %v3787, 1e-10
        %v3789 = vmul.f32 %v3768, %v3788
        %v3790 = vmul.f32 %v3482, %v3789
        %v3791 = vlaneseq
        %v3792 = vshrl.u32 %v3791, 7
        %v3793 = vsub.s32 0, %v3792
        %v3794 = vrot.slane %v3790, %v3793
        %v3795 = vmul.f32 %v3794, %v3302
        %v3796 = vadd.f32 %v3775, %v3795
        %v3797 = vlaneseq
        %v3798 = vshrl.u32 %v3797, 7
        %v3799 = vsub.s32 7, %v3798
        %v3800 = vrot.slane %v3484, %v3799
        %v3802 = vmul.f32 %v3790, %v3800
        %v3803 = vadd.f32 %v3782, %v3802
        %v3804 = vadd.f32 %v3783, %v3790
        %vm3805 = vcmp.ge.f32.partialorder %v3790, %v3785
        %v3806 = vsel %vm3805, %v3800, %v3786
        %3807 = vst [vmem:[%s707 - $0x1] sm:$0xe] %v3796
        %3808 = vst [vmem:[%s669] sm:$0x1] %v3803
        %3809 = vst [vmem:[%s710] sm:$0x1] %v3804
        %3810 = vst [vmem:[%s713] sm:$0x1] %v3806
        %v3811 = vld [vmem:[%s703] sm:$0xf]
        %v3812 = vld [vmem:[%s703 + $0x4] sm:$0xf]
        %v3813 = vld [vmem:[%s703 + $0x8] sm:$0xf]
        %v3814 = vld [vmem:[%s703 + $0xc] sm:$0xf]
        %v3815 = vld [vmem:[%s703 + $0x10] sm:$0xf]
        %v3816 = vld [vmem:[%s703 + $0x14] sm:$0xf]
        %v3817 = vld [vmem:[%s703 + $0x18] sm:$0x7]
        %v3818 = vld [vmem:[%s10] sm:$0xf]
        %v3819 = vld [vmem:[%s10 + $0x4] sm:$0xf]
        %v3820 = vld [vmem:[%s10 + $0x8] sm:$0xf]
        %v3821 = vld [vmem:[%s10 + $0xc] sm:$0xf]
        %v3822 = vld [vmem:[%s10 + $0x10] sm:$0xf]
        %v3823 = vld [vmem:[%s10 + $0x14] sm:$0xf]
        %v3824 = vld [vmem:[%s10 + $0x18] sm:$0xf]
        %v3825 = vld [vmem:[%s10 + $0x1c] sm:$0xf]
        %v3826 = vld [vmem:[%s11] sm:$0xff]
        %v3827 = vld [vmem:[%s11 + $0x8] sm:$0xff]
        %v3828 = vld [vmem:[%s11 + $0x10] sm:$0xff]
        %v3829 = vld [vmem:[%s11 + $0x18] sm:$0xff]
        %v3830 = vld [vmem:[%s11 + $0x20] sm:$0xff]
        %v3831 = vld [vmem:[%s11 + $0x28] sm:$0xff]
        %v3832 = vld [vmem:[%s11 + $0x30] sm:$0xff]
        %v3833 = vld [vmem:[%s11 + $0x38] sm:$0xff]
        %3835 = vset.pattern.permute.xlu0 0
        %3836 = vperm.xlu0 %3835, %v3826
        %v3837 = vpop.permute.xlu0 %3836
        %3840 = vset.pattern.permute.xlu0 0
        %3841 = vperm.xlu0 %3840, %v3827
        %v3842 = vpop.permute.xlu0 %3841
        %3845 = vset.pattern.permute.xlu0 0
        %3846 = vperm.xlu0 %3845, %v3828
        %v3847 = vpop.permute.xlu0 %3846
        %3850 = vset.pattern.permute.xlu0 0
        %3851 = vperm.xlu0 %3850, %v3829
        %v3852 = vpop.permute.xlu0 %3851
        %3855 = vset.pattern.permute.xlu0 0
        %3856 = vperm.xlu0 %3855, %v3830
        %v3857 = vpop.permute.xlu0 %3856
        %3860 = vset.pattern.permute.xlu0 0
        %3861 = vperm.xlu0 %3860, %v3831
        %v3862 = vpop.permute.xlu0 %3861
        %3865 = vset.pattern.permute.xlu0 0
        %3866 = vperm.xlu0 %3865, %v3832
        %v3867 = vpop.permute.xlu0 %3866
        %3870 = vset.pattern.permute.xlu0 0
        %3871 = vperm.xlu0 %3870, %v3833
        %v3872 = vpop.permute.xlu0 %3871
        %v3882 = vunpack.c.l.b16 %v3818
        %v3883 = vunpack.c.l.b16 %v3819
        %v3884 = vunpack.c.l.b16 %v3820
        %v3885 = vunpack.c.l.b16 %v3821
        %v3886 = vunpack.c.l.b16 %v3822
        %v3887 = vunpack.c.l.b16 %v3823
        %v3888 = vunpack.c.l.b16 %v3824
        %v3889 = vunpack.c.l.b16 %v3825
        %v3890 = vpack.c.b16 %v3883, %v3882
        %v3891 = vpack.c.b16 %v3885, %v3884
        %v3892 = vpack.c.b16 %v3887, %v3886
        %v3893 = vpack.c.b16 %v3889, %v3888
        %v3901 = vunpack.c.l.b16 %v3811
        %v3902 = vunpack.c.l.b16 %v3812
        %v3903 = vunpack.c.l.b16 %v3813
        %v3904 = vunpack.c.l.b16 %v3814
        %v3905 = vunpack.c.l.b16 %v3815
        %v3906 = vunpack.c.l.b16 %v3816
        %v3907 = vunpack.c.l.b16 %v3817
        %v3908 = vpack.c.b16 %v3902, %v3901
        %v3909 = vpack.c.b16 %v3904, %v3903
        %v3910 = vpack.c.b16 %v3906, %v3905
        %v3911 = vpack.c.b16 %v3907, %v3907
        %vm3915 = vcmask 441344
        %v3917 = vsel %vm3915, %v3890, 0
        %v3920 = vsel %vm3915, %v3891, 0
        %v3923 = vsel %vm3915, %v3892, 0
        %v3926 = vsel %vm3915, %v3893, 0
        %vm3928 = vcmask 1042432
        %v3930 = vsel %vm3928, %v3911, 0
        %3932 = vmatprep.subr.bf16.mxu0 0
        %3933 = vmatpush1.bf16.msra.mxu0 %v3908
        %3934 = vmatprep.subr.bf16.mxu0 0
        %3935 = vmatpush1.bf16.msra.mxu0 %v3909
        %3936 = vmatprep.subr.bf16.mxu0 0
        %3937 = vmatpush1.bf16.msra.mxu0 %v3910
        %3938 = vmatprep.subr.bf16.mxu0 0
        %3939 = vmatpush1.bf16.msra.mxu0 %v3930
        %3940 = vmatprep.subr.bf16.mxu0 0
        %3941 = vmatpush1.bf16.msra.mxu0 0
        %3942 = vmatprep.subr.bf16.mxu0 0
        %3943 = vmatpush1.bf16.msra.mxu0 0
        %3944 = vmatprep.subr.bf16.mxu0 0
        %3945 = vmatpush1.bf16.msra.mxu0 0
        %3946 = vmatprep.subr.bf16.mxu0 0
        %3947 = vmatpush1.bf16.msra.mxu0 0
        %3948 = vmatprep.subr.bf16.mxu0 0
        %3949 = vmatpush1.bf16.msra.mxu0 0
        %3950 = vmatprep.subr.bf16.mxu0 0
        %3951 = vmatpush1.bf16.msra.mxu0 0
        %3952 = vmatprep.subr.bf16.mxu0 0
        %3953 = vmatpush1.bf16.msra.mxu0 0
        %3954 = vmatprep.subr.bf16.mxu0 0
        %3955 = vmatpush1.bf16.msra.mxu0 0
        %3956 = vmatprep.subr.bf16.mxu0 0
        %3957 = vmatpush1.bf16.msra.mxu0 0
        %3958 = vmatprep.subr.bf16.mxu0 0
        %3959 = vmatpush1.bf16.msra.mxu0 0
        %3960 = vmatprep.subr.bf16.mxu0 0
        %3961 = vmatpush1.bf16.msra.mxu0 0
        %3962 = vmatprep.subr.bf16.mxu0 0
        %3963 = vmatpush1.bf16.msra.mxu0 0
        %3964 = vmatprep.mubr.bf16.mxu0 0
        %3965 = vmatmul.mubr.bf16.gmra.mrb[0].mxu0 %v3917
        %v3966 = vpop.f32.mrb[0].mxu0
        %v3967 = vadd.f32 %v3837, %v3966
        %v3968 = vpop.f32.mrb[0].mxu0
        %v3969 = vpop.f32.mrb[0].mxu0
        %v3970 = vadd.f32 %v3842, %v3969
        %v3971 = vpop.f32.mrb[0].mxu0
        %3972 = vmatprep.mubr.bf16.mxu0 0
        %3973 = vmatmul.mubr.bf16.gmra.mrb[0].mxu0 %v3920
        %v3974 = vpop.f32.mrb[0].mxu0
        %v3975 = vadd.f32 %v3847, %v3974
        %v3976 = vpop.f32.mrb[0].mxu0
        %v3977 = vpop.f32.mrb[0].mxu0
        %v3978 = vadd.f32 %v3852, %v3977
        %v3979 = vpop.f32.mrb[0].mxu0
        %3980 = vmatprep.mubr.bf16.mxu0 0
        %3981 = vmatmul.mubr.bf16.gmra.mrb[0].mxu0 %v3923
        %v3982 = vpop.f32.mrb[0].mxu0
        %v3983 = vadd.f32 %v3857, %v3982
        %v3984 = vpop.f32.mrb[0].mxu0
        %v3985 = vpop.f32.mrb[0].mxu0
        %v3986 = vadd.f32 %v3862, %v3985
        %v3987 = vpop.f32.mrb[0].mxu0
        %3988 = vmatprep.mubr.bf16.mxu0 0
        %3989 = vmatmul.mubr.bf16.gmra.mrb[0].mxu0 %v3926
        %v3990 = vpop.f32.mrb[0].mxu0
        %v3991 = vadd.f32 %v3867, %v3990
        %v3992 = vpop.f32.mrb[0].mxu0
        %v3993 = vpop.f32.mrb[0].mxu0
        %v3994 = vadd.f32 %v3872, %v3993
        %v3995 = vpop.f32.mrb[0].mxu0
        %3996 = vdwg.mxu0
        %v3997 = vmax.f32 %v3967, 0.0
        %v3998 = vmax.f32 %v3970, 0.0
        %v3999 = vmax.f32 %v3975, 0.0
        %v4000 = vmax.f32 %v3978, 0.0
        %v4001 = vmax.f32 %v3983, 0.0
        %v4002 = vmax.f32 %v3986, 0.0
        %v4003 = vmax.f32 %v3991, 0.0
        %v4004 = vmax.f32 %v3994, 0.0
        %v4005 = vld [vmem:[%s12] sm:$0xf]
        %v4006 = vld [vmem:[%s12 + $0x4] sm:$0xf]
        %v4007 = vld [vmem:[%s12 + $0x8] sm:$0xf]
        %v4008 = vld [vmem:[%s12 + $0xc] sm:$0xf]
        %v4009 = vld [vmem:[%s12 + $0x10] sm:$0xf]
        %v4010 = vld [vmem:[%s12 + $0x14] sm:$0xf]
        %v4011 = vld [vmem:[%s12 + $0x18] sm:$0xf]
        %v4012 = vld [vmem:[%s12 + $0x1c] sm:$0xf]
        %v4013 = vpack.c.bf16 %v3998, %v3997
        %v4014 = vpack.c.bf16 %v4000, %v3999
        %v4015 = vpack.c.bf16 %v4002, %v4001
        %v4016 = vpack.c.bf16 %v4004, %v4003
        %v4017 = vld [vmem:[%s13] sm:$0xff]
        %v4018 = vld [vmem:[%s13 + $0x8] sm:$0xff]
        %v4019 = vld [vmem:[%s13 + $0x10] sm:$0xff]
        %v4020 = vld [vmem:[%s13 + $0x18] sm:$0xff]
        %v4021 = vld [vmem:[%s13 + $0x20] sm:$0xff]
        %v4022 = vld [vmem:[%s13 + $0x28] sm:$0xff]
        %v4023 = vld [vmem:[%s13 + $0x30] sm:$0xff]
        %v4024 = vld [vmem:[%s13 + $0x38] sm:$0xff]
        %4026 = vset.pattern.permute.xlu0 0
        %4027 = vperm.xlu0 %4026, %v4017
        %v4028 = vpop.permute.xlu0 %4027
        %4031 = vset.pattern.permute.xlu0 0
        %4032 = vperm.xlu0 %4031, %v4018
        %v4033 = vpop.permute.xlu0 %4032
        %4036 = vset.pattern.permute.xlu0 0
        %4037 = vperm.xlu0 %4036, %v4019
        %v4038 = vpop.permute.xlu0 %4037
        %4041 = vset.pattern.permute.xlu0 0
        %4042 = vperm.xlu0 %4041, %v4020
        %v4043 = vpop.permute.xlu0 %4042
        %4046 = vset.pattern.permute.xlu0 0
        %4047 = vperm.xlu0 %4046, %v4021
        %v4048 = vpop.permute.xlu0 %4047
        %4051 = vset.pattern.permute.xlu0 0
        %4052 = vperm.xlu0 %4051, %v4022
        %v4053 = vpop.permute.xlu0 %4052
        %4056 = vset.pattern.permute.xlu0 0
        %4057 = vperm.xlu0 %4056, %v4023
        %v4058 = vpop.permute.xlu0 %4057
        %4061 = vset.pattern.permute.xlu0 0
        %4062 = vperm.xlu0 %4061, %v4024
        %v4063 = vpop.permute.xlu0 %4062
        %v4073 = vunpack.c.l.b16 %v4005
        %v4074 = vunpack.c.l.b16 %v4006
        %v4075 = vunpack.c.l.b16 %v4007
        %v4076 = vunpack.c.l.b16 %v4008
        %v4077 = vunpack.c.l.b16 %v4009
        %v4078 = vunpack.c.l.b16 %v4010
        %v4079 = vunpack.c.l.b16 %v4011
        %v4080 = vunpack.c.l.b16 %v4012
        %v4081 = vpack.c.b16 %v4074, %v4073
        %v4082 = vpack.c.b16 %v4076, %v4075
        %v4083 = vpack.c.b16 %v4078, %v4077
        %v4084 = vpack.c.b16 %v4080, %v4079
        %v4086 = vsel %vm2080, %v4081, 0
        %v4089 = vsel %vm2080, %v4082, 0
        %v4092 = vsel %vm2080, %v4083, 0
        %v4095 = vsel %vm2080, %v4084, 0
        %4097 = vmatprep.subr.bf16.mxu0 0
        %4098 = vmatpush1.bf16.msra.mxu0 %v4013
        %4099 = vmatprep.subr.bf16.mxu0 0
        %4100 = vmatpush1.bf16.msra.mxu0 %v4014
        %4101 = vmatprep.subr.bf16.mxu0 0
        %4102 = vmatpush1.bf16.msra.mxu0 %v4015
        %4103 = vmatprep.subr.bf16.mxu0 0
        %4104 = vmatpush1.bf16.msra.mxu0 %v4016
        %4105 = vmatprep.subr.bf16.mxu0 0
        %4106 = vmatpush1.bf16.msra.mxu0 0
        %4107 = vmatprep.subr.bf16.mxu0 0
        %4108 = vmatpush1.bf16.msra.mxu0 0
        %4109 = vmatprep.subr.bf16.mxu0 0
        %4110 = vmatpush1.bf16.msra.mxu0 0
        %4111 = vmatprep.subr.bf16.mxu0 0
        %4112 = vmatpush1.bf16.msra.mxu0 0
        %4113 = vmatprep.subr.bf16.mxu0 0
        %4114 = vmatpush1.bf16.msra.mxu0 0
        %4115 = vmatprep.subr.bf16.mxu0 0
        %4116 = vmatpush1.bf16.msra.mxu0 0
        %4117 = vmatprep.subr.bf16.mxu0 0
        %4118 = vmatpush1.bf16.msra.mxu0 0
        %4119 = vmatprep.subr.bf16.mxu0 0
        %4120 = vmatpush1.bf16.msra.mxu0 0
        %4121 = vmatprep.subr.bf16.mxu0 0
        %4122 = vmatpush1.bf16.msra.mxu0 0
        %4123 = vmatprep.subr.bf16.mxu0 0
        %4124 = vmatpush1.bf16.msra.mxu0 0
        %4125 = vmatprep.subr.bf16.mxu0 0
        %4126 = vmatpush1.bf16.msra.mxu0 0
        %4127 = vmatprep.subr.bf16.mxu0 0
        %4128 = vmatpush1.bf16.msra.mxu0 0
        %4129 = vmatprep.mubr.bf16.mxu0 0
        %4130 = vmatmul.mubr.bf16.gmra.mrb[0].mxu0 %v4086
        %v4131 = vpop.f32.mrb[0].mxu0
        %v4132 = vadd.f32 %v4028, %v4131
        %v4133 = vpop.f32.mrb[0].mxu0
        %v4134 = vpop.f32.mrb[0].mxu0
        %v4135 = vadd.f32 %v4033, %v4134
        %v4136 = vpop.f32.mrb[0].mxu0
        %4137 = vmatprep.mubr.bf16.mxu0 0
        %4138 = vmatmul.mubr.bf16.gmra.mrb[0].mxu0 %v4089
        %v4139 = vpop.f32.mrb[0].mxu0
        %v4140 = vadd.f32 %v4038, %v4139
        %v4141 = vpop.f32.mrb[0].mxu0
        %v4142 = vpop.f32.mrb[0].mxu0
        %v4143 = vadd.f32 %v4043, %v4142
        %v4144 = vpop.f32.mrb[0].mxu0
        %4145 = vmatprep.mubr.bf16.mxu0 0
        %4146 = vmatmul.mubr.bf16.gmra.mrb[0].mxu0 %v4092
        %v4147 = vpop.f32.mrb[0].mxu0
        %v4148 = vadd.f32 %v4048, %v4147
        %v4149 = vpop.f32.mrb[0].mxu0
        %v4150 = vpop.f32.mrb[0].mxu0
        %v4151 = vadd.f32 %v4053, %v4150
        %v4152 = vpop.f32.mrb[0].mxu0
        %4153 = vmatprep.mubr.bf16.mxu0 0
        %4154 = vmatmul.mubr.bf16.gmra.mrb[0].mxu0 %v4095
        %v4155 = vpop.f32.mrb[0].mxu0
        %v4156 = vadd.f32 %v4058, %v4155
        %v4157 = vpop.f32.mrb[0].mxu0
        %v4158 = vpop.f32.mrb[0].mxu0
        %v4159 = vadd.f32 %v4063, %v4158
        %v4160 = vpop.f32.mrb[0].mxu0
        %4161 = vdwg.mxu0
        %v4162 = vmax.f32 %v4132, 0.0
        %v4163 = vmax.f32 %v4135, 0.0
        %v4164 = vmax.f32 %v4140, 0.0
        %v4165 = vmax.f32 %v4143, 0.0
        %v4166 = vmax.f32 %v4148, 0.0
        %v4167 = vmax.f32 %v4151, 0.0
        %v4168 = vmax.f32 %v4156, 0.0
        %v4169 = vmax.f32 %v4159, 0.0
        %v4170 = vld [vmem:[%s14] sm:$0x3]
        %v4171 = vpack.c.bf16 %v4163, %v4162
        %v4172 = vpack.c.bf16 %v4165, %v4164
        %v4173 = vpack.c.bf16 %v4167, %v4166
        %v4174 = vpack.c.bf16 %v4169, %v4168
        %v4175 = vld [vmem:[%s15] sm:$0xf]
        %4177 = vset.pattern.permute.xlu0 0
        %4178 = vperm.xlu0 %4177, %v4175
        %v4179 = vpop.permute.xlu0 %4178
        %v4182 = vsel %vm2080, %v4170, 0
        %4184 = vmatprep.subr.bf16.mxu0 0
        %4185 = vmatpush1.bf16.msra.mxu0 %v4171
        %4186 = vmatprep.subr.bf16.mxu0 0
        %4187 = vmatpush1.bf16.msra.mxu0 %v4172
        %4188 = vmatprep.subr.bf16.mxu0 0
        %4189 = vmatpush1.bf16.msra.mxu0 %v4173
        %4190 = vmatprep.subr.bf16.mxu0 0
        %4191 = vmatpush1.bf16.msra.mxu0 %v4174
        %4192 = vmatprep.subr.bf16.mxu0 0
        %4193 = vmatpush1.bf16.msra.mxu0 0
        %4194 = vmatprep.subr.bf16.mxu0 0
        %4195 = vmatpush1.bf16.msra.mxu0 0
        %4196 = vmatprep.subr.bf16.mxu0 0
        %4197 = vmatpush1.bf16.msra.mxu0 0
        %4198 = vmatprep.subr.bf16.mxu0 0
        %4199 = vmatpush1.bf16.msra.mxu0 0
        %4200 = vmatprep.subr.bf16.mxu0 0
        %4201 = vmatpush1.bf16.msra.mxu0 0
        %4202 = vmatprep.subr.bf16.mxu0 0
        %4203 = vmatpush1.bf16.msra.mxu0 0
        %4204 = vmatprep.subr.bf16.mxu0 0
        %4205 = vmatpush1.bf16.msra.mxu0 0
        %4206 = vmatprep.subr.bf16.mxu0 0
        %4207 = vmatpush1.bf16.msra.mxu0 0
        %4208 = vmatprep.subr.bf16.mxu0 0
        %4209 = vmatpush1.bf16.msra.mxu0 0
        %4210 = vmatprep.subr.bf16.mxu0 0
        %4211 = vmatpush1.bf16.msra.mxu0 0
        %4212 = vmatprep.subr.bf16.mxu0 0
        %4213 = vmatpush1.bf16.msra.mxu0 0
        %4214 = vmatprep.subr.bf16.mxu0 0
        %4215 = vmatpush1.bf16.msra.mxu0 0
        %4216 = vmatprep.mubr.bf16.mxu0 0
        %4217 = vmatmul.mubr.bf16.gmra.mrb[0].mxu0 %v4182
        %v4218 = vpop.f32.mrb[0].mxu0
        %v4219 = vadd.f32 %v4179, %v4218
        %v4220 = vpop.f32.mrb[0].mxu0
        %v4221 = vpop.f32.mrb[0].mxu0
        %v4222 = vpop.f32.mrb[0].mxu0
        %4223 = vdwg.mxu0
        %v4224 = vxor.u32 %v4219, 2147483648
        %v4225 = vmul.f32 %v4224, 1.442695
        %v4226 = vpow.pop %v4225
        %v4227 = vadd.f32 %v4226, 1.0
        %v4228 = vrcp.pop %v4227
        %v4229 = vmul.f32 1.0, %v4228
        %v4230 = vlaneseq
        %v4231 = vshrl.u32 %v4230, 7
        %vm4232 = vcmp.eq.s32.totalorder %v4231, 0
        %v4233 = vmul.f32 %v4229, 4.0
        %v4234 = vadd.f32 %v4233, 2.0
        %v4235 = vsel %vm4232, %v4234, %v4229
        %4236 = vst [vmem:[%s717] sm:$0xf] %v4235
        %p4237 = scmp.lt.s32.totalorder %s35, 1
        %s4238 = scalar_select %p4237, %s35, 1
        %s4239 = smul.addr %s4238, 4
        %s4240 = scalar_lea.vmem %s16, %s4239
        %s4241 = sand.u32 %s425, 1
        %s4242 = scalar_lea.sflag [#allocation3], %s4241
        %s4243 = sand.u32 %s425, 1
        %s4244 = scalar_lea.vmem [#allocation2], %s4243
        %p4245 = scmp.lt.s32.totalorder %s35, 1
        %s4246 = scalar_select %p4245, %s35, 1
        %s4247 = scalar_lea.vmem %s18, %s4246
        %p4248 = scmp.lt.s32.totalorder %s35, 1
        %s4249 = scalar_select %p4248, %s35, 1
        %s4250 = scalar_lea.vmem %s19, %s4249
        %p4251 = scmp.lt.s32.totalorder %s35, 1
        %s4252 = scalar_select %p4251, %s35, 1
        %s4253 = smul.addr %s4252, 4
        %s4254 = scalar_lea.vmem %s20, %s4253
        // Predicated region
        $region85: #{nelf_nerf360_forward.1} parent=83 // pred_check
          %p4255 = pneg %p409
        $region86: #{nelf_nerf360_forward.1} parent=83 // pred_check_branch
          %4257 = sbr.rel (%p4255) target = $region88
        $region87: #{nelf_nerf360_forward.1} parent=83 // pred_region
          _
        $region88: #{nelf_nerf360_forward.1} parent=83 // pred_fallthru
          _
        // Predicated region
        $region89: #{nelf_nerf360_forward.1} parent=83 // pred_check
          %p4258 = pneg %p435
        $region90: #{nelf_nerf360_forward.1} parent=83 // pred_check_branch
          %4260 = sbr.rel (%p4258) target = $region92
        $region91: #{nelf_nerf360_forward.1} parent=83 // pred_region
          %s4262 = ssub.s32 16, 16
          %4263 = vsyncadd %s4242, %s4262
          %s4264 = smul.addr %s35, 16
          %s4265 = scalar_lea.hbm %s17, %s4264
          %s4267 = sshll.u32 %s4244, 4
          %s4268 = int_to_ptr.vmem [resolvable:$true] %s4267
          %4270 = dma.vmem_to_hbm [thread:$0]  %s4268, 16, %s4265, %s4242
        $region92: #{nelf_nerf360_forward.1} parent=83 // pred_fallthru
          _
        // Predicated region
        $region93: #{nelf_nerf360_forward.1} parent=83 // pred_check
          %p4271 = pneg %p461
        $region94: #{nelf_nerf360_forward.1} parent=83 // pred_check_branch
          %4273 = sbr.rel (%p4271) target = $region96
        $region95: #{nelf_nerf360_forward.1} parent=83 // pred_region
          _
        $region96: #{nelf_nerf360_forward.1} parent=83 // pred_fallthru
          _
        // Predicated region
        $region97: #{nelf_nerf360_forward.1} parent=83 // pred_check
          %p4274 = pneg %p487
        $region98: #{nelf_nerf360_forward.1} parent=83 // pred_check_branch
          %4276 = sbr.rel (%p4274) target = $region100
        $region99: #{nelf_nerf360_forward.1} parent=83 // pred_region
          _
        $region100: #{nelf_nerf360_forward.1} parent=83 // pred_fallthru
          _
        // Predicated region
        $region101: #{nelf_nerf360_forward.1} parent=83 // pred_check
          %p4277 = pneg %p513
        $region102: #{nelf_nerf360_forward.1} parent=83 // pred_check_branch
          %4279 = sbr.rel (%p4277) target = $region104
        $region103: #{nelf_nerf360_forward.1} parent=83 // pred_region
          _
        $region104: #{nelf_nerf360_forward.1} parent=83 // pred_fallthru
          _
      $region84: #{nelf_nerf360_forward.1} parent=5 // pred_fallthru
        _
      %p4280 = scmp.le.s32.totalorder 2, %s30
      // Predicated region
      $region105: #{nelf_nerf360_forward.1} parent=5 // pred_check
        %p4281 = pneg %p4280
      $region106: #{nelf_nerf360_forward.1} parent=5 // pred_check_branch
        %4283 = sbr.rel (%p4281) target = $region108
      $region107: #{nelf_nerf360_forward.1} parent=5 // pred_region
        %s4284 = ssub.s32 %s30, 2
        // Predicated region
        $region109: #{nelf_nerf360_forward.1} parent=107 // pred_check
          %p4285 = pneg %p415
        $region110: #{nelf_nerf360_forward.1} parent=107 // pred_check_branch
          %4287 = sbr.rel (%p4285) target = $region112
        $region111: #{nelf_nerf360_forward.1} parent=107 // pred_region
          %p4288 = scmp.lt.s32.totalorder %s36, 1
          %s4289 = scalar_select %p4288, %s36, 1
          %s4290 = smul.addr %s4289, 4
          %s4291 = scalar_lea.vmem %s16, %s4290
        $region112: #{nelf_nerf360_forward.1} parent=107 // pred_fallthru
          _
        // Predicated region
        $region113: #{nelf_nerf360_forward.1} parent=107 // pred_check
          %p4292 = pneg %p441
        $region114: #{nelf_nerf360_forward.1} parent=107 // pred_check_branch
          %4294 = sbr.rel (%p4292) target = $region116
        $region115: #{nelf_nerf360_forward.1} parent=107 // pred_region
          %s4295 = sand.u32 %s426, 1
          %s4296 = scalar_lea.sflag [#allocation3], %s4295
          %s4297 = sand.u32 %s426, 1
          %s4298 = scalar_lea.vmem [#allocation2], %s4297
          %4299 = dma.done %s4296, 16
        $region116: #{nelf_nerf360_forward.1} parent=107 // pred_fallthru
          _
        // Predicated region
        $region117: #{nelf_nerf360_forward.1} parent=107 // pred_check
          %p4300 = pneg %p467
        $region118: #{nelf_nerf360_forward.1} parent=107 // pred_check_branch
          %4302 = sbr.rel (%p4300) target = $region120
        $region119: #{nelf_nerf360_forward.1} parent=107 // pred_region
          %p4303 = scmp.lt.s32.totalorder %s36, 1
          %s4304 = scalar_select %p4303, %s36, 1
          %s4305 = scalar_lea.vmem %s18, %s4304
        $region120: #{nelf_nerf360_forward.1} parent=107 // pred_fallthru
          _
        // Predicated region
        $region121: #{nelf_nerf360_forward.1} parent=107 // pred_check
          %p4306 = pneg %p493
        $region122: #{nelf_nerf360_forward.1} parent=107 // pred_check_branch
          %4308 = sbr.rel (%p4306) target = $region124
        $region123: #{nelf_nerf360_forward.1} parent=107 // pred_region
          %p4309 = scmp.lt.s32.totalorder %s36, 1
          %s4310 = scalar_select %p4309, %s36, 1
          %s4311 = scalar_lea.vmem %s19, %s4310
        $region124: #{nelf_nerf360_forward.1} parent=107 // pred_fallthru
          _
        // Predicated region
        $region125: #{nelf_nerf360_forward.1} parent=107 // pred_check
          %p4312 = pneg %p519
        $region126: #{nelf_nerf360_forward.1} parent=107 // pred_check_branch
          %4314 = sbr.rel (%p4312) target = $region128
        $region127: #{nelf_nerf360_forward.1} parent=107 // pred_region
          %p4315 = scmp.lt.s32.totalorder %s36, 1
          %s4316 = scalar_select %p4315, %s36, 1
          %s4317 = smul.addr %s4316, 4
          %s4318 = scalar_lea.vmem %s20, %s4317
        $region128: #{nelf_nerf360_forward.1} parent=107 // pred_fallthru
          _
      $region108: #{nelf_nerf360_forward.1} parent=5 // pred_fallthru
        _
    $region6: #{nelf_nerf360_forward.1} parent=1 // loop_footer
      %s34 = sadd.s32 1, %s30
    $region7: #{nelf_nerf360_forward.1} parent=1 // loop_footer_branch
      %29 = sbr.rel target = $region3
    $region8: #{nelf_nerf360_forward.1} parent=1 // loop_exit
      _
    %4319 = vsyncpa [#allocation3], 1
    %s4320 = scalar_lea.sflag [#allocation3], 1
    %4321 = vsyncpa %s4320, 1

</llo_original>
